<compile_context>
chip_gen: v7x
topology: tpu7x:2x2x1
jax: 0.10.0
libtpu: 0.0.40
codegen_flags: <defaults>
</compile_context>

<pallas_src>
import functools

import numpy as np
import jax
import jax.numpy as jnp
from jax.experimental import pallas as pl
from jax.experimental.pallas import tpu as pltpu


def _round_up(v, m):
    return (v + m - 1) // m * m


def _sigmoid(v):
    # shared by kernel and references so numerics match exactly
    return 1.0 / (1.0 + jnp.exp(-v))


# ---------------------------------------------------------------------------
# Pallas kernel: unrolled message-passing / GRU / final-linear hot path.
# ---------------------------------------------------------------------------
def _gcn_kernel(num_rounds, dim_real,
                x_ref, a_ref, ar_ref, degf_ref, degr_ref,
                waggf_ref, baggf_ref, wimf_ref, wixf_ref, biasf_ref, whhf_ref,
                waggr_ref, baggr_ref, wimr_ref, wixr_ref, biasr_ref, whhr_ref,
                wlin_ref, blin_ref,
                out_ref):
    f32 = jnp.float32
    bf16 = jnp.bfloat16
    NP, HP = out_ref.shape

    def mm(a, b):                       # MXU: bf16 x bf16 -> f32 accumulation
        return jnp.dot(a, b, preferred_element_type=f32)

    x = x_ref[...]                      # (NP, FP) bf16
    A = a_ref[...]                      # (NP, NP) bf16, A[dst, src] = #edges
    Ar = ar_ref[...]                    # (NP, NP) bf16, reverse adjacency

    # ---- loop-invariant per-direction constants (hoisted out of the rounds) --
    def dir_consts(deg_ref, bagg_ref, wim_ref, wix_ref, bias_ref, whh_ref,
                   wagg_ref):
        degb = deg_ref[...] * bagg_ref[...]                      # (NP, HP) f32
        # x-branch of the GRU input matmul + folded biases, computed once
        gx = tuple(mm(x, wix_ref[g]) + bias_ref[g] for g in range(3))  # r, z, n
        bhn = jnp.broadcast_to(bias_ref[3], (NP, HP))            # hh bias, n gate
        wim = tuple(wim_ref[g] for g in range(3))
        whh = tuple(whh_ref[g] for g in range(3))
        return wagg_ref[...], degb, wim, whh, gx, bhn

    fwd = dir_consts(degf_ref, baggf_ref, wimf_ref, wixf_ref, biasf_ref,
                     whhf_ref, waggf_ref)
    rev = dir_consts(degr_ref, baggr_ref, wimr_ref, wixr_ref, biasr_ref,
                     whhr_ref, waggr_ref)

    def half_step(h, adj, consts):
        wagg, degb, wim, whh, gx, bhn = consts
        hb = h.astype(bf16)
        # aggregation: scatter-add == dense adjacency matmul; bias folded as deg*b
        msg = mm(adj, mm(hb, wagg).astype(bf16)) + degb
        mb = msg.astype(bf16)
        gh_n = mm(hb, whh[2]) + bhn
        r = _sigmoid(mm(mb, wim[0]) + mm(hb, whh[0]) + gx[0])
        z = _sigmoid(mm(mb, wim[1]) + mm(hb, whh[1]) + gx[1])
        n = jnp.tanh(mm(mb, wim[2]) + gx[2] + r * gh_n)
        return (1.0 - z) * n + z * h

    # node_state init: ones over the real hidden columns, zeros in lane padding
    col = jax.lax.broadcasted_iota(jnp.int32, (NP, HP), 1)
    h = (col < dim_real).astype(f32)

    for _ in range(num_rounds):         # static unroll (short, fixed trip count)
        h = half_step(h, A, fwd)        # forward edges
        h = half_step(h, Ar, rev)       # reverse edges (enable_reverse=True)
        # TODO(synk): layernorm branch not emitted (module default layernorm=False)

    # final nn.Linear(2*dim_hidden, 2*dim_hidden)
    out_ref[...] = mm(h.astype(bf16), wlin_ref[...]) + blin_ref[...]


# ---------------------------------------------------------------------------
# Wrapper: dense adjacency, per-gate weight split, lane padding, pallas_call.
# ---------------------------------------------------------------------------
def direct_multi_gcn_encoder(x, edge_index, params, *, num_rounds, dim_hidden):
    N, F = x.shape
    H = 2 * dim_hidden
    NP = _round_up(N, 8)                # sublane alignment
    HP = _round_up(H, 128)              # lane-dense hidden width
    FP = _round_up(F, 8)
    f32, bf16 = jnp.float32, jnp.bfloat16

    def pad2(w, rows, cols):
        w = jnp.asarray(w, f32)
        return jnp.pad(w, ((0, rows - w.shape[0]), (0, cols - w.shape[1])))

    def pad_row(b, cols):
        b = jnp.asarray(b, f32)
        return jnp.pad(b, (0, cols - b.shape[0]))[None, :]

    # A[dst, src] = edge multiplicity; reverse pass uses Ar = A.T
    A = jnp.zeros((NP, NP), f32).at[edge_index[1], edge_index[0]].add(1.0)
    Ar = A.T
    deg_f = jnp.sum(A, axis=1, keepdims=True)     # (NP, 1) f32
    deg_r = jnp.sum(Ar, axis=1, keepdims=True)

    def prep_dir(W_agg, b_agg, W_ih, W_hh, b_ih, b_hh):
        W_ih = jnp.asarray(W_ih, f32)
        W_hh = jnp.asarray(W_hh, f32)
        b_ih = jnp.asarray(b_ih, f32)
        b_hh = jnp.asarray(b_hh, f32)
        wagg = pad2(jnp.asarray(W_agg, f32).T, HP, HP).astype(bf16)
        bagg = pad_row(b_agg, HP)
        wim, wix, whh = [], [], []
        for g in range(3):                                 # gate order (r, z, n)
            Wg = W_ih[g * H:(g + 1) * H, :]                # (H, H+F)
            wim.append(pad2(Wg[:, :H].T, HP, HP).astype(bf16))
            wix.append(pad2(Wg[:, H:].T, FP, HP).astype(bf16))
            whh.append(pad2(W_hh[g * H:(g + 1) * H, :].T, HP, HP).astype(bf16))
        bih = [b_ih[g * H:(g + 1) * H] for g in range(3)]
        bhh = [b_hh[g * H:(g + 1) * H] for g in range(3)]
        bias = jnp.stack([pad_row(bih[0] + bhh[0], HP),    # r: both biases folded
                          pad_row(bih[1] + bhh[1], HP),    # z: both biases folded
                          pad_row(bih[2], HP),             # n: input-side bias
                          pad_row(bhh[2], HP)], axis=0)    # n: hidden-side bias
        return (wagg, bagg, jnp.stack(wim), jnp.stack(wix), bias, jnp.stack(whh))

    fwd = prep_dir(params["W_agg"], params["b_agg"], params["W_ih"],
                   params["W_hh"], params["b_ih"], params["b_hh"])
    rev = prep_dir(params["W_agg_r"], params["b_agg_r"], params["W_ih_r"],
                   params["W_hh_r"], params["b_ih_r"], params["b_hh_r"])
    wlin = pad2(jnp.asarray(params["W_lin"], f32).T, HP, HP).astype(bf16)
    blin = pad_row(params["b_lin"], HP)

    xp = jnp.pad(jnp.asarray(x, f32), ((0, NP - N), (0, FP - F))).astype(bf16)

    args = [xp, A.astype(bf16), Ar.astype(bf16), deg_f, deg_r,
            *fwd, *rev, wlin, blin]

    in_bytes = sum(int(a.size) * a.dtype.itemsize for a in args)
    out_bytes = NP * HP * 4
    vmem_limit = int(min(100 * 1024 * 1024,
                         2 * (in_bytes + out_bytes) + (16 << 20)))

    kernel = functools.partial(_gcn_kernel, num_rounds, H)
    state = pl.pallas_call(
        kernel,
        out_shape=jax.ShapeDtypeStruct((NP, HP), jnp.float32),
        in_specs=[pl.BlockSpec(memory_space=pltpu.MemorySpace.VMEM)] * len(args),
        out_specs=pl.BlockSpec(memory_space=pltpu.MemorySpace.VMEM),
        compiler_params=pltpu.CompilerParams(vmem_limit_bytes=vmem_limit),
    )(*args)

    state = state[:N, :H]
    return state[:, :dim_hidden], state[:, dim_hidden:]


# ---------------------------------------------------------------------------
# Deterministic parameter init (PyTorch shapes: Linear [out,in], GRU [3H, in]).
# ---------------------------------------------------------------------------
def init_params(key, dim_feature, H):
    ks = jax.random.split(key, 14)
    u = lambda k, shape: jax.random.uniform(k, shape, jnp.float32, -0.2, 0.2)
    return dict(
        W_agg=u(ks[0], (H, H)),                    b_agg=u(ks[1], (H,)),
        W_agg_r=u(ks[2], (H, H)),                  b_agg_r=u(ks[3], (H,)),
        W_ih=u(ks[4], (3 * H, H + dim_feature)),   W_hh=u(ks[5], (3 * H, H)),
        b_ih=u(ks[6], (3 * H,)),                   b_hh=u(ks[7], (3 * H,)),
        W_ih_r=u(ks[8], (3 * H, H + dim_feature)), W_hh_r=u(ks[9], (3 * H, H)),
        b_ih_r=u(ks[10], (3 * H,)),                b_hh_r=u(ks[11], (3 * H,)),
        W_lin=u(ks[12], (H, H)),                   b_lin=u(ks[13], (H,)),
    )


# ---------------------------------------------------------------------------
# Pure-jnp mirror of the kernel's numeric strategy (bf16 MXU inputs, f32
# accumulation, f32 element-wise math). Tight check of the kernel plumbing.
# ---------------------------------------------------------------------------
def _mixed_precision_ref(x, edge_index, params, num_rounds, dim_hidden):
    f32, bf16 = jnp.float32, jnp.bfloat16
    N, H = x.shape[0], 2 * dim_hidden
    p = {k: jnp.asarray(v, f32) for k, v in params.items()}
    xf = jnp.asarray(x, f32)
    A = jnp.zeros((N, N), f32).at[edge_index[1], edge_index[0]].add(1.0)

    def bdot(a, b):
        return jnp.dot(a.astype(bf16), b.astype(bf16), preferred_element_type=f32)

    def aggr(h, adj, W, b):
        return bdot(adj, bdot(h, W.T)) + adj.sum(1, keepdims=True) * b[None, :]

    def gru(msg, h, Wih, Whh, bih, bhh):
        gi = bdot(msg, Wih[:, :H].T) + bdot(xf, Wih[:, H:].T) + bih
        gh = bdot(h, Whh.T) + bhh
        r = _sigmoid(gi[:, :H] + gh[:, :H])
        z = _sigmoid(gi[:, H:2 * H] + gh[:, H:2 * H])
        n = jnp.tanh(gi[:, 2 * H:] + r * gh[:, 2 * H:])
        return (1.0 - z) * n + z * h

    h = jnp.ones((N, H), f32)
    for _ in range(num_rounds):
        h = gru(aggr(h, A, p["W_agg"], p["b_agg"]), h,
                p["W_ih"], p["W_hh"], p["b_ih"], p["b_hh"])
        h = gru(aggr(h, A.T, p["W_agg_r"], p["b_agg_r"]), h,
                p["W_ih_r"], p["W_hh_r"], p["b_ih_r"], p["b_hh_r"])
    state = bdot(h, p["W_lin"].T) + p["b_lin"]
    return state[:, :dim_hidden], state[:, dim_hidden:]


# ---------------------------------------------------------------------------
# Pure-numpy float64 reference (mirrors the PyTorch scatter-add / GRU semantics).
# ---------------------------------------------------------------------------
def ref_forward(x, edge_index, params, num_rounds, dim_hidden):
    x = np.asarray(x, np.float64)
    src = np.asarray(edge_index[0])
    dst = np.asarray(edge_index[1])
    p = {k: np.asarray(v, np.float64) for k, v in params.items()}
    N = x.shape[0]
    H = 2 * dim_hidden
    sig = lambda v: 1.0 / (1.0 + np.exp(-v))

    def aggr(h, W, b, s, d):
        m = h[s] @ W.T + b
        out = np.zeros((N, H))
        np.add.at(out, d, m)
        return out

    def gru(inp, h, Wih, Whh, bih, bhh):
        gi = inp @ Wih.T + bih
        gh = h @ Whh.T + bhh
        r = sig(gi[:, :H] + gh[:, :H])
        z = sig(gi[:, H:2 * H] + gh[:, H:2 * H])
        n = np.tanh(gi[:, 2 * H:] + r * gh[:, 2 * H:])
        return (1.0 - z) * n + z * h

    h = np.ones((N, H))
    for _ in range(num_rounds):
        msg = aggr(h, p["W_agg"], p["b_agg"], src, dst)
        h = gru(np.concatenate([msg, x], -1), h,
                p["W_ih"], p["W_hh"], p["b_ih"], p["b_hh"])
        msg = aggr(h, p["W_agg_r"], p["b_agg_r"], dst, src)
        h = gru(np.concatenate([msg, x], -1), h,
                p["W_ih_r"], p["W_hh_r"], p["b_ih_r"], p["b_hh_r"])
    state = h @ p["W_lin"].T + p["b_lin"]
    return state[:, :dim_hidden], state[:, dim_hidden:]


if __name__ == "__main__":
    # Small shapes consistent with the module: N nodes, 3 features, dim_hidden=32
    N, F, E = 16, 3, 24
    dim_hidden = 32          # source_conv hidden = 2*dim_hidden = 64
    s_rounds = 4

    key = jax.random.PRNGKey(0)
    kx, ks, kd, kp = jax.random.split(key, 4)
    x = jax.random.normal(kx, (N, F), jnp.float32)
    src = jax.random.randint(ks, (E,), 0, N)
    dst = jax.random.randint(kd, (E,), 0, N)
    edge_index = jnp.stack([src, dst], axis=0)            # [2, E]

    params = init_params(kp, F, 2 * dim_hidden)

    hs, hf = direct_multi_gcn_encoder(
        x, edge_index, params, num_rounds=s_rounds, dim_hidden=dim_hidden)
    jax.block_until_ready((hs, hf))

    # tight check: identical-precision pure-jnp mirror (catches plumbing bugs)
    hs_m, hf_m = _mixed_precision_ref(x, edge_index, params, s_rounds, dim_hidden)
    np.testing.assert_allclose(np.asarray(hs), np.asarray(hs_m),
                               rtol=2e-3, atol=2e-3)
    np.testing.assert_allclose(np.asarray(hf), np.asarray(hf_m),
                               rtol=2e-3, atol=2e-3)

    # loose check: float64 reference (bf16 MXU inputs per the perf review)
    hs_ref, hf_ref = ref_forward(x, edge_index, params, s_rounds, dim_hidden)
    np.testing.assert_allclose(np.asarray(hs), hs_ref, rtol=5e-2, atol=5e-2)
    np.testing.assert_allclose(np.asarray(hf), hf_ref, rtol=5e-2, atol=5e-2)

    print("KERNEL_OK")
</pallas_src>

<mosaic_0001>
module attributes {stable_mosaic.version = 11 : i64} {
  func.func @_gcn_kernel(%arg0: memref<16x8xbf16, #tpu.memory_space<vmem>>, %arg1: memref<16x16xbf16, #tpu.memory_space<vmem>>, %arg2: memref<16x16xbf16, #tpu.memory_space<vmem>>, %arg3: memref<16x1xf32, #tpu.memory_space<vmem>>, %arg4: memref<16x1xf32, #tpu.memory_space<vmem>>, %arg5: memref<128x128xbf16, #tpu.memory_space<vmem>>, %arg6: memref<1x128xf32, #tpu.memory_space<vmem>>, %arg7: memref<3x128x128xbf16, #tpu.memory_space<vmem>>, %arg8: memref<3x8x128xbf16, #tpu.memory_space<vmem>>, %arg9: memref<4x1x128xf32, #tpu.memory_space<vmem>>, %arg10: memref<3x128x128xbf16, #tpu.memory_space<vmem>>, %arg11: memref<128x128xbf16, #tpu.memory_space<vmem>>, %arg12: memref<1x128xf32, #tpu.memory_space<vmem>>, %arg13: memref<3x128x128xbf16, #tpu.memory_space<vmem>>, %arg14: memref<3x8x128xbf16, #tpu.memory_space<vmem>>, %arg15: memref<4x1x128xf32, #tpu.memory_space<vmem>>, %arg16: memref<3x128x128xbf16, #tpu.memory_space<vmem>>, %arg17: memref<128x128xbf16, #tpu.memory_space<vmem>>, %arg18: memref<1x128xf32, #tpu.memory_space<vmem>>, %arg19: memref<16x128xf32, #tpu.memory_space<vmem>>) attributes {dimension_semantics = [], scalar_prefetch = 0 : i64, scratch_operands = 0 : i64, tpu.core_type = #tpu.core_type<tc>} {
    %c0 = arith.constant 0 : index
    %c0_0 = arith.constant 0 : index
    %0 = vector.load %arg0[%c0, %c0_0] : memref<16x8xbf16, #tpu.memory_space<vmem>>, vector<16x8xbf16>
    %c0_1 = arith.constant 0 : index
    %c0_2 = arith.constant 0 : index
    %1 = vector.load %arg1[%c0_1, %c0_2] : memref<16x16xbf16, #tpu.memory_space<vmem>>, vector<16x16xbf16>
    %c0_3 = arith.constant 0 : index
    %c0_4 = arith.constant 0 : index
    %2 = vector.load %arg2[%c0_3, %c0_4] : memref<16x16xbf16, #tpu.memory_space<vmem>>, vector<16x16xbf16>
    %c0_5 = arith.constant 0 : index
    %c0_6 = arith.constant 0 : index
    %3 = vector.load %arg3[%c0_5, %c0_6] : memref<16x1xf32, #tpu.memory_space<vmem>>, vector<16x1xf32>
    %c0_7 = arith.constant 0 : index
    %c0_8 = arith.constant 0 : index
    %4 = vector.load %arg6[%c0_7, %c0_8] : memref<1x128xf32, #tpu.memory_space<vmem>>, vector<1x128xf32>
    %5 = vector.broadcast %3 : vector<16x1xf32> to vector<16x128xf32>
    %6 = vector.broadcast %4 : vector<1x128xf32> to vector<16x128xf32>
    %7 = arith.mulf %5, %6 : vector<16x128xf32>
    %c0_9 = arith.constant 0 : index
    %c0_10 = arith.constant 0 : index
    %c0_11 = arith.constant 0 : index
    %8 = vector.load %arg8[%c0_9, %c0_10, %c0_11] : memref<3x8x128xbf16, #tpu.memory_space<vmem>>, vector<1x8x128xbf16>
    %9 = vector.shape_cast %8 : vector<1x8x128xbf16> to vector<8x128xbf16>
    %cst = arith.constant dense<0.000000e+00> : vector<16x128xf32>
    %10 = tpu.matmul %0, %9, %cst {dimension_numbers = #tpu.dot_dimension_numbers<[1], [0], [0], [1], [0, 0, 1, 1], [], []>} : vector<16x8xbf16>, vector<8x128xbf16>, vector<16x128xf32> -> vector<16x128xf32>
    %c0_12 = arith.constant 0 : index
    %c0_13 = arith.constant 0 : index
    %c0_14 = arith.constant 0 : index
    %11 = vector.load %arg9[%c0_12, %c0_13, %c0_14] : memref<4x1x128xf32, #tpu.memory_space<vmem>>, vector<1x1x128xf32>
    %12 = vector.shape_cast %11 : vector<1x1x128xf32> to vector<1x128xf32>
    %13 = vector.broadcast %12 : vector<1x128xf32> to vector<16x128xf32>
    %14 = arith.addf %10, %13 : vector<16x128xf32>
    %c1 = arith.constant 1 : index
    %c0_15 = arith.constant 0 : index
    %c0_16 = arith.constant 0 : index
    %15 = vector.load %arg8[%c1, %c0_15, %c0_16] : memref<3x8x128xbf16, #tpu.memory_space<vmem>>, vector<1x8x128xbf16>
    %16 = vector.shape_cast %15 : vector<1x8x128xbf16> to vector<8x128xbf16>
    %cst_17 = arith.constant dense<0.000000e+00> : vector<16x128xf32>
    %17 = tpu.matmul %0, %16, %cst_17 {dimension_numbers = #tpu.dot_dimension_numbers<[1], [0], [0], [1], [0, 0, 1, 1], [], []>} : vector<16x8xbf16>, vector<8x128xbf16>, vector<16x128xf32> -> vector<16x128xf32>
    %c1_18 = arith.constant 1 : index
    %c0_19 = arith.constant 0 : index
    %c0_20 = arith.constant 0 : index
    %18 = vector.load %arg9[%c1_18, %c0_19, %c0_20] : memref<4x1x128xf32, #tpu.memory_space<vmem>>, vector<1x1x128xf32>
    %19 = vector.shape_cast %18 : vector<1x1x128xf32> to vector<1x128xf32>
    %20 = vector.broadcast %19 : vector<1x128xf32> to vector<16x128xf32>
    %21 = arith.addf %17, %20 : vector<16x128xf32>
    %c2 = arith.constant 2 : index
    %c0_21 = arith.constant 0 : index
    %c0_22 = arith.constant 0 : index
    %22 = vector.load %arg8[%c2, %c0_21, %c0_22] : memref<3x8x128xbf16, #tpu.memory_space<vmem>>, vector<1x8x128xbf16>
    %23 = vector.shape_cast %22 : vector<1x8x128xbf16> to vector<8x128xbf16>
    %cst_23 = arith.constant dense<0.000000e+00> : vector<16x128xf32>
    %24 = tpu.matmul %0, %23, %cst_23 {dimension_numbers = #tpu.dot_dimension_numbers<[1], [0], [0], [1], [0, 0, 1, 1], [], []>} : vector<16x8xbf16>, vector<8x128xbf16>, vector<16x128xf32> -> vector<16x128xf32>
    %c2_24 = arith.constant 2 : index
    %c0_25 = arith.constant 0 : index
    %c0_26 = arith.constant 0 : index
    %25 = vector.load %arg9[%c2_24, %c0_25, %c0_26] : memref<4x1x128xf32, #tpu.memory_space<vmem>>, vector<1x1x128xf32>
    %26 = vector.shape_cast %25 : vector<1x1x128xf32> to vector<1x128xf32>
    %27 = vector.broadcast %26 : vector<1x128xf32> to vector<16x128xf32>
    %28 = arith.addf %24, %27 : vector<16x128xf32>
    %c3 = arith.constant 3 : index
    %c0_27 = arith.constant 0 : index
    %c0_28 = arith.constant 0 : index
    %29 = vector.load %arg9[%c3, %c0_27, %c0_28] : memref<4x1x128xf32, #tpu.memory_space<vmem>>, vector<1x1x128xf32>
    %30 = vector.shape_cast %29 : vector<1x1x128xf32> to vector<1x128xf32>
    %31 = vector.shape_cast %30 : vector<1x128xf32> to vector<1x128xf32>
    %32 = vector.broadcast %31 : vector<1x128xf32> to vector<16x128xf32>
    %c0_29 = arith.constant 0 : index
    %c0_30 = arith.constant 0 : index
    %c0_31 = arith.constant 0 : index
    %33 = vector.load %arg7[%c0_29, %c0_30, %c0_31] : memref<3x128x128xbf16, #tpu.memory_space<vmem>>, vector<1x128x128xbf16>
    %34 = vector.shape_cast %33 : vector<1x128x128xbf16> to vector<128x128xbf16>
    %c1_32 = arith.constant 1 : index
    %c0_33 = arith.constant 0 : index
    %c0_34 = arith.constant 0 : index
    %35 = vector.load %arg7[%c1_32, %c0_33, %c0_34] : memref<3x128x128xbf16, #tpu.memory_space<vmem>>, vector<1x128x128xbf16>
    %36 = vector.shape_cast %35 : vector<1x128x128xbf16> to vector<128x128xbf16>
    %c2_35 = arith.constant 2 : index
    %c0_36 = arith.constant 0 : index
    %c0_37 = arith.constant 0 : index
    %37 = vector.load %arg7[%c2_35, %c0_36, %c0_37] : memref<3x128x128xbf16, #tpu.memory_space<vmem>>, vector<1x128x128xbf16>
    %38 = vector.shape_cast %37 : vector<1x128x128xbf16> to vector<128x128xbf16>
    %c0_38 = arith.constant 0 : index
    %c0_39 = arith.constant 0 : index
    %c0_40 = arith.constant 0 : index
    %39 = vector.load %arg10[%c0_38, %c0_39, %c0_40] : memref<3x128x128xbf16, #tpu.memory_space<vmem>>, vector<1x128x128xbf16>
    %40 = vector.shape_cast %39 : vector<1x128x128xbf16> to vector<128x128xbf16>
    %c1_41 = arith.constant 1 : index
    %c0_42 = arith.constant 0 : index
    %c0_43 = arith.constant 0 : index
    %41 = vector.load %arg10[%c1_41, %c0_42, %c0_43] : memref<3x128x128xbf16, #tpu.memory_space<vmem>>, vector<1x128x128xbf16>
    %42 = vector.shape_cast %41 : vector<1x128x128xbf16> to vector<128x128xbf16>
    %c2_44 = arith.constant 2 : index
    %c0_45 = arith.constant 0 : index
    %c0_46 = arith.constant 0 : index
    %43 = vector.load %arg10[%c2_44, %c0_45, %c0_46] : memref<3x128x128xbf16, #tpu.memory_space<vmem>>, vector<1x128x128xbf16>
    %44 = vector.shape_cast %43 : vector<1x128x128xbf16> to vector<128x128xbf16>
    %c0_47 = arith.constant 0 : index
    %c0_48 = arith.constant 0 : index
    %45 = vector.load %arg5[%c0_47, %c0_48] : memref<128x128xbf16, #tpu.memory_space<vmem>>, vector<128x128xbf16>
    %c0_49 = arith.constant 0 : index
    %c0_50 = arith.constant 0 : index
    %46 = vector.load %arg4[%c0_49, %c0_50] : memref<16x1xf32, #tpu.memory_space<vmem>>, vector<16x1xf32>
    %c0_51 = arith.constant 0 : index
    %c0_52 = arith.constant 0 : index
    %47 = vector.load %arg12[%c0_51, %c0_52] : memref<1x128xf32, #tpu.memory_space<vmem>>, vector<1x128xf32>
    %48 = vector.broadcast %46 : vector<16x1xf32> to vector<16x128xf32>
    %49 = vector.broadcast %47 : vector<1x128xf32> to vector<16x128xf32>
    %50 = arith.mulf %48, %49 : vector<16x128xf32>
    %c0_53 = arith.constant 0 : index
    %c0_54 = arith.constant 0 : index
    %c0_55 = arith.constant 0 : index
    %51 = vector.load %arg14[%c0_53, %c0_54, %c0_55] : memref<3x8x128xbf16, #tpu.memory_space<vmem>>, vector<1x8x128xbf16>
    %52 = vector.shape_cast %51 : vector<1x8x128xbf16> to vector<8x128xbf16>
    %cst_56 = arith.constant dense<0.000000e+00> : vector<16x128xf32>
    %53 = tpu.matmul %0, %52, %cst_56 {dimension_numbers = #tpu.dot_dimension_numbers<[1], [0], [0], [1], [0, 0, 1, 1], [], []>} : vector<16x8xbf16>, vector<8x128xbf16>, vector<16x128xf32> -> vector<16x128xf32>
    %c0_57 = arith.constant 0 : index
    %c0_58 = arith.constant 0 : index
    %c0_59 = arith.constant 0 : index
    %54 = vector.load %arg15[%c0_57, %c0_58, %c0_59] : memref<4x1x128xf32, #tpu.memory_space<vmem>>, vector<1x1x128xf32>
    %55 = vector.shape_cast %54 : vector<1x1x128xf32> to vector<1x128xf32>
    %56 = vector.broadcast %55 : vector<1x128xf32> to vector<16x128xf32>
    %57 = arith.addf %53, %56 : vector<16x128xf32>
    %c1_60 = arith.constant 1 : index
    %c0_61 = arith.constant 0 : index
    %c0_62 = arith.constant 0 : index
    %58 = vector.load %arg14[%c1_60, %c0_61, %c0_62] : memref<3x8x128xbf16, #tpu.memory_space<vmem>>, vector<1x8x128xbf16>
    %59 = vector.shape_cast %58 : vector<1x8x128xbf16> to vector<8x128xbf16>
    %cst_63 = arith.constant dense<0.000000e+00> : vector<16x128xf32>
    %60 = tpu.matmul %0, %59, %cst_63 {dimension_numbers = #tpu.dot_dimension_numbers<[1], [0], [0], [1], [0, 0, 1, 1], [], []>} : vector<16x8xbf16>, vector<8x128xbf16>, vector<16x128xf32> -> vector<16x128xf32>
    %c1_64 = arith.constant 1 : index
    %c0_65 = arith.constant 0 : index
    %c0_66 = arith.constant 0 : index
    %61 = vector.load %arg15[%c1_64, %c0_65, %c0_66] : memref<4x1x128xf32, #tpu.memory_space<vmem>>, vector<1x1x128xf32>
    %62 = vector.shape_cast %61 : vector<1x1x128xf32> to vector<1x128xf32>
    %63 = vector.broadcast %62 : vector<1x128xf32> to vector<16x128xf32>
    %64 = arith.addf %60, %63 : vector<16x128xf32>
    %c2_67 = arith.constant 2 : index
    %c0_68 = arith.constant 0 : index
    %c0_69 = arith.constant 0 : index
    %65 = vector.load %arg14[%c2_67, %c0_68, %c0_69] : memref<3x8x128xbf16, #tpu.memory_space<vmem>>, vector<1x8x128xbf16>
    %66 = vector.shape_cast %65 : vector<1x8x128xbf16> to vector<8x128xbf16>
    %cst_70 = arith.constant dense<0.000000e+00> : vector<16x128xf32>
    %67 = tpu.matmul %0, %66, %cst_70 {dimension_numbers = #tpu.dot_dimension_numbers<[1], [0], [0], [1], [0, 0, 1, 1], [], []>} : vector<16x8xbf16>, vector<8x128xbf16>, vector<16x128xf32> -> vector<16x128xf32>
    %c2_71 = arith.constant 2 : index
    %c0_72 = arith.constant 0 : index
    %c0_73 = arith.constant 0 : index
    %68 = vector.load %arg15[%c2_71, %c0_72, %c0_73] : memref<4x1x128xf32, #tpu.memory_space<vmem>>, vector<1x1x128xf32>
    %69 = vector.shape_cast %68 : vector<1x1x128xf32> to vector<1x128xf32>
    %70 = vector.broadcast %69 : vector<1x128xf32> to vector<16x128xf32>
    %71 = arith.addf %67, %70 : vector<16x128xf32>
    %c3_74 = arith.constant 3 : index
    %c0_75 = arith.constant 0 : index
    %c0_76 = arith.constant 0 : index
    %72 = vector.load %arg15[%c3_74, %c0_75, %c0_76] : memref<4x1x128xf32, #tpu.memory_space<vmem>>, vector<1x1x128xf32>
    %73 = vector.shape_cast %72 : vector<1x1x128xf32> to vector<1x128xf32>
    %74 = vector.shape_cast %73 : vector<1x128xf32> to vector<1x128xf32>
    %75 = vector.broadcast %74 : vector<1x128xf32> to vector<16x128xf32>
    %c0_77 = arith.constant 0 : index
    %c0_78 = arith.constant 0 : index
    %c0_79 = arith.constant 0 : index
    %76 = vector.load %arg13[%c0_77, %c0_78, %c0_79] : memref<3x128x128xbf16, #tpu.memory_space<vmem>>, vector<1x128x128xbf16>
    %77 = vector.shape_cast %76 : vector<1x128x128xbf16> to vector<128x128xbf16>
    %c1_80 = arith.constant 1 : index
    %c0_81 = arith.constant 0 : index
    %c0_82 = arith.constant 0 : index
    %78 = vector.load %arg13[%c1_80, %c0_81, %c0_82] : memref<3x128x128xbf16, #tpu.memory_space<vmem>>, vector<1x128x128xbf16>
    %79 = vector.shape_cast %78 : vector<1x128x128xbf16> to vector<128x128xbf16>
    %c2_83 = arith.constant 2 : index
    %c0_84 = arith.constant 0 : index
    %c0_85 = arith.constant 0 : index
    %80 = vector.load %arg13[%c2_83, %c0_84, %c0_85] : memref<3x128x128xbf16, #tpu.memory_space<vmem>>, vector<1x128x128xbf16>
    %81 = vector.shape_cast %80 : vector<1x128x128xbf16> to vector<128x128xbf16>
    %c0_86 = arith.constant 0 : index
    %c0_87 = arith.constant 0 : index
    %c0_88 = arith.constant 0 : index
    %82 = vector.load %arg16[%c0_86, %c0_87, %c0_88] : memref<3x128x128xbf16, #tpu.memory_space<vmem>>, vector<1x128x128xbf16>
    %83 = vector.shape_cast %82 : vector<1x128x128xbf16> to vector<128x128xbf16>
    %c1_89 = arith.constant 1 : index
    %c0_90 = arith.constant 0 : index
    %c0_91 = arith.constant 0 : index
    %84 = vector.load %arg16[%c1_89, %c0_90, %c0_91] : memref<3x128x128xbf16, #tpu.memory_space<vmem>>, vector<1x128x128xbf16>
    %85 = vector.shape_cast %84 : vector<1x128x128xbf16> to vector<128x128xbf16>
    %c2_92 = arith.constant 2 : index
    %c0_93 = arith.constant 0 : index
    %c0_94 = arith.constant 0 : index
    %86 = vector.load %arg16[%c2_92, %c0_93, %c0_94] : memref<3x128x128xbf16, #tpu.memory_space<vmem>>, vector<1x128x128xbf16>
    %87 = vector.shape_cast %86 : vector<1x128x128xbf16> to vector<128x128xbf16>
    %c0_95 = arith.constant 0 : index
    %c0_96 = arith.constant 0 : index
    %88 = vector.load %arg11[%c0_95, %c0_96] : memref<128x128xbf16, #tpu.memory_space<vmem>>, vector<128x128xbf16>
    %89 = tpu.iota {dimensions = array<i32: 1>} : vector<16x128xi32>
    %c64_i32 = arith.constant 64 : i32
    %90 = vector.broadcast %c64_i32 : i32 to vector<16x128xi32>
    %91 = arith.cmpi slt, %89, %90 : vector<16x128xi32>
    %92 = arith.extui %91 : vector<16x128xi1> to vector<16x128xi32>
    %93 = arith.sitofp %92 : vector<16x128xi32> to vector<16x128xf32>
    %94 = arith.truncf %93 : vector<16x128xf32> to vector<16x128xbf16>
    %cst_97 = arith.constant dense<0.000000e+00> : vector<16x128xf32>
    %95 = tpu.matmul %94, %45, %cst_97 {dimension_numbers = #tpu.dot_dimension_numbers<[1], [0], [0], [1], [0, 0, 1, 1], [], []>} : vector<16x128xbf16>, vector<128x128xbf16>, vector<16x128xf32> -> vector<16x128xf32>
    %96 = arith.truncf %95 : vector<16x128xf32> to vector<16x128xbf16>
    %cst_98 = arith.constant dense<0.000000e+00> : vector<16x128xf32>
    %97 = tpu.matmul %1, %96, %cst_98 {dimension_numbers = #tpu.dot_dimension_numbers<[1], [0], [0], [1], [0, 0, 1, 1], [], []>} : vector<16x16xbf16>, vector<16x128xbf16>, vector<16x128xf32> -> vector<16x128xf32>
    %98 = arith.addf %97, %7 : vector<16x128xf32>
    %99 = arith.truncf %98 : vector<16x128xf32> to vector<16x128xbf16>
    %cst_99 = arith.constant dense<0.000000e+00> : vector<16x128xf32>
    %100 = tpu.matmul %94, %44, %cst_99 {dimension_numbers = #tpu.dot_dimension_numbers<[1], [0], [0], [1], [0, 0, 1, 1], [], []>} : vector<16x128xbf16>, vector<128x128xbf16>, vector<16x128xf32> -> vector<16x128xf32>
    %101 = arith.addf %100, %32 : vector<16x128xf32>
    %cst_100 = arith.constant dense<0.000000e+00> : vector<16x128xf32>
    %102 = tpu.matmul %99, %34, %cst_100 {dimension_numbers = #tpu.dot_dimension_numbers<[1], [0], [0], [1], [0, 0, 1, 1], [], []>} : vector<16x128xbf16>, vector<128x128xbf16>, vector<16x128xf32> -> vector<16x128xf32>
    %cst_101 = arith.constant dense<0.000000e+00> : vector<16x128xf32>
    %103 = tpu.matmul %94, %40, %cst_101 {dimension_numbers = #tpu.dot_dimension_numbers<[1], [0], [0], [1], [0, 0, 1, 1], [], []>} : vector<16x128xbf16>, vector<128x128xbf16>, vector<16x128xf32> -> vector<16x128xf32>
    %104 = arith.addf %102, %103 : vector<16x128xf32>
    %105 = arith.addf %104, %14 : vector<16x128xf32>
    %cst_102 = arith.constant 0.000000e+00 : f32
    %106 = vector.broadcast %cst_102 : f32 to vector<16x128xf32>
    %107 = arith.subf %106, %105 : vector<16x128xf32>
    %108 = math.exp %107 : vector<16x128xf32>
    %cst_103 = arith.constant 1.000000e+00 : f32
    %109 = vector.broadcast %cst_103 : f32 to vector<16x128xf32>
    %110 = arith.addf %109, %108 : vector<16x128xf32>
    %cst_104 = arith.constant 1.000000e+00 : f32
    %111 = vector.broadcast %cst_104 : f32 to vector<16x128xf32>
    %112 = arith.divf %111, %110 : vector<16x128xf32>
    %cst_105 = arith.constant dense<0.000000e+00> : vector<16x128xf32>
    %113 = tpu.matmul %99, %36, %cst_105 {dimension_numbers = #tpu.dot_dimension_numbers<[1], [0], [0], [1], [0, 0, 1, 1], [], []>} : vector<16x128xbf16>, vector<128x128xbf16>, vector<16x128xf32> -> vector<16x128xf32>
    %cst_106 = arith.constant dense<0.000000e+00> : vector<16x128xf32>
    %114 = tpu.matmul %94, %42, %cst_106 {dimension_numbers = #tpu.dot_dimension_numbers<[1], [0], [0], [1], [0, 0, 1, 1], [], []>} : vector<16x128xbf16>, vector<128x128xbf16>, vector<16x128xf32> -> vector<16x128xf32>
    %115 = arith.addf %113, %114 : vector<16x128xf32>
    %116 = arith.addf %115, %21 : vector<16x128xf32>
    %cst_107 = arith.constant 0.000000e+00 : f32
    %117 = vector.broadcast %cst_107 : f32 to vector<16x128xf32>
    %118 = arith.subf %117, %116 : vector<16x128xf32>
    %119 = math.exp %118 : vector<16x128xf32>
    %cst_108 = arith.constant 1.000000e+00 : f32
    %120 = vector.broadcast %cst_108 : f32 to vector<16x128xf32>
    %121 = arith.addf %120, %119 : vector<16x128xf32>
    %cst_109 = arith.constant 1.000000e+00 : f32
    %122 = vector.broadcast %cst_109 : f32 to vector<16x128xf32>
    %123 = arith.divf %122, %121 : vector<16x128xf32>
    %cst_110 = arith.constant dense<0.000000e+00> : vector<16x128xf32>
    %124 = tpu.matmul %99, %38, %cst_110 {dimension_numbers = #tpu.dot_dimension_numbers<[1], [0], [0], [1], [0, 0, 1, 1], [], []>} : vector<16x128xbf16>, vector<128x128xbf16>, vector<16x128xf32> -> vector<16x128xf32>
    %125 = arith.addf %124, %28 : vector<16x128xf32>
    %126 = arith.mulf %112, %101 : vector<16x128xf32>
    %127 = arith.addf %125, %126 : vector<16x128xf32>
    %128 = math.tanh %127 : vector<16x128xf32>
    %cst_111 = arith.constant 1.000000e+00 : f32
    %129 = vector.broadcast %cst_111 : f32 to vector<16x128xf32>
    %130 = arith.subf %129, %123 : vector<16x128xf32>
    %131 = arith.mulf %130, %128 : vector<16x128xf32>
    %132 = arith.mulf %123, %93 : vector<16x128xf32>
    %133 = arith.addf %131, %132 : vector<16x128xf32>
    %134 = arith.truncf %133 : vector<16x128xf32> to vector<16x128xbf16>
    %cst_112 = arith.constant dense<0.000000e+00> : vector<16x128xf32>
    %135 = tpu.matmul %134, %88, %cst_112 {dimension_numbers = #tpu.dot_dimension_numbers<[1], [0], [0], [1], [0, 0, 1, 1], [], []>} : vector<16x128xbf16>, vector<128x128xbf16>, vector<16x128xf32> -> vector<16x128xf32>
    %136 = arith.truncf %135 : vector<16x128xf32> to vector<16x128xbf16>
    %cst_113 = arith.constant dense<0.000000e+00> : vector<16x128xf32>
    %137 = tpu.matmul %2, %136, %cst_113 {dimension_numbers = #tpu.dot_dimension_numbers<[1], [0], [0], [1], [0, 0, 1, 1], [], []>} : vector<16x16xbf16>, vector<16x128xbf16>, vector<16x128xf32> -> vector<16x128xf32>
    %138 = arith.addf %137, %50 : vector<16x128xf32>
    %139 = arith.truncf %138 : vector<16x128xf32> to vector<16x128xbf16>
    %cst_114 = arith.constant dense<0.000000e+00> : vector<16x128xf32>
    %140 = tpu.matmul %134, %87, %cst_114 {dimension_numbers = #tpu.dot_dimension_numbers<[1], [0], [0], [1], [0, 0, 1, 1], [], []>} : vector<16x128xbf16>, vector<128x128xbf16>, vector<16x128xf32> -> vector<16x128xf32>
    %141 = arith.addf %140, %75 : vector<16x128xf32>
    %cst_115 = arith.constant dense<0.000000e+00> : vector<16x128xf32>
    %142 = tpu.matmul %139, %77, %cst_115 {dimension_numbers = #tpu.dot_dimension_numbers<[1], [0], [0], [1], [0, 0, 1, 1], [], []>} : vector<16x128xbf16>, vector<128x128xbf16>, vector<16x128xf32> -> vector<16x128xf32>
    %cst_116 = arith.constant dense<0.000000e+00> : vector<16x128xf32>
    %143 = tpu.matmul %134, %83, %cst_116 {dimension_numbers = #tpu.dot_dimension_numbers<[1], [0], [0], [1], [0, 0, 1, 1], [], []>} : vector<16x128xbf16>, vector<128x128xbf16>, vector<16x128xf32> -> vector<16x128xf32>
    %144 = arith.addf %142, %143 : vector<16x128xf32>
    %145 = arith.addf %144, %57 : vector<16x128xf32>
    %cst_117 = arith.constant 0.000000e+00 : f32
    %146 = vector.broadcast %cst_117 : f32 to vector<16x128xf32>
    %147 = arith.subf %146, %145 : vector<16x128xf32>
    %148 = math.exp %147 : vector<16x128xf32>
    %cst_118 = arith.constant 1.000000e+00 : f32
    %149 = vector.broadcast %cst_118 : f32 to vector<16x128xf32>
    %150 = arith.addf %149, %148 : vector<16x128xf32>
    %cst_119 = arith.constant 1.000000e+00 : f32
    %151 = vector.broadcast %cst_119 : f32 to vector<16x128xf32>
    %152 = arith.divf %151, %150 : vector<16x128xf32>
    %cst_120 = arith.constant dense<0.000000e+00> : vector<16x128xf32>
    %153 = tpu.matmul %139, %79, %cst_120 {dimension_numbers = #tpu.dot_dimension_numbers<[1], [0], [0], [1], [0, 0, 1, 1], [], []>} : vector<16x128xbf16>, vector<128x128xbf16>, vector<16x128xf32> -> vector<16x128xf32>
    %cst_121 = arith.constant dense<0.000000e+00> : vector<16x128xf32>
    %154 = tpu.matmul %134, %85, %cst_121 {dimension_numbers = #tpu.dot_dimension_numbers<[1], [0], [0], [1], [0, 0, 1, 1], [], []>} : vector<16x128xbf16>, vector<128x128xbf16>, vector<16x128xf32> -> vector<16x128xf32>
    %155 = arith.addf %153, %154 : vector<16x128xf32>
    %156 = arith.addf %155, %64 : vector<16x128xf32>
    %cst_122 = arith.constant 0.000000e+00 : f32
    %157 = vector.broadcast %cst_122 : f32 to vector<16x128xf32>
    %158 = arith.subf %157, %156 : vector<16x128xf32>
    %159 = math.exp %158 : vector<16x128xf32>
    %cst_123 = arith.constant 1.000000e+00 : f32
    %160 = vector.broadcast %cst_123 : f32 to vector<16x128xf32>
    %161 = arith.addf %160, %159 : vector<16x128xf32>
    %cst_124 = arith.constant 1.000000e+00 : f32
    %162 = vector.broadcast %cst_124 : f32 to vector<16x128xf32>
    %163 = arith.divf %162, %161 : vector<16x128xf32>
    %cst_125 = arith.constant dense<0.000000e+00> : vector<16x128xf32>
    %164 = tpu.matmul %139, %81, %cst_125 {dimension_numbers = #tpu.dot_dimension_numbers<[1], [0], [0], [1], [0, 0, 1, 1], [], []>} : vector<16x128xbf16>, vector<128x128xbf16>, vector<16x128xf32> -> vector<16x128xf32>
    %165 = arith.addf %164, %71 : vector<16x128xf32>
    %166 = arith.mulf %152, %141 : vector<16x128xf32>
    %167 = arith.addf %165, %166 : vector<16x128xf32>
    %168 = math.tanh %167 : vector<16x128xf32>
    %cst_126 = arith.constant 1.000000e+00 : f32
    %169 = vector.broadcast %cst_126 : f32 to vector<16x128xf32>
    %170 = arith.subf %169, %163 : vector<16x128xf32>
    %171 = arith.mulf %170, %168 : vector<16x128xf32>
    %172 = arith.mulf %163, %133 : vector<16x128xf32>
    %173 = arith.addf %171, %172 : vector<16x128xf32>
    %174 = arith.truncf %173 : vector<16x128xf32> to vector<16x128xbf16>
    %cst_127 = arith.constant dense<0.000000e+00> : vector<16x128xf32>
    %175 = tpu.matmul %174, %45, %cst_127 {dimension_numbers = #tpu.dot_dimension_numbers<[1], [0], [0], [1], [0, 0, 1, 1], [], []>} : vector<16x128xbf16>, vector<128x128xbf16>, vector<16x128xf32> -> vector<16x128xf32>
    %176 = arith.truncf %175 : vector<16x128xf32> to vector<16x128xbf16>
    %cst_128 = arith.constant dense<0.000000e+00> : vector<16x128xf32>
    %177 = tpu.matmul %1, %176, %cst_128 {dimension_numbers = #tpu.dot_dimension_numbers<[1], [0], [0], [1], [0, 0, 1, 1], [], []>} : vector<16x16xbf16>, vector<16x128xbf16>, vector<16x128xf32> -> vector<16x128xf32>
    %178 = arith.addf %177, %7 : vector<16x128xf32>
    %179 = arith.truncf %178 : vector<16x128xf32> to vector<16x128xbf16>
    %cst_129 = arith.constant dense<0.000000e+00> : vector<16x128xf32>
    %180 = tpu.matmul %174, %44, %cst_129 {dimension_numbers = #tpu.dot_dimension_numbers<[1], [0], [0], [1], [0, 0, 1, 1], [], []>} : vector<16x128xbf16>, vector<128x128xbf16>, vector<16x128xf32> -> vector<16x128xf32>
    %181 = arith.addf %180, %32 : vector<16x128xf32>
    %cst_130 = arith.constant dense<0.000000e+00> : vector<16x128xf32>
    %182 = tpu.matmul %179, %34, %cst_130 {dimension_numbers = #tpu.dot_dimension_numbers<[1], [0], [0], [1], [0, 0, 1, 1], [], []>} : vector<16x128xbf16>, vector<128x128xbf16>, vector<16x128xf32> -> vector<16x128xf32>
    %cst_131 = arith.constant dense<0.000000e+00> : vector<16x128xf32>
    %183 = tpu.matmul %174, %40, %cst_131 {dimension_numbers = #tpu.dot_dimension_numbers<[1], [0], [0], [1], [0, 0, 1, 1], [], []>} : vector<16x128xbf16>, vector<128x128xbf16>, vector<16x128xf32> -> vector<16x128xf32>
    %184 = arith.addf %182, %183 : vector<16x128xf32>
    %185 = arith.addf %184, %14 : vector<16x128xf32>
    %cst_132 = arith.constant 0.000000e+00 : f32
    %186 = vector.broadcast %cst_132 : f32 to vector<16x128xf32>
    %187 = arith.subf %186, %185 : vector<16x128xf32>
    %188 = math.exp %187 : vector<16x128xf32>
    %cst_133 = arith.constant 1.000000e+00 : f32
    %189 = vector.broadcast %cst_133 : f32 to vector<16x128xf32>
    %190 = arith.addf %189, %188 : vector<16x128xf32>
    %cst_134 = arith.constant 1.000000e+00 : f32
    %191 = vector.broadcast %cst_134 : f32 to vector<16x128xf32>
    %192 = arith.divf %191, %190 : vector<16x128xf32>
    %cst_135 = arith.constant dense<0.000000e+00> : vector<16x128xf32>
    %193 = tpu.matmul %179, %36, %cst_135 {dimension_numbers = #tpu.dot_dimension_numbers<[1], [0], [0], [1], [0, 0, 1, 1], [], []>} : vector<16x128xbf16>, vector<128x128xbf16>, vector<16x128xf32> -> vector<16x128xf32>
    %cst_136 = arith.constant dense<0.000000e+00> : vector<16x128xf32>
    %194 = tpu.matmul %174, %42, %cst_136 {dimension_numbers = #tpu.dot_dimension_numbers<[1], [0], [0], [1], [0, 0, 1, 1], [], []>} : vector<16x128xbf16>, vector<128x128xbf16>, vector<16x128xf32> -> vector<16x128xf32>
    %195 = arith.addf %193, %194 : vector<16x128xf32>
    %196 = arith.addf %195, %21 : vector<16x128xf32>
    %cst_137 = arith.constant 0.000000e+00 : f32
    %197 = vector.broadcast %cst_137 : f32 to vector<16x128xf32>
    %198 = arith.subf %197, %196 : vector<16x128xf32>
    %199 = math.exp %198 : vector<16x128xf32>
    %cst_138 = arith.constant 1.000000e+00 : f32
    %200 = vector.broadcast %cst_138 : f32 to vector<16x128xf32>
    %201 = arith.addf %200, %199 : vector<16x128xf32>
    %cst_139 = arith.constant 1.000000e+00 : f32
    %202 = vector.broadcast %cst_139 : f32 to vector<16x128xf32>
    %203 = arith.divf %202, %201 : vector<16x128xf32>
    %cst_140 = arith.constant dense<0.000000e+00> : vector<16x128xf32>
    %204 = tpu.matmul %179, %38, %cst_140 {dimension_numbers = #tpu.dot_dimension_numbers<[1], [0], [0], [1], [0, 0, 1, 1], [], []>} : vector<16x128xbf16>, vector<128x128xbf16>, vector<16x128xf32> -> vector<16x128xf32>
    %205 = arith.addf %204, %28 : vector<16x128xf32>
    %206 = arith.mulf %192, %181 : vector<16x128xf32>
    %207 = arith.addf %205, %206 : vector<16x128xf32>
    %208 = math.tanh %207 : vector<16x128xf32>
    %cst_141 = arith.constant 1.000000e+00 : f32
    %209 = vector.broadcast %cst_141 : f32 to vector<16x128xf32>
    %210 = arith.subf %209, %203 : vector<16x128xf32>
    %211 = arith.mulf %210, %208 : vector<16x128xf32>
    %212 = arith.mulf %203, %173 : vector<16x128xf32>
    %213 = arith.addf %211, %212 : vector<16x128xf32>
    %214 = arith.truncf %213 : vector<16x128xf32> to vector<16x128xbf16>
    %cst_142 = arith.constant dense<0.000000e+00> : vector<16x128xf32>
    %215 = tpu.matmul %214, %88, %cst_142 {dimension_numbers = #tpu.dot_dimension_numbers<[1], [0], [0], [1], [0, 0, 1, 1], [], []>} : vector<16x128xbf16>, vector<128x128xbf16>, vector<16x128xf32> -> vector<16x128xf32>
    %216 = arith.truncf %215 : vector<16x128xf32> to vector<16x128xbf16>
    %cst_143 = arith.constant dense<0.000000e+00> : vector<16x128xf32>
    %217 = tpu.matmul %2, %216, %cst_143 {dimension_numbers = #tpu.dot_dimension_numbers<[1], [0], [0], [1], [0, 0, 1, 1], [], []>} : vector<16x16xbf16>, vector<16x128xbf16>, vector<16x128xf32> -> vector<16x128xf32>
    %218 = arith.addf %217, %50 : vector<16x128xf32>
    %219 = arith.truncf %218 : vector<16x128xf32> to vector<16x128xbf16>
    %cst_144 = arith.constant dense<0.000000e+00> : vector<16x128xf32>
    %220 = tpu.matmul %214, %87, %cst_144 {dimension_numbers = #tpu.dot_dimension_numbers<[1], [0], [0], [1], [0, 0, 1, 1], [], []>} : vector<16x128xbf16>, vector<128x128xbf16>, vector<16x128xf32> -> vector<16x128xf32>
    %221 = arith.addf %220, %75 : vector<16x128xf32>
    %cst_145 = arith.constant dense<0.000000e+00> : vector<16x128xf32>
    %222 = tpu.matmul %219, %77, %cst_145 {dimension_numbers = #tpu.dot_dimension_numbers<[1], [0], [0], [1], [0, 0, 1, 1], [], []>} : vector<16x128xbf16>, vector<128x128xbf16>, vector<16x128xf32> -> vector<16x128xf32>
    %cst_146 = arith.constant dense<0.000000e+00> : vector<16x128xf32>
    %223 = tpu.matmul %214, %83, %cst_146 {dimension_numbers = #tpu.dot_dimension_numbers<[1], [0], [0], [1], [0, 0, 1, 1], [], []>} : vector<16x128xbf16>, vector<128x128xbf16>, vector<16x128xf32> -> vector<16x128xf32>
    %224 = arith.addf %222, %223 : vector<16x128xf32>
    %225 = arith.addf %224, %57 : vector<16x128xf32>
    %cst_147 = arith.constant 0.000000e+00 : f32
    %226 = vector.broadcast %cst_147 : f32 to vector<16x128xf32>
    %227 = arith.subf %226, %225 : vector<16x128xf32>
    %228 = math.exp %227 : vector<16x128xf32>
    %cst_148 = arith.constant 1.000000e+00 : f32
    %229 = vector.broadcast %cst_148 : f32 to vector<16x128xf32>
    %230 = arith.addf %229, %228 : vector<16x128xf32>
    %cst_149 = arith.constant 1.000000e+00 : f32
    %231 = vector.broadcast %cst_149 : f32 to vector<16x128xf32>
    %232 = arith.divf %231, %230 : vector<16x128xf32>
    %cst_150 = arith.constant dense<0.000000e+00> : vector<16x128xf32>
    %233 = tpu.matmul %219, %79, %cst_150 {dimension_numbers = #tpu.dot_dimension_numbers<[1], [0], [0], [1], [0, 0, 1, 1], [], []>} : vector<16x128xbf16>, vector<128x128xbf16>, vector<16x128xf32> -> vector<16x128xf32>
    %cst_151 = arith.constant dense<0.000000e+00> : vector<16x128xf32>
    %234 = tpu.matmul %214, %85, %cst_151 {dimension_numbers = #tpu.dot_dimension_numbers<[1], [0], [0], [1], [0, 0, 1, 1], [], []>} : vector<16x128xbf16>, vector<128x128xbf16>, vector<16x128xf32> -> vector<16x128xf32>
    %235 = arith.addf %233, %234 : vector<16x128xf32>
    %236 = arith.addf %235, %64 : vector<16x128xf32>
    %cst_152 = arith.constant 0.000000e+00 : f32
    %237 = vector.broadcast %cst_152 : f32 to vector<16x128xf32>
    %238 = arith.subf %237, %236 : vector<16x128xf32>
    %239 = math.exp %238 : vector<16x128xf32>
    %cst_153 = arith.constant 1.000000e+00 : f32
    %240 = vector.broadcast %cst_153 : f32 to vector<16x128xf32>
    %241 = arith.addf %240, %239 : vector<16x128xf32>
    %cst_154 = arith.constant 1.000000e+00 : f32
    %242 = vector.broadcast %cst_154 : f32 to vector<16x128xf32>
    %243 = arith.divf %242, %241 : vector<16x128xf32>
    %cst_155 = arith.constant dense<0.000000e+00> : vector<16x128xf32>
    %244 = tpu.matmul %219, %81, %cst_155 {dimension_numbers = #tpu.dot_dimension_numbers<[1], [0], [0], [1], [0, 0, 1, 1], [], []>} : vector<16x128xbf16>, vector<128x128xbf16>, vector<16x128xf32> -> vector<16x128xf32>
    %245 = arith.addf %244, %71 : vector<16x128xf32>
    %246 = arith.mulf %232, %221 : vector<16x128xf32>
    %247 = arith.addf %245, %246 : vector<16x128xf32>
    %248 = math.tanh %247 : vector<16x128xf32>
    %cst_156 = arith.constant 1.000000e+00 : f32
    %249 = vector.broadcast %cst_156 : f32 to vector<16x128xf32>
    %250 = arith.subf %249, %243 : vector<16x128xf32>
    %251 = arith.mulf %250, %248 : vector<16x128xf32>
    %252 = arith.mulf %243, %213 : vector<16x128xf32>
    %253 = arith.addf %251, %252 : vector<16x128xf32>
    %254 = arith.truncf %253 : vector<16x128xf32> to vector<16x128xbf16>
    %cst_157 = arith.constant dense<0.000000e+00> : vector<16x128xf32>
    %255 = tpu.matmul %254, %45, %cst_157 {dimension_numbers = #tpu.dot_dimension_numbers<[1], [0], [0], [1], [0, 0, 1, 1], [], []>} : vector<16x128xbf16>, vector<128x128xbf16>, vector<16x128xf32> -> vector<16x128xf32>
    %256 = arith.truncf %255 : vector<16x128xf32> to vector<16x128xbf16>
    %cst_158 = arith.constant dense<0.000000e+00> : vector<16x128xf32>
    %257 = tpu.matmul %1, %256, %cst_158 {dimension_numbers = #tpu.dot_dimension_numbers<[1], [0], [0], [1], [0, 0, 1, 1], [], []>} : vector<16x16xbf16>, vector<16x128xbf16>, vector<16x128xf32> -> vector<16x128xf32>
    %258 = arith.addf %257, %7 : vector<16x128xf32>
    %259 = arith.truncf %258 : vector<16x128xf32> to vector<16x128xbf16>
    %cst_159 = arith.constant dense<0.000000e+00> : vector<16x128xf32>
    %260 = tpu.matmul %254, %44, %cst_159 {dimension_numbers = #tpu.dot_dimension_numbers<[1], [0], [0], [1], [0, 0, 1, 1], [], []>} : vector<16x128xbf16>, vector<128x128xbf16>, vector<16x128xf32> -> vector<16x128xf32>
    %261 = arith.addf %260, %32 : vector<16x128xf32>
    %cst_160 = arith.constant dense<0.000000e+00> : vector<16x128xf32>
    %262 = tpu.matmul %259, %34, %cst_160 {dimension_numbers = #tpu.dot_dimension_numbers<[1], [0], [0], [1], [0, 0, 1, 1], [], []>} : vector<16x128xbf16>, vector<128x128xbf16>, vector<16x128xf32> -> vector<16x128xf32>
    %cst_161 = arith.constant dense<0.000000e+00> : vector<16x128xf32>
    %263 = tpu.matmul %254, %40, %cst_161 {dimension_numbers = #tpu.dot_dimension_numbers<[1], [0], [0], [1], [0, 0, 1, 1], [], []>} : vector<16x128xbf16>, vector<128x128xbf16>, vector<16x128xf32> -> vector<16x128xf32>
    %264 = arith.addf %262, %263 : vector<16x128xf32>
    %265 = arith.addf %264, %14 : vector<16x128xf32>
    %cst_162 = arith.constant 0.000000e+00 : f32
    %266 = vector.broadcast %cst_162 : f32 to vector<16x128xf32>
    %267 = arith.subf %266, %265 : vector<16x128xf32>
    %268 = math.exp %267 : vector<16x128xf32>
    %cst_163 = arith.constant 1.000000e+00 : f32
    %269 = vector.broadcast %cst_163 : f32 to vector<16x128xf32>
    %270 = arith.addf %269, %268 : vector<16x128xf32>
    %cst_164 = arith.constant 1.000000e+00 : f32
    %271 = vector.broadcast %cst_164 : f32 to vector<16x128xf32>
    %272 = arith.divf %271, %270 : vector<16x128xf32>
    %cst_165 = arith.constant dense<0.000000e+00> : vector<16x128xf32>
    %273 = tpu.matmul %259, %36, %cst_165 {dimension_numbers = #tpu.dot_dimension_numbers<[1], [0], [0], [1], [0, 0, 1, 1], [], []>} : vector<16x128xbf16>, vector<128x128xbf16>, vector<16x128xf32> -> vector<16x128xf32>
    %cst_166 = arith.constant dense<0.000000e+00> : vector<16x128xf32>
    %274 = tpu.matmul %254, %42, %cst_166 {dimension_numbers = #tpu.dot_dimension_numbers<[1], [0], [0], [1], [0, 0, 1, 1], [], []>} : vector<16x128xbf16>, vector<128x128xbf16>, vector<16x128xf32> -> vector<16x128xf32>
    %275 = arith.addf %273, %274 : vector<16x128xf32>
    %276 = arith.addf %275, %21 : vector<16x128xf32>
    %cst_167 = arith.constant 0.000000e+00 : f32
    %277 = vector.broadcast %cst_167 : f32 to vector<16x128xf32>
    %278 = arith.subf %277, %276 : vector<16x128xf32>
    %279 = math.exp %278 : vector<16x128xf32>
    %cst_168 = arith.constant 1.000000e+00 : f32
    %280 = vector.broadcast %cst_168 : f32 to vector<16x128xf32>
    %281 = arith.addf %280, %279 : vector<16x128xf32>
    %cst_169 = arith.constant 1.000000e+00 : f32
    %282 = vector.broadcast %cst_169 : f32 to vector<16x128xf32>
    %283 = arith.divf %282, %281 : vector<16x128xf32>
    %cst_170 = arith.constant dense<0.000000e+00> : vector<16x128xf32>
    %284 = tpu.matmul %259, %38, %cst_170 {dimension_numbers = #tpu.dot_dimension_numbers<[1], [0], [0], [1], [0, 0, 1, 1], [], []>} : vector<16x128xbf16>, vector<128x128xbf16>, vector<16x128xf32> -> vector<16x128xf32>
    %285 = arith.addf %284, %28 : vector<16x128xf32>
    %286 = arith.mulf %272, %261 : vector<16x128xf32>
    %287 = arith.addf %285, %286 : vector<16x128xf32>
    %288 = math.tanh %287 : vector<16x128xf32>
    %cst_171 = arith.constant 1.000000e+00 : f32
    %289 = vector.broadcast %cst_171 : f32 to vector<16x128xf32>
    %290 = arith.subf %289, %283 : vector<16x128xf32>
    %291 = arith.mulf %290, %288 : vector<16x128xf32>
    %292 = arith.mulf %283, %253 : vector<16x128xf32>
    %293 = arith.addf %291, %292 : vector<16x128xf32>
    %294 = arith.truncf %293 : vector<16x128xf32> to vector<16x128xbf16>
    %cst_172 = arith.constant dense<0.000000e+00> : vector<16x128xf32>
    %295 = tpu.matmul %294, %88, %cst_172 {dimension_numbers = #tpu.dot_dimension_numbers<[1], [0], [0], [1], [0, 0, 1, 1], [], []>} : vector<16x128xbf16>, vector<128x128xbf16>, vector<16x128xf32> -> vector<16x128xf32>
    %296 = arith.truncf %295 : vector<16x128xf32> to vector<16x128xbf16>
    %cst_173 = arith.constant dense<0.000000e+00> : vector<16x128xf32>
    %297 = tpu.matmul %2, %296, %cst_173 {dimension_numbers = #tpu.dot_dimension_numbers<[1], [0], [0], [1], [0, 0, 1, 1], [], []>} : vector<16x16xbf16>, vector<16x128xbf16>, vector<16x128xf32> -> vector<16x128xf32>
    %298 = arith.addf %297, %50 : vector<16x128xf32>
    %299 = arith.truncf %298 : vector<16x128xf32> to vector<16x128xbf16>
    %cst_174 = arith.constant dense<0.000000e+00> : vector<16x128xf32>
    %300 = tpu.matmul %294, %87, %cst_174 {dimension_numbers = #tpu.dot_dimension_numbers<[1], [0], [0], [1], [0, 0, 1, 1], [], []>} : vector<16x128xbf16>, vector<128x128xbf16>, vector<16x128xf32> -> vector<16x128xf32>
    %301 = arith.addf %300, %75 : vector<16x128xf32>
    %cst_175 = arith.constant dense<0.000000e+00> : vector<16x128xf32>
    %302 = tpu.matmul %299, %77, %cst_175 {dimension_numbers = #tpu.dot_dimension_numbers<[1], [0], [0], [1], [0, 0, 1, 1], [], []>} : vector<16x128xbf16>, vector<128x128xbf16>, vector<16x128xf32> -> vector<16x128xf32>
    %cst_176 = arith.constant dense<0.000000e+00> : vector<16x128xf32>
    %303 = tpu.matmul %294, %83, %cst_176 {dimension_numbers = #tpu.dot_dimension_numbers<[1], [0], [0], [1], [0, 0, 1, 1], [], []>} : vector<16x128xbf16>, vector<128x128xbf16>, vector<16x128xf32> -> vector<16x128xf32>
    %304 = arith.addf %302, %303 : vector<16x128xf32>
    %305 = arith.addf %304, %57 : vector<16x128xf32>
    %cst_177 = arith.constant 0.000000e+00 : f32
    %306 = vector.broadcast %cst_177 : f32 to vector<16x128xf32>
    %307 = arith.subf %306, %305 : vector<16x128xf32>
    %308 = math.exp %307 : vector<16x128xf32>
    %cst_178 = arith.constant 1.000000e+00 : f32
    %309 = vector.broadcast %cst_178 : f32 to vector<16x128xf32>
    %310 = arith.addf %309, %308 : vector<16x128xf32>
    %cst_179 = arith.constant 1.000000e+00 : f32
    %311 = vector.broadcast %cst_179 : f32 to vector<16x128xf32>
    %312 = arith.divf %311, %310 : vector<16x128xf32>
    %cst_180 = arith.constant dense<0.000000e+00> : vector<16x128xf32>
    %313 = tpu.matmul %299, %79, %cst_180 {dimension_numbers = #tpu.dot_dimension_numbers<[1], [0], [0], [1], [0, 0, 1, 1], [], []>} : vector<16x128xbf16>, vector<128x128xbf16>, vector<16x128xf32> -> vector<16x128xf32>
    %cst_181 = arith.constant dense<0.000000e+00> : vector<16x128xf32>
    %314 = tpu.matmul %294, %85, %cst_181 {dimension_numbers = #tpu.dot_dimension_numbers<[1], [0], [0], [1], [0, 0, 1, 1], [], []>} : vector<16x128xbf16>, vector<128x128xbf16>, vector<16x128xf32> -> vector<16x128xf32>
    %315 = arith.addf %313, %314 : vector<16x128xf32>
    %316 = arith.addf %315, %64 : vector<16x128xf32>
    %cst_182 = arith.constant 0.000000e+00 : f32
    %317 = vector.broadcast %cst_182 : f32 to vector<16x128xf32>
    %318 = arith.subf %317, %316 : vector<16x128xf32>
    %319 = math.exp %318 : vector<16x128xf32>
    %cst_183 = arith.constant 1.000000e+00 : f32
    %320 = vector.broadcast %cst_183 : f32 to vector<16x128xf32>
    %321 = arith.addf %320, %319 : vector<16x128xf32>
    %cst_184 = arith.constant 1.000000e+00 : f32
    %322 = vector.broadcast %cst_184 : f32 to vector<16x128xf32>
    %323 = arith.divf %322, %321 : vector<16x128xf32>
    %cst_185 = arith.constant dense<0.000000e+00> : vector<16x128xf32>
    %324 = tpu.matmul %299, %81, %cst_185 {dimension_numbers = #tpu.dot_dimension_numbers<[1], [0], [0], [1], [0, 0, 1, 1], [], []>} : vector<16x128xbf16>, vector<128x128xbf16>, vector<16x128xf32> -> vector<16x128xf32>
    %325 = arith.addf %324, %71 : vector<16x128xf32>
    %326 = arith.mulf %312, %301 : vector<16x128xf32>
    %327 = arith.addf %325, %326 : vector<16x128xf32>
    %328 = math.tanh %327 : vector<16x128xf32>
    %cst_186 = arith.constant 1.000000e+00 : f32
    %329 = vector.broadcast %cst_186 : f32 to vector<16x128xf32>
    %330 = arith.subf %329, %323 : vector<16x128xf32>
    %331 = arith.mulf %330, %328 : vector<16x128xf32>
    %332 = arith.mulf %323, %293 : vector<16x128xf32>
    %333 = arith.addf %331, %332 : vector<16x128xf32>
    %334 = arith.truncf %333 : vector<16x128xf32> to vector<16x128xbf16>
    %cst_187 = arith.constant dense<0.000000e+00> : vector<16x128xf32>
    %335 = tpu.matmul %334, %45, %cst_187 {dimension_numbers = #tpu.dot_dimension_numbers<[1], [0], [0], [1], [0, 0, 1, 1], [], []>} : vector<16x128xbf16>, vector<128x128xbf16>, vector<16x128xf32> -> vector<16x128xf32>
    %336 = arith.truncf %335 : vector<16x128xf32> to vector<16x128xbf16>
    %cst_188 = arith.constant dense<0.000000e+00> : vector<16x128xf32>
    %337 = tpu.matmul %1, %336, %cst_188 {dimension_numbers = #tpu.dot_dimension_numbers<[1], [0], [0], [1], [0, 0, 1, 1], [], []>} : vector<16x16xbf16>, vector<16x128xbf16>, vector<16x128xf32> -> vector<16x128xf32>
    %338 = arith.addf %337, %7 : vector<16x128xf32>
    %339 = arith.truncf %338 : vector<16x128xf32> to vector<16x128xbf16>
    %cst_189 = arith.constant dense<0.000000e+00> : vector<16x128xf32>
    %340 = tpu.matmul %334, %44, %cst_189 {dimension_numbers = #tpu.dot_dimension_numbers<[1], [0], [0], [1], [0, 0, 1, 1], [], []>} : vector<16x128xbf16>, vector<128x128xbf16>, vector<16x128xf32> -> vector<16x128xf32>
    %341 = arith.addf %340, %32 : vector<16x128xf32>
    %cst_190 = arith.constant dense<0.000000e+00> : vector<16x128xf32>
    %342 = tpu.matmul %339, %34, %cst_190 {dimension_numbers = #tpu.dot_dimension_numbers<[1], [0], [0], [1], [0, 0, 1, 1], [], []>} : vector<16x128xbf16>, vector<128x128xbf16>, vector<16x128xf32> -> vector<16x128xf32>
    %cst_191 = arith.constant dense<0.000000e+00> : vector<16x128xf32>
    %343 = tpu.matmul %334, %40, %cst_191 {dimension_numbers = #tpu.dot_dimension_numbers<[1], [0], [0], [1], [0, 0, 1, 1], [], []>} : vector<16x128xbf16>, vector<128x128xbf16>, vector<16x128xf32> -> vector<16x128xf32>
    %344 = arith.addf %342, %343 : vector<16x128xf32>
    %345 = arith.addf %344, %14 : vector<16x128xf32>
    %cst_192 = arith.constant 0.000000e+00 : f32
    %346 = vector.broadcast %cst_192 : f32 to vector<16x128xf32>
    %347 = arith.subf %346, %345 : vector<16x128xf32>
    %348 = math.exp %347 : vector<16x128xf32>
    %cst_193 = arith.constant 1.000000e+00 : f32
    %349 = vector.broadcast %cst_193 : f32 to vector<16x128xf32>
    %350 = arith.addf %349, %348 : vector<16x128xf32>
    %cst_194 = arith.constant 1.000000e+00 : f32
    %351 = vector.broadcast %cst_194 : f32 to vector<16x128xf32>
    %352 = arith.divf %351, %350 : vector<16x128xf32>
    %cst_195 = arith.constant dense<0.000000e+00> : vector<16x128xf32>
    %353 = tpu.matmul %339, %36, %cst_195 {dimension_numbers = #tpu.dot_dimension_numbers<[1], [0], [0], [1], [0, 0, 1, 1], [], []>} : vector<16x128xbf16>, vector<128x128xbf16>, vector<16x128xf32> -> vector<16x128xf32>
    %cst_196 = arith.constant dense<0.000000e+00> : vector<16x128xf32>
    %354 = tpu.matmul %334, %42, %cst_196 {dimension_numbers = #tpu.dot_dimension_numbers<[1], [0], [0], [1], [0, 0, 1, 1], [], []>} : vector<16x128xbf16>, vector<128x128xbf16>, vector<16x128xf32> -> vector<16x128xf32>
    %355 = arith.addf %353, %354 : vector<16x128xf32>
    %356 = arith.addf %355, %21 : vector<16x128xf32>
    %cst_197 = arith.constant 0.000000e+00 : f32
    %357 = vector.broadcast %cst_197 : f32 to vector<16x128xf32>
    %358 = arith.subf %357, %356 : vector<16x128xf32>
    %359 = math.exp %358 : vector<16x128xf32>
    %cst_198 = arith.constant 1.000000e+00 : f32
    %360 = vector.broadcast %cst_198 : f32 to vector<16x128xf32>
    %361 = arith.addf %360, %359 : vector<16x128xf32>
    %cst_199 = arith.constant 1.000000e+00 : f32
    %362 = vector.broadcast %cst_199 : f32 to vector<16x128xf32>
    %363 = arith.divf %362, %361 : vector<16x128xf32>
    %cst_200 = arith.constant dense<0.000000e+00> : vector<16x128xf32>
    %364 = tpu.matmul %339, %38, %cst_200 {dimension_numbers = #tpu.dot_dimension_numbers<[1], [0], [0], [1], [0, 0, 1, 1], [], []>} : vector<16x128xbf16>, vector<128x128xbf16>, vector<16x128xf32> -> vector<16x128xf32>
    %365 = arith.addf %364, %28 : vector<16x128xf32>
    %366 = arith.mulf %352, %341 : vector<16x128xf32>
    %367 = arith.addf %365, %366 : vector<16x128xf32>
    %368 = math.tanh %367 : vector<16x128xf32>
    %cst_201 = arith.constant 1.000000e+00 : f32
    %369 = vector.broadcast %cst_201 : f32 to vector<16x128xf32>
    %370 = arith.subf %369, %363 : vector<16x128xf32>
    %371 = arith.mulf %370, %368 : vector<16x128xf32>
    %372 = arith.mulf %363, %333 : vector<16x128xf32>
    %373 = arith.addf %371, %372 : vector<16x128xf32>
    %374 = arith.truncf %373 : vector<16x128xf32> to vector<16x128xbf16>
    %cst_202 = arith.constant dense<0.000000e+00> : vector<16x128xf32>
    %375 = tpu.matmul %374, %88, %cst_202 {dimension_numbers = #tpu.dot_dimension_numbers<[1], [0], [0], [1], [0, 0, 1, 1], [], []>} : vector<16x128xbf16>, vector<128x128xbf16>, vector<16x128xf32> -> vector<16x128xf32>
    %376 = arith.truncf %375 : vector<16x128xf32> to vector<16x128xbf16>
    %cst_203 = arith.constant dense<0.000000e+00> : vector<16x128xf32>
    %377 = tpu.matmul %2, %376, %cst_203 {dimension_numbers = #tpu.dot_dimension_numbers<[1], [0], [0], [1], [0, 0, 1, 1], [], []>} : vector<16x16xbf16>, vector<16x128xbf16>, vector<16x128xf32> -> vector<16x128xf32>
    %378 = arith.addf %377, %50 : vector<16x128xf32>
    %379 = arith.truncf %378 : vector<16x128xf32> to vector<16x128xbf16>
    %cst_204 = arith.constant dense<0.000000e+00> : vector<16x128xf32>
    %380 = tpu.matmul %374, %87, %cst_204 {dimension_numbers = #tpu.dot_dimension_numbers<[1], [0], [0], [1], [0, 0, 1, 1], [], []>} : vector<16x128xbf16>, vector<128x128xbf16>, vector<16x128xf32> -> vector<16x128xf32>
    %381 = arith.addf %380, %75 : vector<16x128xf32>
    %cst_205 = arith.constant dense<0.000000e+00> : vector<16x128xf32>
    %382 = tpu.matmul %379, %77, %cst_205 {dimension_numbers = #tpu.dot_dimension_numbers<[1], [0], [0], [1], [0, 0, 1, 1], [], []>} : vector<16x128xbf16>, vector<128x128xbf16>, vector<16x128xf32> -> vector<16x128xf32>
    %cst_206 = arith.constant dense<0.000000e+00> : vector<16x128xf32>
    %383 = tpu.matmul %374, %83, %cst_206 {dimension_numbers = #tpu.dot_dimension_numbers<[1], [0], [0], [1], [0, 0, 1, 1], [], []>} : vector<16x128xbf16>, vector<128x128xbf16>, vector<16x128xf32> -> vector<16x128xf32>
    %384 = arith.addf %382, %383 : vector<16x128xf32>
    %385 = arith.addf %384, %57 : vector<16x128xf32>
    %cst_207 = arith.constant 0.000000e+00 : f32
    %386 = vector.broadcast %cst_207 : f32 to vector<16x128xf32>
    %387 = arith.subf %386, %385 : vector<16x128xf32>
    %388 = math.exp %387 : vector<16x128xf32>
    %cst_208 = arith.constant 1.000000e+00 : f32
    %389 = vector.broadcast %cst_208 : f32 to vector<16x128xf32>
    %390 = arith.addf %389, %388 : vector<16x128xf32>
    %cst_209 = arith.constant 1.000000e+00 : f32
    %391 = vector.broadcast %cst_209 : f32 to vector<16x128xf32>
    %392 = arith.divf %391, %390 : vector<16x128xf32>
    %cst_210 = arith.constant dense<0.000000e+00> : vector<16x128xf32>
    %393 = tpu.matmul %379, %79, %cst_210 {dimension_numbers = #tpu.dot_dimension_numbers<[1], [0], [0], [1], [0, 0, 1, 1], [], []>} : vector<16x128xbf16>, vector<128x128xbf16>, vector<16x128xf32> -> vector<16x128xf32>
    %cst_211 = arith.constant dense<0.000000e+00> : vector<16x128xf32>
    %394 = tpu.matmul %374, %85, %cst_211 {dimension_numbers = #tpu.dot_dimension_numbers<[1], [0], [0], [1], [0, 0, 1, 1], [], []>} : vector<16x128xbf16>, vector<128x128xbf16>, vector<16x128xf32> -> vector<16x128xf32>
    %395 = arith.addf %393, %394 : vector<16x128xf32>
    %396 = arith.addf %395, %64 : vector<16x128xf32>
    %cst_212 = arith.constant 0.000000e+00 : f32
    %397 = vector.broadcast %cst_212 : f32 to vector<16x128xf32>
    %398 = arith.subf %397, %396 : vector<16x128xf32>
    %399 = math.exp %398 : vector<16x128xf32>
    %cst_213 = arith.constant 1.000000e+00 : f32
    %400 = vector.broadcast %cst_213 : f32 to vector<16x128xf32>
    %401 = arith.addf %400, %399 : vector<16x128xf32>
    %cst_214 = arith.constant 1.000000e+00 : f32
    %402 = vector.broadcast %cst_214 : f32 to vector<16x128xf32>
    %403 = arith.divf %402, %401 : vector<16x128xf32>
    %cst_215 = arith.constant dense<0.000000e+00> : vector<16x128xf32>
    %404 = tpu.matmul %379, %81, %cst_215 {dimension_numbers = #tpu.dot_dimension_numbers<[1], [0], [0], [1], [0, 0, 1, 1], [], []>} : vector<16x128xbf16>, vector<128x128xbf16>, vector<16x128xf32> -> vector<16x128xf32>
    %405 = arith.addf %404, %71 : vector<16x128xf32>
    %406 = arith.mulf %392, %381 : vector<16x128xf32>
    %407 = arith.addf %405, %406 : vector<16x128xf32>
    %408 = math.tanh %407 : vector<16x128xf32>
    %cst_216 = arith.constant 1.000000e+00 : f32
    %409 = vector.broadcast %cst_216 : f32 to vector<16x128xf32>
    %410 = arith.subf %409, %403 : vector<16x128xf32>
    %411 = arith.mulf %410, %408 : vector<16x128xf32>
    %412 = arith.mulf %403, %373 : vector<16x128xf32>
    %413 = arith.addf %411, %412 : vector<16x128xf32>
    %414 = arith.truncf %413 : vector<16x128xf32> to vector<16x128xbf16>
    %c0_217 = arith.constant 0 : index
    %c0_218 = arith.constant 0 : index
    %415 = vector.load %arg17[%c0_217, %c0_218] : memref<128x128xbf16, #tpu.memory_space<vmem>>, vector<128x128xbf16>
    %cst_219 = arith.constant dense<0.000000e+00> : vector<16x128xf32>
    %416 = tpu.matmul %414, %415, %cst_219 {dimension_numbers = #tpu.dot_dimension_numbers<[1], [0], [0], [1], [0, 0, 1, 1], [], []>} : vector<16x128xbf16>, vector<128x128xbf16>, vector<16x128xf32> -> vector<16x128xf32>
    %c0_220 = arith.constant 0 : index
    %c0_221 = arith.constant 0 : index
    %417 = vector.load %arg18[%c0_220, %c0_221] : memref<1x128xf32, #tpu.memory_space<vmem>>, vector<1x128xf32>
    %418 = vector.broadcast %417 : vector<1x128xf32> to vector<16x128xf32>
    %419 = arith.addf %416, %418 : vector<16x128xf32>
    %c0_222 = arith.constant 0 : index
    %c0_223 = arith.constant 0 : index
    %420 = vector.load %arg19[%c0_222, %c0_223] : memref<16x128xf32, #tpu.memory_space<vmem>>, vector<16x128xf32>
    tpu.vector_store %arg19[%c0_222, %c0_223], %419 {strides = array<i32>} : memref<16x128xf32, #tpu.memory_space<vmem>>, vector<16x128xf32>,
    return
  }
}

</mosaic_0001>

<llo_original>
// kernel: tpu_custom_call.1
$region0: #{tpu_custom_call.1}
  #allocation0 [shape = 'u32[]', space=smem, size = 0x4, offset = 0x4, fixed_abs, tag = 'smem constant byte address 0x4 - core index']
  #allocation1 [shape = 'u32[144,128]{1,0:T(1,128)}', space=vmem, size = 0x12000, scoped, tag = 'internal scratch']
  %s0 = inlined_call_operand.vmem [shape: bf16[16,8], index: 0, kind: input, shape index: {}]
  %s1 = inlined_call_operand.hbm [shape: bf16[16,16], index: 1, kind: input, shape index: {}]
  %s2 = inlined_call_operand.hbm [shape: bf16[16,16], index: 2, kind: input, shape index: {}]
  %s3 = inlined_call_operand.vmem [shape: f32[16,1], index: 3, kind: input, shape index: {}]
  %s4 = inlined_call_operand.vmem [shape: f32[16,1], index: 4, kind: input, shape index: {}]
  %s5 = inlined_call_operand.vmem [shape: bf16[128,128], index: 5, kind: input, shape index: {}]
  %s6 = inlined_call_operand.hbm [shape: f32[1,128], index: 6, kind: input, shape index: {}]
  %s7 = inlined_call_operand.hbm [shape: bf16[3,128,128], index: 7, kind: input, shape index: {}]
  %s8 = inlined_call_operand.vmem [shape: bf16[3,8,128], index: 8, kind: input, shape index: {}]
  %s9 = inlined_call_operand.hbm [shape: f32[4,1,128], index: 9, kind: input, shape index: {}]
  %s10 = inlined_call_operand.hbm [shape: bf16[3,128,128], index: 10, kind: input, shape index: {}]
  %s11 = inlined_call_operand.hbm [shape: bf16[128,128], index: 11, kind: input, shape index: {}]
  %s12 = inlined_call_operand.vmem [shape: f32[1,128], index: 12, kind: input, shape index: {}]
  %s13 = inlined_call_operand.hbm [shape: bf16[3,128,128], index: 13, kind: input, shape index: {}]
  %s14 = inlined_call_operand.vmem [shape: bf16[3,8,128], index: 14, kind: input, shape index: {}]
  %s15 = inlined_call_operand.vmem [shape: f32[4,1,128], index: 15, kind: input, shape index: {}]
  %s16 = inlined_call_operand.hbm [shape: bf16[3,128,128], index: 16, kind: input, shape index: {}]
  %s17 = inlined_call_operand.hbm [shape: bf16[128,128], index: 17, kind: input, shape index: {}]
  %s18 = inlined_call_operand.vmem [shape: f32[1,128], index: 18, kind: input, shape index: {}]
  %s19 = inlined_call_operand.hbm [shape: f32[16,128], index: 19, kind: output, shape index: {}]
  %s20 = sld [smem:[#allocation0]]
  $region126: #{tpu_custom_call.1} parent=0
    _
  %s22 = ssub.s32 1, %s20
  %s23 = scalar_select 0, %s22, %s20
  $region1: #{tpu_custom_call.1} parent=0
    #allocation2 [shape = 'u8[4096]{0}', space=vmem, size = 0x1000, scoped, tag = 'input window, operand 1, single buffered']
    #allocation3 [shape = 's32[1]{0}', space=sflag, size = 0x4, scoped, tag = 'scoped memory for tpu_custom_call.1']
    #allocation4 [shape = 's32[1]{0}', space=sflag, size = 0x4, scoped, tag = 'scoped memory for tpu_custom_call.1']
    #allocation5 [shape = 'u8[4096]{0}', space=vmem, size = 0x1000, scoped, tag = 'input window, operand 2, single buffered']
    #allocation6 [shape = 's32[1]{0}', space=sflag, size = 0x4, scoped, tag = 'scoped memory for tpu_custom_call.1']
    #allocation7 [shape = 'u8[512]{0}', space=vmem, size = 0x400, scoped, tag = 'input window, operand 6, single buffered']
    #allocation8 [shape = 'u8[98304]{0}', space=vmem, size = 0x18000, scoped, tag = 'input window, operand 7, single buffered']
    #allocation9 [shape = 's32[1]{0}', space=sflag, size = 0x4, scoped, tag = 'scoped memory for tpu_custom_call.1']
    #allocation10 [shape = 'u8[2048]{0}', space=vmem, size = 0x800, scoped, tag = 'input window, operand 9, single buffered']
    #allocation11 [shape = 'u8[98304]{0}', space=vmem, size = 0x18000, scoped, tag = 'input window, operand 10, single buffered']
    #allocation12 [shape = 's32[1]{0}', space=sflag, size = 0x4, scoped, tag = 'scoped memory for tpu_custom_call.1']
    #allocation13 [shape = 'u8[32768]{0}', space=vmem, size = 0x8000, scoped, tag = 'input window, operand 11, single buffered']
    #allocation14 [shape = 'u8[98304]{0}', space=vmem, size = 0x18000, scoped, tag = 'input window, operand 13, single buffered']
    #allocation15 [shape = 's32[1]{0}', space=sflag, size = 0x4, scoped, tag = 'scoped memory for tpu_custom_call.1']
    #allocation16 [shape = 'u8[98304]{0}', space=vmem, size = 0x18000, scoped, tag = 'input window, operand 16, single buffered']
    #allocation17 [shape = 'u8[32768]{0}', space=vmem, size = 0x8000, scoped, tag = 'input window, operand 17, single buffered']
    #allocation18 [shape = 's32[1]{0}', space=sflag, size = 0x4, scoped, tag = 'scoped memory for tpu_custom_call.1']
    #allocation19 [shape = 'u8[8192]{0}', space=vmem, size = 0x2000, scoped, tag = 'output window, operand 0, single buffered']
    %24 = vsyncpa [#allocation3], 0
    %25 = vsyncpa [#allocation6], 0
    %26 = vsyncpa [#allocation9], 0
    %27 = vsyncpa [#allocation12], 0
    %28 = vsyncpa [#allocation15], 0
    %29 = vsyncpa [#allocation18], 0
    %30 = vsyncpa [#allocation4], 0
    // Predicated region
    $region2: #{tpu_custom_call.1} parent=1 // pred_check
      _
    $region3: #{tpu_custom_call.1} parent=1 // pred_check_branch
      %32 = sbr.rel (0) target = $region5
    $region4: #{tpu_custom_call.1} parent=1 // pred_region
      _
    $region5: #{tpu_custom_call.1} parent=1 // pred_fallthru
      _
    // Predicated region
    $region6: #{tpu_custom_call.1} parent=1 // pred_check
      _
    $region7: #{tpu_custom_call.1} parent=1 // pred_check_branch
      %34 = sbr.rel (0) target = $region9
    $region8: #{tpu_custom_call.1} parent=1 // pred_region
      %s36 = ssub.s32 128, 128
      %37 = vsyncadd [#allocation3], %s36
      %s38 = sshll.u32 [#allocation2], 4
      %s39 = int_to_ptr.vmem [resolvable:$true] %s38
      %44 = dma.hbm_to_vmem [thread:$0]  %s1, 128, %s39, [#allocation3], 64, 64, 4
    $region9: #{tpu_custom_call.1} parent=1 // pred_fallthru
      _
    // Predicated region
    $region10: #{tpu_custom_call.1} parent=1 // pred_check
      _
    $region11: #{tpu_custom_call.1} parent=1 // pred_check_branch
      %46 = sbr.rel (0) target = $region13
    $region12: #{tpu_custom_call.1} parent=1 // pred_region
      %s48 = ssub.s32 128, 128
      %49 = vsyncadd [#allocation6], %s48
      %s50 = sshll.u32 [#allocation5], 4
      %s51 = int_to_ptr.vmem [resolvable:$true] %s50
      %56 = dma.hbm_to_vmem [thread:$0]  %s2, 128, %s51, [#allocation6], 64, 64, 4
    $region13: #{tpu_custom_call.1} parent=1 // pred_fallthru
      _
    // Predicated region
    $region14: #{tpu_custom_call.1} parent=1 // pred_check
      _
    $region15: #{tpu_custom_call.1} parent=1 // pred_check_branch
      %58 = sbr.rel (0) target = $region17
    $region16: #{tpu_custom_call.1} parent=1 // pred_region
      _
    $region17: #{tpu_custom_call.1} parent=1 // pred_fallthru
      _
    // Predicated region
    $region18: #{tpu_custom_call.1} parent=1 // pred_check
      _
    $region19: #{tpu_custom_call.1} parent=1 // pred_check_branch
      %60 = sbr.rel (0) target = $region21
    $region20: #{tpu_custom_call.1} parent=1 // pred_region
      _
    $region21: #{tpu_custom_call.1} parent=1 // pred_fallthru
      _
    // Predicated region
    $region22: #{tpu_custom_call.1} parent=1 // pred_check
      _
    $region23: #{tpu_custom_call.1} parent=1 // pred_check_branch
      %62 = sbr.rel (0) target = $region25
    $region24: #{tpu_custom_call.1} parent=1 // pred_region
      _
    $region25: #{tpu_custom_call.1} parent=1 // pred_fallthru
      _
    // Predicated region
    $region26: #{tpu_custom_call.1} parent=1 // pred_check
      _
    $region27: #{tpu_custom_call.1} parent=1 // pred_check_branch
      %64 = sbr.rel (0) target = $region29
    $region28: #{tpu_custom_call.1} parent=1 // pred_region
      %s66 = ssub.s32 16, 16
      %67 = vsyncadd [#allocation6], %s66
      %s69 = sshll.u32 [#allocation7], 4
      %s70 = int_to_ptr.vmem [resolvable:$true] %s69
      %72 = dma.hbm_to_vmem [thread:$0]  %s6, 16, %s70, [#allocation6]
    $region29: #{tpu_custom_call.1} parent=1 // pred_fallthru
      _
    // Predicated region
    $region30: #{tpu_custom_call.1} parent=1 // pred_check
      _
    $region31: #{tpu_custom_call.1} parent=1 // pred_check_branch
      %74 = sbr.rel (0) target = $region33
    $region32: #{tpu_custom_call.1} parent=1 // pred_region
      %s76 = ssub.s32 3072, 3072
      %77 = vsyncadd [#allocation9], %s76
      %s78 = sshll.u32 [#allocation8], 4
      %s79 = int_to_ptr.vmem [resolvable:$true] %s78
      %84 = dma.hbm_to_vmem [thread:$0]  %s7, 3072, %s79, [#allocation9], 64, 64, 4
    $region33: #{tpu_custom_call.1} parent=1 // pred_fallthru
      _
    // Predicated region
    $region34: #{tpu_custom_call.1} parent=1 // pred_check
      _
    $region35: #{tpu_custom_call.1} parent=1 // pred_check_branch
      %86 = sbr.rel (0) target = $region37
    $region36: #{tpu_custom_call.1} parent=1 // pred_region
      _
    $region37: #{tpu_custom_call.1} parent=1 // pred_fallthru
      _
    // Predicated region
    $region38: #{tpu_custom_call.1} parent=1 // pred_check
      _
    $region39: #{tpu_custom_call.1} parent=1 // pred_check_branch
      %88 = sbr.rel (0) target = $region41
    $region40: #{tpu_custom_call.1} parent=1 // pred_region
      %s90 = ssub.s32 64, 64
      %91 = vsyncadd [#allocation9], %s90
      %s92 = sshll.u32 [#allocation10], 4
      %s93 = int_to_ptr.vmem [resolvable:$true] %s92
      %98 = dma.hbm_to_vmem [thread:$0]  %s9, 64, %s93, [#allocation9], 16, 16, 1
    $region41: #{tpu_custom_call.1} parent=1 // pred_fallthru
      _
    // Predicated region
    $region42: #{tpu_custom_call.1} parent=1 // pred_check
      _
    $region43: #{tpu_custom_call.1} parent=1 // pred_check_branch
      %100 = sbr.rel (0) target = $region45
    $region44: #{tpu_custom_call.1} parent=1 // pred_region
      %s102 = ssub.s32 3072, 3072
      %103 = vsyncadd [#allocation12], %s102
      %s104 = sshll.u32 [#allocation11], 4
      %s105 = int_to_ptr.vmem [resolvable:$true] %s104
      %110 = dma.hbm_to_vmem [thread:$0]  %s10, 3072, %s105, [#allocation12], 64, 64, 4
    $region45: #{tpu_custom_call.1} parent=1 // pred_fallthru
      _
    // Predicated region
    $region46: #{tpu_custom_call.1} parent=1 // pred_check
      _
    $region47: #{tpu_custom_call.1} parent=1 // pred_check_branch
      %112 = sbr.rel (0) target = $region49
    $region48: #{tpu_custom_call.1} parent=1 // pred_region
      %s114 = ssub.s32 1024, 1024
      %115 = vsyncadd [#allocation12], %s114
      %s116 = sshll.u32 [#allocation13], 4
      %s117 = int_to_ptr.vmem [resolvable:$true] %s116
      %122 = dma.hbm_to_vmem [thread:$0]  %s11, 1024, %s117, [#allocation12], 64, 64, 4
    $region49: #{tpu_custom_call.1} parent=1 // pred_fallthru
      _
    // Predicated region
    $region50: #{tpu_custom_call.1} parent=1 // pred_check
      _
    $region51: #{tpu_custom_call.1} parent=1 // pred_check_branch
      %124 = sbr.rel (0) target = $region53
    $region52: #{tpu_custom_call.1} parent=1 // pred_region
      _
    $region53: #{tpu_custom_call.1} parent=1 // pred_fallthru
      _
    // Predicated region
    $region54: #{tpu_custom_call.1} parent=1 // pred_check
      _
    $region55: #{tpu_custom_call.1} parent=1 // pred_check_branch
      %126 = sbr.rel (0) target = $region57
    $region56: #{tpu_custom_call.1} parent=1 // pred_region
      %s128 = ssub.s32 3072, 3072
      %129 = vsyncadd [#allocation15], %s128
      %s130 = sshll.u32 [#allocation14], 4
      %s131 = int_to_ptr.vmem [resolvable:$true] %s130
      %136 = dma.hbm_to_vmem [thread:$0]  %s13, 3072, %s131, [#allocation15], 64, 64, 4
    $region57: #{tpu_custom_call.1} parent=1 // pred_fallthru
      _
    // Predicated region
    $region58: #{tpu_custom_call.1} parent=1 // pred_check
      _
    $region59: #{tpu_custom_call.1} parent=1 // pred_check_branch
      %138 = sbr.rel (0) target = $region61
    $region60: #{tpu_custom_call.1} parent=1 // pred_region
      _
    $region61: #{tpu_custom_call.1} parent=1 // pred_fallthru
      _
    // Predicated region
    $region62: #{tpu_custom_call.1} parent=1 // pred_check
      _
    $region63: #{tpu_custom_call.1} parent=1 // pred_check_branch
      %140 = sbr.rel (0) target = $region65
    $region64: #{tpu_custom_call.1} parent=1 // pred_region
      _
    $region65: #{tpu_custom_call.1} parent=1 // pred_fallthru
      _
    // Predicated region
    $region66: #{tpu_custom_call.1} parent=1 // pred_check
      _
    $region67: #{tpu_custom_call.1} parent=1 // pred_check_branch
      %142 = sbr.rel (0) target = $region69
    $region68: #{tpu_custom_call.1} parent=1 // pred_region
      %s144 = ssub.s32 3072, 3072
      %145 = vsyncadd [#allocation15], %s144
      %s146 = sshll.u32 [#allocation16], 4
      %s147 = int_to_ptr.vmem [resolvable:$true] %s146
      %152 = dma.hbm_to_vmem [thread:$0]  %s16, 3072, %s147, [#allocation15], 64, 64, 4
    $region69: #{tpu_custom_call.1} parent=1 // pred_fallthru
      _
    // Predicated region
    $region70: #{tpu_custom_call.1} parent=1 // pred_check
      _
    $region71: #{tpu_custom_call.1} parent=1 // pred_check_branch
      %154 = sbr.rel (0) target = $region73
    $region72: #{tpu_custom_call.1} parent=1 // pred_region
      %s156 = ssub.s32 1024, 1024
      %157 = vsyncadd [#allocation18], %s156
      %s158 = sshll.u32 [#allocation17], 4
      %s159 = int_to_ptr.vmem [resolvable:$true] %s158
      %164 = dma.hbm_to_vmem [thread:$0]  %s17, 1024, %s159, [#allocation18], 64, 64, 4
    $region73: #{tpu_custom_call.1} parent=1 // pred_fallthru
      _
    // Predicated region
    $region74: #{tpu_custom_call.1} parent=1 // pred_check
      _
    $region75: #{tpu_custom_call.1} parent=1 // pred_check_branch
      %166 = sbr.rel (0) target = $region77
    $region76: #{tpu_custom_call.1} parent=1 // pred_region
      _
    $region77: #{tpu_custom_call.1} parent=1 // pred_fallthru
      _
    // Predicated region
    $region78: #{tpu_custom_call.1} parent=1 // pred_check
      _
    $region79: #{tpu_custom_call.1} parent=1 // pred_check_branch
      %168 = sbr.rel (0) target = $region81
    $region80: #{tpu_custom_call.1} parent=1 // pred_region
      %169 = dma.done [#allocation3], 128
    $region81: #{tpu_custom_call.1} parent=1 // pred_fallthru
      _
    // Predicated region
    $region82: #{tpu_custom_call.1} parent=1 // pred_check
      _
    $region83: #{tpu_custom_call.1} parent=1 // pred_check_branch
      %171 = sbr.rel (0) target = $region85
    $region84: #{tpu_custom_call.1} parent=1 // pred_region
      %172 = dma.done [#allocation6], 128
    $region85: #{tpu_custom_call.1} parent=1 // pred_fallthru
      _
    // Predicated region
    $region86: #{tpu_custom_call.1} parent=1 // pred_check
      _
    $region87: #{tpu_custom_call.1} parent=1 // pred_check_branch
      %174 = sbr.rel (0) target = $region89
    $region88: #{tpu_custom_call.1} parent=1 // pred_region
      %175 = dma.done [#allocation6], 16
    $region89: #{tpu_custom_call.1} parent=1 // pred_fallthru
      _
    // Predicated region
    $region90: #{tpu_custom_call.1} parent=1 // pred_check
      _
    $region91: #{tpu_custom_call.1} parent=1 // pred_check_branch
      %177 = sbr.rel (0) target = $region93
    $region92: #{tpu_custom_call.1} parent=1 // pred_region
      %178 = dma.done [#allocation9], 3072
    $region93: #{tpu_custom_call.1} parent=1 // pred_fallthru
      _
    // Predicated region
    $region94: #{tpu_custom_call.1} parent=1 // pred_check
      _
    $region95: #{tpu_custom_call.1} parent=1 // pred_check_branch
      %180 = sbr.rel (0) target = $region97
    $region96: #{tpu_custom_call.1} parent=1 // pred_region
      %181 = dma.done [#allocation9], 64
    $region97: #{tpu_custom_call.1} parent=1 // pred_fallthru
      _
    // Predicated region
    $region98: #{tpu_custom_call.1} parent=1 // pred_check
      _
    $region99: #{tpu_custom_call.1} parent=1 // pred_check_branch
      %183 = sbr.rel (0) target = $region101
    $region100: #{tpu_custom_call.1} parent=1 // pred_region
      %184 = dma.done [#allocation12], 3072
    $region101: #{tpu_custom_call.1} parent=1 // pred_fallthru
      _
    // Predicated region
    $region102: #{tpu_custom_call.1} parent=1 // pred_check
      _
    $region103: #{tpu_custom_call.1} parent=1 // pred_check_branch
      %186 = sbr.rel (0) target = $region105
    $region104: #{tpu_custom_call.1} parent=1 // pred_region
      %187 = dma.done [#allocation12], 1024
    $region105: #{tpu_custom_call.1} parent=1 // pred_fallthru
      _
    // Predicated region
    $region106: #{tpu_custom_call.1} parent=1 // pred_check
      _
    $region107: #{tpu_custom_call.1} parent=1 // pred_check_branch
      %189 = sbr.rel (0) target = $region109
    $region108: #{tpu_custom_call.1} parent=1 // pred_region
      %190 = dma.done [#allocation15], 3072
    $region109: #{tpu_custom_call.1} parent=1 // pred_fallthru
      _
    // Predicated region
    $region110: #{tpu_custom_call.1} parent=1 // pred_check
      _
    $region111: #{tpu_custom_call.1} parent=1 // pred_check_branch
      %192 = sbr.rel (0) target = $region113
    $region112: #{tpu_custom_call.1} parent=1 // pred_region
      %193 = dma.done [#allocation15], 3072
    $region113: #{tpu_custom_call.1} parent=1 // pred_fallthru
      _
    // Predicated region
    $region114: #{tpu_custom_call.1} parent=1 // pred_check
      _
    $region115: #{tpu_custom_call.1} parent=1 // pred_check_branch
      %195 = sbr.rel (0) target = $region117
    $region116: #{tpu_custom_call.1} parent=1 // pred_region
      %196 = dma.done [#allocation18], 1024
    $region117: #{tpu_custom_call.1} parent=1 // pred_fallthru
      _
    %v198 = vld [vmem:[%s0] sm:$0xf]
    %v199 = vld [vmem:[%s0 + $0x4] sm:$0xf]
    %v200 = vld [vmem:[#allocation2] sm:$0xf]
    %v201 = vld [vmem:[#allocation2 + $0x4] sm:$0xf]
    %v202 = vld [vmem:[#allocation5] sm:$0xf]
    %v203 = vld [vmem:[#allocation5 + $0x4] sm:$0xf]
    %v204 = vld [vmem:[%s3] sm:$0xff]
    %v205 = vld [vmem:[%s3 + $0x8] sm:$0xff]
    %v206 = vld [vmem:[#allocation7] sm:$0x1]
    %208 = vset.pattern.permute.xlu0 0
    %209 = vperm.xlu0 %208, %v204
    %v210 = vpop.permute.xlu0 %209
    %213 = vset.pattern.permute.xlu0 0
    %214 = vperm.xlu0 %213, %v205
    %v215 = vpop.permute.xlu0 %214
    %v218 = vlaneseq
    %v219 = vshrl.u32 %v218, 7
    %v220 = vsub.s32 0, %v219
    %v221 = vrot.slane %v206, %v220
    %v223 = vmul.f32 %v210, %v221
    %v224 = vmul.f32 %v215, %v221
    %v225 = vld [vmem:[%s8] sm:$0xf]
    %v226 = vld [vmem:[#allocation10] sm:$0x1]
    %v228 = vlaneseq
    %v229 = vshrl.u32 %v228, 7
    %v230 = vsub.s32 0, %v229
    %v231 = vrot.slane %v226, %v230
    %v235 = vunpack.c.l.b16 %v198
    %v236 = vunpack.c.l.b16 %v199
    %v237 = vpack.c.b16 %v236, %v235
    %vm238 = vcmask 64512
    %v240 = vsel %vm238, %v237, 0
    %vm242 = vcmask 1043456
    %v244 = vsel %vm242, %v225, 0
    %246 = vmatprep.subr.bf16.mxu0 0
    %247 = vmatpush1.bf16.msra.mxu0 %v244
    %248 = vmatprep.subr.bf16.mxu0 0
    %249 = vmatpush1.bf16.msra.mxu0 0
    %250 = vmatprep.subr.bf16.mxu0 0
    %251 = vmatpush1.bf16.msra.mxu0 0
    %252 = vmatprep.subr.bf16.mxu0 0
    %253 = vmatpush1.bf16.msra.mxu0 0
    %254 = vmatprep.subr.bf16.mxu0 0
    %255 = vmatpush1.bf16.msra.mxu0 0
    %256 = vmatprep.subr.bf16.mxu0 0
    %257 = vmatpush1.bf16.msra.mxu0 0
    %258 = vmatprep.subr.bf16.mxu0 0
    %259 = vmatpush1.bf16.msra.mxu0 0
    %260 = vmatprep.subr.bf16.mxu0 0
    %261 = vmatpush1.bf16.msra.mxu0 0
    %262 = vmatprep.subr.bf16.mxu0 0
    %263 = vmatpush1.bf16.msra.mxu0 0
    %264 = vmatprep.subr.bf16.mxu0 0
    %265 = vmatpush1.bf16.msra.mxu0 0
    %266 = vmatprep.subr.bf16.mxu0 0
    %267 = vmatpush1.bf16.msra.mxu0 0
    %268 = vmatprep.subr.bf16.mxu0 0
    %269 = vmatpush1.bf16.msra.mxu0 0
    %270 = vmatprep.subr.bf16.mxu0 0
    %271 = vmatpush1.bf16.msra.mxu0 0
    %272 = vmatprep.subr.bf16.mxu0 0
    %273 = vmatpush1.bf16.msra.mxu0 0
    %274 = vmatprep.subr.bf16.mxu0 0
    %275 = vmatpush1.bf16.msra.mxu0 0
    %276 = vmatprep.subr.bf16.mxu0 0
    %277 = vmatpush1.bf16.msra.mxu0 0
    %278 = vmatprep.mubr.bf16.mxu0 0
    %279 = vmatmul.mubr.bf16.gmra.mrb[0].mxu0 %v240
    %v280 = vpop.f32.mrb[0].mxu0
    %v281 = vadd.f32 %v231, %v280
    %v282 = vpop.f32.mrb[0].mxu0
    %v283 = vpop.f32.mrb[0].mxu0
    %v284 = vadd.f32 %v231, %v283
    %v285 = vpop.f32.mrb[0].mxu0
    %286 = vdwg.mxu0
    %s287 = scalar_lea.vmem %s8, 4
    %v288 = vld [vmem:[%s287] sm:$0xf]
    %s289 = scalar_lea.vmem [#allocation10], 1
    %v290 = vld [vmem:[%s289] sm:$0x1]
    %v292 = vlaneseq
    %v293 = vshrl.u32 %v292, 7
    %v294 = vsub.s32 0, %v293
    %v295 = vrot.slane %v290, %v294
    %v298 = vsel %vm242, %v288, 0
    %300 = vmatprep.subr.bf16.mxu0 0
    %301 = vmatpush1.bf16.msra.mxu0 %v298
    %302 = vmatprep.subr.bf16.mxu0 0
    %303 = vmatpush1.bf16.msra.mxu0 0
    %304 = vmatprep.subr.bf16.mxu0 0
    %305 = vmatpush1.bf16.msra.mxu0 0
    %306 = vmatprep.subr.bf16.mxu0 0
    %307 = vmatpush1.bf16.msra.mxu0 0
    %308 = vmatprep.subr.bf16.mxu0 0
    %309 = vmatpush1.bf16.msra.mxu0 0
    %310 = vmatprep.subr.bf16.mxu0 0
    %311 = vmatpush1.bf16.msra.mxu0 0
    %312 = vmatprep.subr.bf16.mxu0 0
    %313 = vmatpush1.bf16.msra.mxu0 0
    %314 = vmatprep.subr.bf16.mxu0 0
    %315 = vmatpush1.bf16.msra.mxu0 0
    %316 = vmatprep.subr.bf16.mxu0 0
    %317 = vmatpush1.bf16.msra.mxu0 0
    %318 = vmatprep.subr.bf16.mxu0 0
    %319 = vmatpush1.bf16.msra.mxu0 0
    %320 = vmatprep.subr.bf16.mxu0 0
    %321 = vmatpush1.bf16.msra.mxu0 0
    %322 = vmatprep.subr.bf16.mxu0 0
    %323 = vmatpush1.bf16.msra.mxu0 0
    %324 = vmatprep.subr.bf16.mxu0 0
    %325 = vmatpush1.bf16.msra.mxu0 0
    %326 = vmatprep.subr.bf16.mxu0 0
    %327 = vmatpush1.bf16.msra.mxu0 0
    %328 = vmatprep.subr.bf16.mxu0 0
    %329 = vmatpush1.bf16.msra.mxu0 0
    %330 = vmatprep.subr.bf16.mxu0 0
    %331 = vmatpush1.bf16.msra.mxu0 0
    %332 = vmatprep.mubr.bf16.mxu0 0
    %333 = vmatmul.mubr.bf16.gmra.mrb[0].mxu0 %v240
    %v334 = vpop.f32.mrb[0].mxu0
    %v335 = vadd.f32 %v295, %v334
    %v336 = vpop.f32.mrb[0].mxu0
    %v337 = vpop.f32.mrb[0].mxu0
    %v338 = vadd.f32 %v295, %v337
    %v339 = vpop.f32.mrb[0].mxu0
    %340 = vdwg.mxu0
    %s341 = scalar_lea.vmem %s8, 8
    %v342 = vld [vmem:[%s341] sm:$0xf]
    %s343 = scalar_lea.vmem [#allocation10], 2
    %v344 = vld [vmem:[%s343] sm:$0x1]
    %v346 = vlaneseq
    %v347 = vshrl.u32 %v346, 7
    %v348 = vsub.s32 0, %v347
    %v349 = vrot.slane %v344, %v348
    %v352 = vsel %vm242, %v342, 0
    %354 = vmatprep.subr.bf16.mxu0 0
    %355 = vmatpush1.bf16.msra.mxu0 %v352
    %356 = vmatprep.subr.bf16.mxu0 0
    %357 = vmatpush1.bf16.msra.mxu0 0
    %358 = vmatprep.subr.bf16.mxu0 0
    %359 = vmatpush1.bf16.msra.mxu0 0
    %360 = vmatprep.subr.bf16.mxu0 0
    %361 = vmatpush1.bf16.msra.mxu0 0
    %362 = vmatprep.subr.bf16.mxu0 0
    %363 = vmatpush1.bf16.msra.mxu0 0
    %364 = vmatprep.subr.bf16.mxu0 0
    %365 = vmatpush1.bf16.msra.mxu0 0
    %366 = vmatprep.subr.bf16.mxu0 0
    %367 = vmatpush1.bf16.msra.mxu0 0
    %368 = vmatprep.subr.bf16.mxu0 0
    %369 = vmatpush1.bf16.msra.mxu0 0
    %370 = vmatprep.subr.bf16.mxu0 0
    %371 = vmatpush1.bf16.msra.mxu0 0
    %372 = vmatprep.subr.bf16.mxu0 0
    %373 = vmatpush1.bf16.msra.mxu0 0
    %374 = vmatprep.subr.bf16.mxu0 0
    %375 = vmatpush1.bf16.msra.mxu0 0
    %376 = vmatprep.subr.bf16.mxu0 0
    %377 = vmatpush1.bf16.msra.mxu0 0
    %378 = vmatprep.subr.bf16.mxu0 0
    %379 = vmatpush1.bf16.msra.mxu0 0
    %380 = vmatprep.subr.bf16.mxu0 0
    %381 = vmatpush1.bf16.msra.mxu0 0
    %382 = vmatprep.subr.bf16.mxu0 0
    %383 = vmatpush1.bf16.msra.mxu0 0
    %384 = vmatprep.subr.bf16.mxu0 0
    %385 = vmatpush1.bf16.msra.mxu0 0
    %386 = vmatprep.mubr.bf16.mxu0 0
    %387 = vmatmul.mubr.bf16.gmra.mrb[0].mxu0 %v240
    %v388 = vpop.f32.mrb[0].mxu0
    %v389 = vadd.f32 %v349, %v388
    %v390 = vpop.f32.mrb[0].mxu0
    %v391 = vpop.f32.mrb[0].mxu0
    %v392 = vadd.f32 %v349, %v391
    %v393 = vpop.f32.mrb[0].mxu0
    %394 = vdwg.mxu0
    %s395 = scalar_lea.vmem [#allocation10], 3
    %v396 = vld [vmem:[%s395] sm:$0x1]
    %v398 = vlaneseq
    %v399 = vshrl.u32 %v398, 7
    %v400 = vsub.s32 0, %v399
    %v401 = vrot.slane %v396, %v400
    %v403 = vld [vmem:[#allocation8] sm:$0xf]
    %v404 = vld [vmem:[#allocation8 + $0x4] sm:$0xf]
    %v405 = vld [vmem:[#allocation8 + $0x8] sm:$0xf]
    %v406 = vld [vmem:[#allocation8 + $0xc] sm:$0xf]
    %v407 = vld [vmem:[#allocation8 + $0x10] sm:$0xf]
    %v408 = vld [vmem:[#allocation8 + $0x14] sm:$0xf]
    %v409 = vld [vmem:[#allocation8 + $0x18] sm:$0xf]
    %v410 = vld [vmem:[#allocation8 + $0x1c] sm:$0xf]
    %v411 = vld [vmem:[#allocation8 + $0x20] sm:$0xf]
    %v412 = vld [vmem:[#allocation8 + $0x24] sm:$0xf]
    %v413 = vld [vmem:[#allocation8 + $0x28] sm:$0xf]
    %v414 = vld [vmem:[#allocation8 + $0x2c] sm:$0xf]
    %v415 = vld [vmem:[#allocation8 + $0x30] sm:$0xf]
    %v416 = vld [vmem:[#allocation8 + $0x34] sm:$0xf]
    %v417 = vld [vmem:[#allocation8 + $0x38] sm:$0xf]
    %v418 = vld [vmem:[#allocation8 + $0x3c] sm:$0xf]
    %s419 = scalar_lea.vmem [#allocation8], 64
    %v420 = vld [vmem:[%s419] sm:$0xf]
    %v421 = vld [vmem:[%s419 + $0x4] sm:$0xf]
    %v422 = vld [vmem:[%s419 + $0x8] sm:$0xf]
    %v423 = vld [vmem:[%s419 + $0xc] sm:$0xf]
    %v424 = vld [vmem:[%s419 + $0x10] sm:$0xf]
    %v425 = vld [vmem:[%s419 + $0x14] sm:$0xf]
    %v426 = vld [vmem:[%s419 + $0x18] sm:$0xf]
    %v427 = vld [vmem:[%s419 + $0x1c] sm:$0xf]
    %v428 = vld [vmem:[%s419 + $0x20] sm:$0xf]
    %v429 = vld [vmem:[%s419 + $0x24] sm:$0xf]
    %v430 = vld [vmem:[%s419 + $0x28] sm:$0xf]
    %v431 = vld [vmem:[%s419 + $0x2c] sm:$0xf]
    %v432 = vld [vmem:[%s419 + $0x30] sm:$0xf]
    %v433 = vld [vmem:[%s419 + $0x34] sm:$0xf]
    %v434 = vld [vmem:[%s419 + $0x38] sm:$0xf]
    %v435 = vld [vmem:[%s419 + $0x3c] sm:$0xf]
    %s436 = scalar_lea.vmem [#allocation8], 128
    %v437 = vld [vmem:[%s436] sm:$0xf]
    %v438 = vld [vmem:[%s436 + $0x4] sm:$0xf]
    %v439 = vld [vmem:[%s436 + $0x8] sm:$0xf]
    %v440 = vld [vmem:[%s436 + $0xc] sm:$0xf]
    %v441 = vld [vmem:[%s436 + $0x10] sm:$0xf]
    %v442 = vld [vmem:[%s436 + $0x14] sm:$0xf]
    %v443 = vld [vmem:[%s436 + $0x18] sm:$0xf]
    %v444 = vld [vmem:[%s436 + $0x1c] sm:$0xf]
    %v445 = vld [vmem:[%s436 + $0x20] sm:$0xf]
    %v446 = vld [vmem:[%s436 + $0x24] sm:$0xf]
    %v447 = vld [vmem:[%s436 + $0x28] sm:$0xf]
    %v448 = vld [vmem:[%s436 + $0x2c] sm:$0xf]
    %v449 = vld [vmem:[%s436 + $0x30] sm:$0xf]
    %v450 = vld [vmem:[%s436 + $0x34] sm:$0xf]
    %v451 = vld [vmem:[%s436 + $0x38] sm:$0xf]
    %v452 = vld [vmem:[%s436 + $0x3c] sm:$0xf]
    %v453 = vld [vmem:[#allocation11] sm:$0xf]
    %v454 = vld [vmem:[#allocation11 + $0x4] sm:$0xf]
    %v455 = vld [vmem:[#allocation11 + $0x8] sm:$0xf]
    %v456 = vld [vmem:[#allocation11 + $0xc] sm:$0xf]
    %v457 = vld [vmem:[#allocation11 + $0x10] sm:$0xf]
    %v458 = vld [vmem:[#allocation11 + $0x14] sm:$0xf]
    %v459 = vld [vmem:[#allocation11 + $0x18] sm:$0xf]
    %v460 = vld [vmem:[#allocation11 + $0x1c] sm:$0xf]
    %v461 = vld [vmem:[#allocation11 + $0x20] sm:$0xf]
    %v462 = vld [vmem:[#allocation11 + $0x24] sm:$0xf]
    %v463 = vld [vmem:[#allocation11 + $0x28] sm:$0xf]
    %v464 = vld [vmem:[#allocation11 + $0x2c] sm:$0xf]
    %v465 = vld [vmem:[#allocation11 + $0x30] sm:$0xf]
    %v466 = vld [vmem:[#allocation11 + $0x34] sm:$0xf]
    %v467 = vld [vmem:[#allocation11 + $0x38] sm:$0xf]
    %v468 = vld [vmem:[#allocation11 + $0x3c] sm:$0xf]
    %s469 = scalar_lea.vmem [#allocation11], 64
    %v470 = vld [vmem:[%s469] sm:$0xf]
    %v471 = vld [vmem:[%s469 + $0x4] sm:$0xf]
    %v472 = vld [vmem:[%s469 + $0x8] sm:$0xf]
    %v473 = vld [vmem:[%s469 + $0xc] sm:$0xf]
    %v474 = vld [vmem:[%s469 + $0x10] sm:$0xf]
    %v475 = vld [vmem:[%s469 + $0x14] sm:$0xf]
    %v476 = vld [vmem:[%s469 + $0x18] sm:$0xf]
    %v477 = vld [vmem:[%s469 + $0x1c] sm:$0xf]
    %v478 = vld [vmem:[%s469 + $0x20] sm:$0xf]
    %v479 = vld [vmem:[%s469 + $0x24] sm:$0xf]
    %v480 = vld [vmem:[%s469 + $0x28] sm:$0xf]
    %v481 = vld [vmem:[%s469 + $0x2c] sm:$0xf]
    %v482 = vld [vmem:[%s469 + $0x30] sm:$0xf]
    %v483 = vld [vmem:[%s469 + $0x34] sm:$0xf]
    %v484 = vld [vmem:[%s469 + $0x38] sm:$0xf]
    %v485 = vld [vmem:[%s469 + $0x3c] sm:$0xf]
    %s486 = scalar_lea.vmem [#allocation11], 128
    %v487 = vld [vmem:[%s486] sm:$0xf]
    %v488 = vld [vmem:[%s486 + $0x4] sm:$0xf]
    %v489 = vld [vmem:[%s486 + $0x8] sm:$0xf]
    %v490 = vld [vmem:[%s486 + $0xc] sm:$0xf]
    %v491 = vld [vmem:[%s486 + $0x10] sm:$0xf]
    %v492 = vld [vmem:[%s486 + $0x14] sm:$0xf]
    %v493 = vld [vmem:[%s486 + $0x18] sm:$0xf]
    %v494 = vld [vmem:[%s486 + $0x1c] sm:$0xf]
    %v495 = vld [vmem:[%s486 + $0x20] sm:$0xf]
    %v496 = vld [vmem:[%s486 + $0x24] sm:$0xf]
    %v497 = vld [vmem:[%s486 + $0x28] sm:$0xf]
    %v498 = vld [vmem:[%s486 + $0x2c] sm:$0xf]
    %v499 = vld [vmem:[%s486 + $0x30] sm:$0xf]
    %v500 = vld [vmem:[%s486 + $0x34] sm:$0xf]
    %v501 = vld [vmem:[%s486 + $0x38] sm:$0xf]
    %v502 = vld [vmem:[%s486 + $0x3c] sm:$0xf]
    %v503 = vld [vmem:[%s5] sm:$0xf]
    %v504 = vld [vmem:[%s5 + $0x4] sm:$0xf]
    %v505 = vld [vmem:[%s5 + $0x8] sm:$0xf]
    %v506 = vld [vmem:[%s5 + $0xc] sm:$0xf]
    %v507 = vld [vmem:[%s5 + $0x10] sm:$0xf]
    %v508 = vld [vmem:[%s5 + $0x14] sm:$0xf]
    %v509 = vld [vmem:[%s5 + $0x18] sm:$0xf]
    %v510 = vld [vmem:[%s5 + $0x1c] sm:$0xf]
    %v511 = vld [vmem:[%s5 + $0x20] sm:$0xf]
    %v512 = vld [vmem:[%s5 + $0x24] sm:$0xf]
    %v513 = vld [vmem:[%s5 + $0x28] sm:$0xf]
    %v514 = vld [vmem:[%s5 + $0x2c] sm:$0xf]
    %v515 = vld [vmem:[%s5 + $0x30] sm:$0xf]
    %v516 = vld [vmem:[%s5 + $0x34] sm:$0xf]
    %v517 = vld [vmem:[%s5 + $0x38] sm:$0xf]
    %v518 = vld [vmem:[%s5 + $0x3c] sm:$0xf]
    %v519 = vld [vmem:[%s4] sm:$0xff]
    %v520 = vld [vmem:[%s4 + $0x8] sm:$0xff]
    %v521 = vld [vmem:[%s12] sm:$0x1]
    %523 = vset.pattern.permute.xlu0 0
    %524 = vperm.xlu0 %523, %v519
    %v525 = vpop.permute.xlu0 %524
    %528 = vset.pattern.permute.xlu0 0
    %529 = vperm.xlu0 %528, %v520
    %v530 = vpop.permute.xlu0 %529
    %v533 = vlaneseq
    %v534 = vshrl.u32 %v533, 7
    %v535 = vsub.s32 0, %v534
    %v536 = vrot.slane %v521, %v535
    %v538 = vmul.f32 %v525, %v536
    %v539 = vmul.f32 %v530, %v536
    %v540 = vld [vmem:[%s14] sm:$0xf]
    %v541 = vld [vmem:[%s15] sm:$0x1]
    %v543 = vlaneseq
    %v544 = vshrl.u32 %v543, 7
    %v545 = vsub.s32 0, %v544
    %v546 = vrot.slane %v541, %v545
    %v549 = vsel %vm242, %v540, 0
    %551 = vmatprep.subr.bf16.mxu0 0
    %552 = vmatpush1.bf16.msra.mxu0 %v549
    %553 = vmatprep.subr.bf16.mxu0 0
    %554 = vmatpush1.bf16.msra.mxu0 0
    %555 = vmatprep.subr.bf16.mxu0 0
    %556 = vmatpush1.bf16.msra.mxu0 0
    %557 = vmatprep.subr.bf16.mxu0 0
    %558 = vmatpush1.bf16.msra.mxu0 0
    %559 = vmatprep.subr.bf16.mxu0 0
    %560 = vmatpush1.bf16.msra.mxu0 0
    %561 = vmatprep.subr.bf16.mxu0 0
    %562 = vmatpush1.bf16.msra.mxu0 0
    %563 = vmatprep.subr.bf16.mxu0 0
    %564 = vmatpush1.bf16.msra.mxu0 0
    %565 = vmatprep.subr.bf16.mxu0 0
    %566 = vmatpush1.bf16.msra.mxu0 0
    %567 = vmatprep.subr.bf16.mxu0 0
    %568 = vmatpush1.bf16.msra.mxu0 0
    %569 = vmatprep.subr.bf16.mxu0 0
    %570 = vmatpush1.bf16.msra.mxu0 0
    %571 = vmatprep.subr.bf16.mxu0 0
    %572 = vmatpush1.bf16.msra.mxu0 0
    %573 = vmatprep.subr.bf16.mxu0 0
    %574 = vmatpush1.bf16.msra.mxu0 0
    %575 = vmatprep.subr.bf16.mxu0 0
    %576 = vmatpush1.bf16.msra.mxu0 0
    %577 = vmatprep.subr.bf16.mxu0 0
    %578 = vmatpush1.bf16.msra.mxu0 0
    %579 = vmatprep.subr.bf16.mxu0 0
    %580 = vmatpush1.bf16.msra.mxu0 0
    %581 = vmatprep.subr.bf16.mxu0 0
    %582 = vmatpush1.bf16.msra.mxu0 0
    %583 = vmatprep.mubr.bf16.mxu0 0
    %584 = vmatmul.mubr.bf16.gmra.mrb[0].mxu0 %v240
    %v585 = vpop.f32.mrb[0].mxu0
    %v586 = vadd.f32 %v546, %v585
    %v587 = vpop.f32.mrb[0].mxu0
    %v588 = vpop.f32.mrb[0].mxu0
    %v589 = vadd.f32 %v546, %v588
    %v590 = vpop.f32.mrb[0].mxu0
    %591 = vdwg.mxu0
    %s592 = scalar_lea.vmem %s14, 4
    %v593 = vld [vmem:[%s592] sm:$0xf]
    %s594 = scalar_lea.vmem %s15, 1
    %v595 = vld [vmem:[%s594] sm:$0x1]
    %v597 = vlaneseq
    %v598 = vshrl.u32 %v597, 7
    %v599 = vsub.s32 0, %v598
    %v600 = vrot.slane %v595, %v599
    %v603 = vsel %vm242, %v593, 0
    %605 = vmatprep.subr.bf16.mxu0 0
    %606 = vmatpush1.bf16.msra.mxu0 %v603
    %607 = vmatprep.subr.bf16.mxu0 0
    %608 = vmatpush1.bf16.msra.mxu0 0
    %609 = vmatprep.subr.bf16.mxu0 0
    %610 = vmatpush1.bf16.msra.mxu0 0
    %611 = vmatprep.subr.bf16.mxu0 0
    %612 = vmatpush1.bf16.msra.mxu0 0
    %613 = vmatprep.subr.bf16.mxu0 0
    %614 = vmatpush1.bf16.msra.mxu0 0
    %615 = vmatprep.subr.bf16.mxu0 0
    %616 = vmatpush1.bf16.msra.mxu0 0
    %617 = vmatprep.subr.bf16.mxu0 0
    %618 = vmatpush1.bf16.msra.mxu0 0
    %619 = vmatprep.subr.bf16.mxu0 0
    %620 = vmatpush1.bf16.msra.mxu0 0
    %621 = vmatprep.subr.bf16.mxu0 0
    %622 = vmatpush1.bf16.msra.mxu0 0
    %623 = vmatprep.subr.bf16.mxu0 0
    %624 = vmatpush1.bf16.msra.mxu0 0
    %625 = vmatprep.subr.bf16.mxu0 0
    %626 = vmatpush1.bf16.msra.mxu0 0
    %627 = vmatprep.subr.bf16.mxu0 0
    %628 = vmatpush1.bf16.msra.mxu0 0
    %629 = vmatprep.subr.bf16.mxu0 0
    %630 = vmatpush1.bf16.msra.mxu0 0
    %631 = vmatprep.subr.bf16.mxu0 0
    %632 = vmatpush1.bf16.msra.mxu0 0
    %633 = vmatprep.subr.bf16.mxu0 0
    %634 = vmatpush1.bf16.msra.mxu0 0
    %635 = vmatprep.subr.bf16.mxu0 0
    %636 = vmatpush1.bf16.msra.mxu0 0
    %637 = vmatprep.mubr.bf16.mxu0 0
    %638 = vmatmul.mubr.bf16.gmra.mrb[0].mxu0 %v240
    %v639 = vpop.f32.mrb[0].mxu0
    %v640 = vadd.f32 %v600, %v639
    %v641 = vpop.f32.mrb[0].mxu0
    %v642 = vpop.f32.mrb[0].mxu0
    %v643 = vadd.f32 %v600, %v642
    %v644 = vpop.f32.mrb[0].mxu0
    %645 = vdwg.mxu0
    %s646 = scalar_lea.vmem %s14, 8
    %v647 = vld [vmem:[%s646] sm:$0xf]
    %s648 = scalar_lea.vmem %s15, 2
    %v649 = vld [vmem:[%s648] sm:$0x1]
    %v651 = vlaneseq
    %v652 = vshrl.u32 %v651, 7
    %v653 = vsub.s32 0, %v652
    %v654 = vrot.slane %v649, %v653
    %v657 = vsel %vm242, %v647, 0
    %659 = vmatprep.subr.bf16.mxu0 0
    %660 = vmatpush1.bf16.msra.mxu0 %v657
    %661 = vmatprep.subr.bf16.mxu0 0
    %662 = vmatpush1.bf16.msra.mxu0 0
    %663 = vmatprep.subr.bf16.mxu0 0
    %664 = vmatpush1.bf16.msra.mxu0 0
    %665 = vmatprep.subr.bf16.mxu0 0
    %666 = vmatpush1.bf16.msra.mxu0 0
    %667 = vmatprep.subr.bf16.mxu0 0
    %668 = vmatpush1.bf16.msra.mxu0 0
    %669 = vmatprep.subr.bf16.mxu0 0
    %670 = vmatpush1.bf16.msra.mxu0 0
    %671 = vmatprep.subr.bf16.mxu0 0
    %672 = vmatpush1.bf16.msra.mxu0 0
    %673 = vmatprep.subr.bf16.mxu0 0
    %674 = vmatpush1.bf16.msra.mxu0 0
    %675 = vmatprep.subr.bf16.mxu0 0
    %676 = vmatpush1.bf16.msra.mxu0 0
    %677 = vmatprep.subr.bf16.mxu0 0
    %678 = vmatpush1.bf16.msra.mxu0 0
    %679 = vmatprep.subr.bf16.mxu0 0
    %680 = vmatpush1.bf16.msra.mxu0 0
    %681 = vmatprep.subr.bf16.mxu0 0
    %682 = vmatpush1.bf16.msra.mxu0 0
    %683 = vmatprep.subr.bf16.mxu0 0
    %684 = vmatpush1.bf16.msra.mxu0 0
    %685 = vmatprep.subr.bf16.mxu0 0
    %686 = vmatpush1.bf16.msra.mxu0 0
    %687 = vmatprep.subr.bf16.mxu0 0
    %688 = vmatpush1.bf16.msra.mxu0 0
    %689 = vmatprep.subr.bf16.mxu0 0
    %690 = vmatpush1.bf16.msra.mxu0 0
    %691 = vmatprep.mubr.bf16.mxu0 0
    %692 = vmatmul.mubr.bf16.gmra.mrb[0].mxu0 %v240
    %v693 = vpop.f32.mrb[0].mxu0
    %v694 = vadd.f32 %v654, %v693
    %v695 = vpop.f32.mrb[0].mxu0
    %v696 = vpop.f32.mrb[0].mxu0
    %v697 = vadd.f32 %v654, %v696
    %v698 = vpop.f32.mrb[0].mxu0
    %699 = vdwg.mxu0
    %s700 = scalar_lea.vmem %s15, 3
    %v701 = vld [vmem:[%s700] sm:$0x1]
    %v703 = vlaneseq
    %v704 = vshrl.u32 %v703, 7
    %v705 = vsub.s32 0, %v704
    %v706 = vrot.slane %v701, %v705
    %v708 = vld [vmem:[#allocation14] sm:$0xf]
    %v709 = vld [vmem:[#allocation14 + $0x4] sm:$0xf]
    %v710 = vld [vmem:[#allocation14 + $0x8] sm:$0xf]
    %v711 = vld [vmem:[#allocation14 + $0xc] sm:$0xf]
    %v712 = vld [vmem:[#allocation14 + $0x10] sm:$0xf]
    %v713 = vld [vmem:[#allocation14 + $0x14] sm:$0xf]
    %v714 = vld [vmem:[#allocation14 + $0x18] sm:$0xf]
    %v715 = vld [vmem:[#allocation14 + $0x1c] sm:$0xf]
    %v716 = vld [vmem:[#allocation14 + $0x20] sm:$0xf]
    %v717 = vld [vmem:[#allocation14 + $0x24] sm:$0xf]
    %v718 = vld [vmem:[#allocation14 + $0x28] sm:$0xf]
    %v719 = vld [vmem:[#allocation14 + $0x2c] sm:$0xf]
    %v720 = vld [vmem:[#allocation14 + $0x30] sm:$0xf]
    %v721 = vld [vmem:[#allocation14 + $0x34] sm:$0xf]
    %v722 = vld [vmem:[#allocation14 + $0x38] sm:$0xf]
    %v723 = vld [vmem:[#allocation14 + $0x3c] sm:$0xf]
    %s724 = scalar_lea.vmem [#allocation14], 64
    %v725 = vld [vmem:[%s724] sm:$0xf]
    %v726 = vld [vmem:[%s724 + $0x4] sm:$0xf]
    %v727 = vld [vmem:[%s724 + $0x8] sm:$0xf]
    %v728 = vld [vmem:[%s724 + $0xc] sm:$0xf]
    %v729 = vld [vmem:[%s724 + $0x10] sm:$0xf]
    %v730 = vld [vmem:[%s724 + $0x14] sm:$0xf]
    %v731 = vld [vmem:[%s724 + $0x18] sm:$0xf]
    %v732 = vld [vmem:[%s724 + $0x1c] sm:$0xf]
    %v733 = vld [vmem:[%s724 + $0x20] sm:$0xf]
    %v734 = vld [vmem:[%s724 + $0x24] sm:$0xf]
    %v735 = vld [vmem:[%s724 + $0x28] sm:$0xf]
    %v736 = vld [vmem:[%s724 + $0x2c] sm:$0xf]
    %v737 = vld [vmem:[%s724 + $0x30] sm:$0xf]
    %v738 = vld [vmem:[%s724 + $0x34] sm:$0xf]
    %v739 = vld [vmem:[%s724 + $0x38] sm:$0xf]
    %v740 = vld [vmem:[%s724 + $0x3c] sm:$0xf]
    %s741 = scalar_lea.vmem [#allocation14], 128
    %v742 = vld [vmem:[%s741] sm:$0xf]
    %v743 = vld [vmem:[%s741 + $0x4] sm:$0xf]
    %v744 = vld [vmem:[%s741 + $0x8] sm:$0xf]
    %v745 = vld [vmem:[%s741 + $0xc] sm:$0xf]
    %v746 = vld [vmem:[%s741 + $0x10] sm:$0xf]
    %v747 = vld [vmem:[%s741 + $0x14] sm:$0xf]
    %v748 = vld [vmem:[%s741 + $0x18] sm:$0xf]
    %v749 = vld [vmem:[%s741 + $0x1c] sm:$0xf]
    %v750 = vld [vmem:[%s741 + $0x20] sm:$0xf]
    %v751 = vld [vmem:[%s741 + $0x24] sm:$0xf]
    %v752 = vld [vmem:[%s741 + $0x28] sm:$0xf]
    %v753 = vld [vmem:[%s741 + $0x2c] sm:$0xf]
    %v754 = vld [vmem:[%s741 + $0x30] sm:$0xf]
    %v755 = vld [vmem:[%s741 + $0x34] sm:$0xf]
    %v756 = vld [vmem:[%s741 + $0x38] sm:$0xf]
    %v757 = vld [vmem:[%s741 + $0x3c] sm:$0xf]
    %v758 = vld [vmem:[#allocation16] sm:$0xf]
    %v759 = vld [vmem:[#allocation16 + $0x4] sm:$0xf]
    %v760 = vld [vmem:[#allocation16 + $0x8] sm:$0xf]
    %v761 = vld [vmem:[#allocation16 + $0xc] sm:$0xf]
    %v762 = vld [vmem:[#allocation16 + $0x10] sm:$0xf]
    %v763 = vld [vmem:[#allocation16 + $0x14] sm:$0xf]
    %v764 = vld [vmem:[#allocation16 + $0x18] sm:$0xf]
    %v765 = vld [vmem:[#allocation16 + $0x1c] sm:$0xf]
    %v766 = vld [vmem:[#allocation16 + $0x20] sm:$0xf]
    %v767 = vld [vmem:[#allocation16 + $0x24] sm:$0xf]
    %v768 = vld [vmem:[#allocation16 + $0x28] sm:$0xf]
    %v769 = vld [vmem:[#allocation16 + $0x2c] sm:$0xf]
    %v770 = vld [vmem:[#allocation16 + $0x30] sm:$0xf]
    %v771 = vld [vmem:[#allocation16 + $0x34] sm:$0xf]
    %v772 = vld [vmem:[#allocation16 + $0x38] sm:$0xf]
    %v773 = vld [vmem:[#allocation16 + $0x3c] sm:$0xf]
    %s774 = scalar_lea.vmem [#allocation16], 64
    %v775 = vld [vmem:[%s774] sm:$0xf]
    %v776 = vld [vmem:[%s774 + $0x4] sm:$0xf]
    %v777 = vld [vmem:[%s774 + $0x8] sm:$0xf]
    %v778 = vld [vmem:[%s774 + $0xc] sm:$0xf]
    %v779 = vld [vmem:[%s774 + $0x10] sm:$0xf]
    %v780 = vld [vmem:[%s774 + $0x14] sm:$0xf]
    %v781 = vld [vmem:[%s774 + $0x18] sm:$0xf]
    %v782 = vld [vmem:[%s774 + $0x1c] sm:$0xf]
    %v783 = vld [vmem:[%s774 + $0x20] sm:$0xf]
    %v784 = vld [vmem:[%s774 + $0x24] sm:$0xf]
    %v785 = vld [vmem:[%s774 + $0x28] sm:$0xf]
    %v786 = vld [vmem:[%s774 + $0x2c] sm:$0xf]
    %v787 = vld [vmem:[%s774 + $0x30] sm:$0xf]
    %v788 = vld [vmem:[%s774 + $0x34] sm:$0xf]
    %v789 = vld [vmem:[%s774 + $0x38] sm:$0xf]
    %v790 = vld [vmem:[%s774 + $0x3c] sm:$0xf]
    %s791 = scalar_lea.vmem [#allocation16], 128
    %v792 = vld [vmem:[%s791] sm:$0xf]
    %v793 = vld [vmem:[%s791 + $0x4] sm:$0xf]
    %v794 = vld [vmem:[%s791 + $0x8] sm:$0xf]
    %v795 = vld [vmem:[%s791 + $0xc] sm:$0xf]
    %v796 = vld [vmem:[%s791 + $0x10] sm:$0xf]
    %v797 = vld [vmem:[%s791 + $0x14] sm:$0xf]
    %v798 = vld [vmem:[%s791 + $0x18] sm:$0xf]
    %v799 = vld [vmem:[%s791 + $0x1c] sm:$0xf]
    %v800 = vld [vmem:[%s791 + $0x20] sm:$0xf]
    %v801 = vld [vmem:[%s791 + $0x24] sm:$0xf]
    %v802 = vld [vmem:[%s791 + $0x28] sm:$0xf]
    %v803 = vld [vmem:[%s791 + $0x2c] sm:$0xf]
    %v804 = vld [vmem:[%s791 + $0x30] sm:$0xf]
    %v805 = vld [vmem:[%s791 + $0x34] sm:$0xf]
    %v806 = vld [vmem:[%s791 + $0x38] sm:$0xf]
    %v807 = vld [vmem:[%s791 + $0x3c] sm:$0xf]
    %v808 = vld [vmem:[#allocation13] sm:$0xf]
    %v809 = vld [vmem:[#allocation13 + $0x4] sm:$0xf]
    %v810 = vld [vmem:[#allocation13 + $0x8] sm:$0xf]
    %v811 = vld [vmem:[#allocation13 + $0xc] sm:$0xf]
    %v812 = vld [vmem:[#allocation13 + $0x10] sm:$0xf]
    %v813 = vld [vmem:[#allocation13 + $0x14] sm:$0xf]
    %v814 = vld [vmem:[#allocation13 + $0x18] sm:$0xf]
    %v815 = vld [vmem:[#allocation13 + $0x1c] sm:$0xf]
    %v816 = vld [vmem:[#allocation13 + $0x20] sm:$0xf]
    %v817 = vld [vmem:[#allocation13 + $0x24] sm:$0xf]
    %v818 = vld [vmem:[#allocation13 + $0x28] sm:$0xf]
    %v819 = vld [vmem:[#allocation13 + $0x2c] sm:$0xf]
    %v820 = vld [vmem:[#allocation13 + $0x30] sm:$0xf]
    %v821 = vld [vmem:[#allocation13 + $0x34] sm:$0xf]
    %v822 = vld [vmem:[#allocation13 + $0x38] sm:$0xf]
    %v823 = vld [vmem:[#allocation13 + $0x3c] sm:$0xf]
    %v824 = vlaneseq
    %v825 = vand.u32 %v824, 127
    %vm826 = vcmp.lt.s32.totalorder %v825, 64
    %v827 = vsel %vm826, 1, 0
    %v828 = vcvt.s32.f32 %v827
    %v829 = vpack.c.bf16 %v828, %v828
    %v846 = vunpack.c.l.b16 %v503
    %v847 = vunpack.c.l.b16 %v504
    %v848 = vunpack.c.l.b16 %v505
    %v849 = vunpack.c.l.b16 %v506
    %v850 = vunpack.c.l.b16 %v507
    %v851 = vunpack.c.l.b16 %v508
    %v852 = vunpack.c.l.b16 %v509
    %v853 = vunpack.c.l.b16 %v510
    %v854 = vunpack.c.l.b16 %v511
    %v855 = vunpack.c.l.b16 %v512
    %v856 = vunpack.c.l.b16 %v513
    %v857 = vunpack.c.l.b16 %v514
    %v858 = vunpack.c.l.b16 %v515
    %v859 = vunpack.c.l.b16 %v516
    %v860 = vunpack.c.l.b16 %v517
    %v861 = vunpack.c.l.b16 %v518
    %v862 = vpack.c.b16 %v847, %v846
    %v863 = vpack.c.b16 %v849, %v848
    %v864 = vpack.c.b16 %v851, %v850
    %v865 = vpack.c.b16 %v853, %v852
    %v866 = vpack.c.b16 %v855, %v854
    %v867 = vpack.c.b16 %v857, %v856
    %v868 = vpack.c.b16 %v859, %v858
    %v869 = vpack.c.b16 %v861, %v860
    %878 = vmatprep.subr.bf16.mxu0 0
    %879 = vmatpush1.bf16.msra.mxu0 %v862
    %880 = vmatprep.subr.bf16.mxu0 0
    %881 = vmatpush1.bf16.msra.mxu0 %v863
    %882 = vmatprep.subr.bf16.mxu0 0
    %883 = vmatpush1.bf16.msra.mxu0 %v864
    %884 = vmatprep.subr.bf16.mxu0 0
    %885 = vmatpush1.bf16.msra.mxu0 %v865
    %886 = vmatprep.subr.bf16.mxu0 0
    %887 = vmatpush1.bf16.msra.mxu0 %v866
    %888 = vmatprep.subr.bf16.mxu0 0
    %889 = vmatpush1.bf16.msra.mxu0 %v867
    %890 = vmatprep.subr.bf16.mxu0 0
    %891 = vmatpush1.bf16.msra.mxu0 %v868
    %892 = vmatprep.subr.bf16.mxu0 0
    %893 = vmatpush1.bf16.msra.mxu0 %v869
    %894 = vmatprep.subr.bf16.mxu0 0
    %895 = vmatpush1.bf16.msra.mxu0 0
    %896 = vmatprep.subr.bf16.mxu0 0
    %897 = vmatpush1.bf16.msra.mxu0 0
    %898 = vmatprep.subr.bf16.mxu0 0
    %899 = vmatpush1.bf16.msra.mxu0 0
    %900 = vmatprep.subr.bf16.mxu0 0
    %901 = vmatpush1.bf16.msra.mxu0 0
    %902 = vmatprep.subr.bf16.mxu0 0
    %903 = vmatpush1.bf16.msra.mxu0 0
    %904 = vmatprep.subr.bf16.mxu0 0
    %905 = vmatpush1.bf16.msra.mxu0 0
    %906 = vmatprep.subr.bf16.mxu0 0
    %907 = vmatpush1.bf16.msra.mxu0 0
    %908 = vmatprep.subr.bf16.mxu0 0
    %909 = vmatpush1.bf16.msra.mxu0 0
    %910 = vmatprep.mubr.bf16.mxu0 0
    %911 = vmatmul.mubr.bf16.gmra.mrb[0].mxu0 %v829
    %v912 = vpop.f32.mrb[0].mxu0
    %v913 = vadd.f32 0.0, %v912
    %v914 = vpop.f32.mrb[0].mxu0
    %v915 = vpop.f32.mrb[0].mxu0
    %v916 = vadd.f32 0.0, %v915
    %v917 = vpop.f32.mrb[0].mxu0
    %918 = vdwg.mxu0
    %v919 = vpack.c.bf16 %v916, %v913
    %v922 = vunpack.c.l.b16 %v200
    %v923 = vunpack.c.l.b16 %v201
    %v924 = vpack.c.b16 %v923, %v922
    %vm925 = vcmask 130048
    %v927 = vsel %vm925, %v924, 0
    %929 = vmatprep.subr.bf16.mxu0 0
    %930 = vmatpush1.bf16.msra.mxu0 %v919
    %931 = vmatprep.subr.bf16.mxu0 0
    %932 = vmatpush1.bf16.msra.mxu0 0
    %933 = vmatprep.subr.bf16.mxu0 0
    %934 = vmatpush1.bf16.msra.mxu0 0
    %935 = vmatprep.subr.bf16.mxu0 0
    %936 = vmatpush1.bf16.msra.mxu0 0
    %937 = vmatprep.subr.bf16.mxu0 0
    %938 = vmatpush1.bf16.msra.mxu0 0
    %939 = vmatprep.subr.bf16.mxu0 0
    %940 = vmatpush1.bf16.msra.mxu0 0
    %941 = vmatprep.subr.bf16.mxu0 0
    %942 = vmatpush1.bf16.msra.mxu0 0
    %943 = vmatprep.subr.bf16.mxu0 0
    %944 = vmatpush1.bf16.msra.mxu0 0
    %945 = vmatprep.subr.bf16.mxu0 0
    %946 = vmatpush1.bf16.msra.mxu0 0
    %947 = vmatprep.subr.bf16.mxu0 0
    %948 = vmatpush1.bf16.msra.mxu0 0
    %949 = vmatprep.subr.bf16.mxu0 0
    %950 = vmatpush1.bf16.msra.mxu0 0
    %951 = vmatprep.subr.bf16.mxu0 0
    %952 = vmatpush1.bf16.msra.mxu0 0
    %953 = vmatprep.subr.bf16.mxu0 0
    %954 = vmatpush1.bf16.msra.mxu0 0
    %955 = vmatprep.subr.bf16.mxu0 0
    %956 = vmatpush1.bf16.msra.mxu0 0
    %957 = vmatprep.subr.bf16.mxu0 0
    %958 = vmatpush1.bf16.msra.mxu0 0
    %959 = vmatprep.subr.bf16.mxu0 0
    %960 = vmatpush1.bf16.msra.mxu0 0
    %961 = vmatprep.mubr.bf16.mxu0 0
    %962 = vmatmul.mubr.bf16.gmra.mrb[0].mxu0 %v927
    %v963 = vpop.f32.mrb[0].mxu0
    %v964 = vadd.f32 %v223, %v963
    %v965 = vpop.f32.mrb[0].mxu0
    %v966 = vpop.f32.mrb[0].mxu0
    %v967 = vadd.f32 %v224, %v966
    %v968 = vpop.f32.mrb[0].mxu0
    %969 = vdwg.mxu0
    %v970 = vpack.c.bf16 %v967, %v964
    %v987 = vunpack.c.l.b16 %v487
    %v988 = vunpack.c.l.b16 %v488
    %v989 = vunpack.c.l.b16 %v489
    %v990 = vunpack.c.l.b16 %v490
    %v991 = vunpack.c.l.b16 %v491
    %v992 = vunpack.c.l.b16 %v492
    %v993 = vunpack.c.l.b16 %v493
    %v994 = vunpack.c.l.b16 %v494
    %v995 = vunpack.c.l.b16 %v495
    %v996 = vunpack.c.l.b16 %v496
    %v997 = vunpack.c.l.b16 %v497
    %v998 = vunpack.c.l.b16 %v498
    %v999 = vunpack.c.l.b16 %v499
    %v1000 = vunpack.c.l.b16 %v500
    %v1001 = vunpack.c.l.b16 %v501
    %v1002 = vunpack.c.l.b16 %v502
    %v1003 = vpack.c.b16 %v988, %v987
    %v1004 = vpack.c.b16 %v990, %v989
    %v1005 = vpack.c.b16 %v992, %v991
    %v1006 = vpack.c.b16 %v994, %v993
    %v1007 = vpack.c.b16 %v996, %v995
    %v1008 = vpack.c.b16 %v998, %v997
    %v1009 = vpack.c.b16 %v1000, %v999
    %v1010 = vpack.c.b16 %v1002, %v1001
    %1019 = vmatprep.subr.bf16.mxu0 0
    %1020 = vmatpush1.bf16.msra.mxu0 %v1003
    %1021 = vmatprep.subr.bf16.mxu0 0
    %1022 = vmatpush1.bf16.msra.mxu0 %v1004
    %1023 = vmatprep.subr.bf16.mxu0 0
    %1024 = vmatpush1.bf16.msra.mxu0 %v1005
    %1025 = vmatprep.subr.bf16.mxu0 0
    %1026 = vmatpush1.bf16.msra.mxu0 %v1006
    %1027 = vmatprep.subr.bf16.mxu0 0
    %1028 = vmatpush1.bf16.msra.mxu0 %v1007
    %1029 = vmatprep.subr.bf16.mxu0 0
    %1030 = vmatpush1.bf16.msra.mxu0 %v1008
    %1031 = vmatprep.subr.bf16.mxu0 0
    %1032 = vmatpush1.bf16.msra.mxu0 %v1009
    %1033 = vmatprep.subr.bf16.mxu0 0
    %1034 = vmatpush1.bf16.msra.mxu0 %v1010
    %1035 = vmatprep.subr.bf16.mxu0 0
    %1036 = vmatpush1.bf16.msra.mxu0 0
    %1037 = vmatprep.subr.bf16.mxu0 0
    %1038 = vmatpush1.bf16.msra.mxu0 0
    %1039 = vmatprep.subr.bf16.mxu0 0
    %1040 = vmatpush1.bf16.msra.mxu0 0
    %1041 = vmatprep.subr.bf16.mxu0 0
    %1042 = vmatpush1.bf16.msra.mxu0 0
    %1043 = vmatprep.subr.bf16.mxu0 0
    %1044 = vmatpush1.bf16.msra.mxu0 0
    %1045 = vmatprep.subr.bf16.mxu0 0
    %1046 = vmatpush1.bf16.msra.mxu0 0
    %1047 = vmatprep.subr.bf16.mxu0 0
    %1048 = vmatpush1.bf16.msra.mxu0 0
    %1049 = vmatprep.subr.bf16.mxu0 0
    %1050 = vmatpush1.bf16.msra.mxu0 0
    %1051 = vmatprep.mubr.bf16.mxu0 0
    %1052 = vmatmul.mubr.bf16.gmra.mrb[0].mxu0 %v829
    %v1053 = vpop.f32.mrb[0].mxu0
    %v1054 = vadd.f32 %v401, %v1053
    %v1055 = vpop.f32.mrb[0].mxu0
    %v1056 = vpop.f32.mrb[0].mxu0
    %v1057 = vadd.f32 %v401, %v1056
    %v1058 = vpop.f32.mrb[0].mxu0
    %1059 = vdwg.mxu0
    %v1076 = vunpack.c.l.b16 %v453
    %v1077 = vunpack.c.l.b16 %v454
    %v1078 = vunpack.c.l.b16 %v455
    %v1079 = vunpack.c.l.b16 %v456
    %v1080 = vunpack.c.l.b16 %v457
    %v1081 = vunpack.c.l.b16 %v458
    %v1082 = vunpack.c.l.b16 %v459
    %v1083 = vunpack.c.l.b16 %v460
    %v1084 = vunpack.c.l.b16 %v461
    %v1085 = vunpack.c.l.b16 %v462
    %v1086 = vunpack.c.l.b16 %v463
    %v1087 = vunpack.c.l.b16 %v464
    %v1088 = vunpack.c.l.b16 %v465
    %v1089 = vunpack.c.l.b16 %v466
    %v1090 = vunpack.c.l.b16 %v467
    %v1091 = vunpack.c.l.b16 %v468
    %v1092 = vpack.c.b16 %v1077, %v1076
    %v1093 = vpack.c.b16 %v1079, %v1078
    %v1094 = vpack.c.b16 %v1081, %v1080
    %v1095 = vpack.c.b16 %v1083, %v1082
    %v1096 = vpack.c.b16 %v1085, %v1084
    %v1097 = vpack.c.b16 %v1087, %v1086
    %v1098 = vpack.c.b16 %v1089, %v1088
    %v1099 = vpack.c.b16 %v1091, %v1090
    %1108 = vmatprep.subr.bf16.mxu0 0
    %1109 = vmatpush1.bf16.msra.mxu0 %v1092
    %1110 = vmatprep.subr.bf16.mxu0 0
    %1111 = vmatpush1.bf16.msra.mxu0 %v1093
    %1112 = vmatprep.subr.bf16.mxu0 0
    %1113 = vmatpush1.bf16.msra.mxu0 %v1094
    %1114 = vmatprep.subr.bf16.mxu0 0
    %1115 = vmatpush1.bf16.msra.mxu0 %v1095
    %1116 = vmatprep.subr.bf16.mxu0 0
    %1117 = vmatpush1.bf16.msra.mxu0 %v1096
    %1118 = vmatprep.subr.bf16.mxu0 0
    %1119 = vmatpush1.bf16.msra.mxu0 %v1097
    %1120 = vmatprep.subr.bf16.mxu0 0
    %1121 = vmatpush1.bf16.msra.mxu0 %v1098
    %1122 = vmatprep.subr.bf16.mxu0 0
    %1123 = vmatpush1.bf16.msra.mxu0 %v1099
    %1124 = vmatprep.subr.bf16.mxu0 0
    %1125 = vmatpush1.bf16.msra.mxu0 0
    %1126 = vmatprep.subr.bf16.mxu0 0
    %1127 = vmatpush1.bf16.msra.mxu0 0
    %1128 = vmatprep.subr.bf16.mxu0 0
    %1129 = vmatpush1.bf16.msra.mxu0 0
    %1130 = vmatprep.subr.bf16.mxu0 0
    %1131 = vmatpush1.bf16.msra.mxu0 0
    %1132 = vmatprep.subr.bf16.mxu0 0
    %1133 = vmatpush1.bf16.msra.mxu0 0
    %1134 = vmatprep.subr.bf16.mxu0 0
    %1135 = vmatpush1.bf16.msra.mxu0 0
    %1136 = vmatprep.subr.bf16.mxu0 0
    %1137 = vmatpush1.bf16.msra.mxu0 0
    %1138 = vmatprep.subr.bf16.mxu0 0
    %1139 = vmatpush1.bf16.msra.mxu0 0
    %1140 = vmatprep.mubr.bf16.mxu0 0
    %1141 = vmatmul.mubr.bf16.gmra.mrb[0].mxu0 %v829
    %v1142 = vpop.f32.mrb[0].mxu0
    %v1143 = vadd.f32 0.0, %v1142
    %v1144 = vpop.f32.mrb[0].mxu0
    %v1145 = vpop.f32.mrb[0].mxu0
    %v1146 = vadd.f32 0.0, %v1145
    %v1147 = vpop.f32.mrb[0].mxu0
    %1148 = vdwg.mxu0
    %v1165 = vunpack.c.l.b16 %v403
    %v1166 = vunpack.c.l.b16 %v404
    %v1167 = vunpack.c.l.b16 %v405
    %v1168 = vunpack.c.l.b16 %v406
    %v1169 = vunpack.c.l.b16 %v407
    %v1170 = vunpack.c.l.b16 %v408
    %v1171 = vunpack.c.l.b16 %v409
    %v1172 = vunpack.c.l.b16 %v410
    %v1173 = vunpack.c.l.b16 %v411
    %v1174 = vunpack.c.l.b16 %v412
    %v1175 = vunpack.c.l.b16 %v413
    %v1176 = vunpack.c.l.b16 %v414
    %v1177 = vunpack.c.l.b16 %v415
    %v1178 = vunpack.c.l.b16 %v416
    %v1179 = vunpack.c.l.b16 %v417
    %v1180 = vunpack.c.l.b16 %v418
    %v1181 = vpack.c.b16 %v1166, %v1165
    %v1182 = vpack.c.b16 %v1168, %v1167
    %v1183 = vpack.c.b16 %v1170, %v1169
    %v1184 = vpack.c.b16 %v1172, %v1171
    %v1185 = vpack.c.b16 %v1174, %v1173
    %v1186 = vpack.c.b16 %v1176, %v1175
    %v1187 = vpack.c.b16 %v1178, %v1177
    %v1188 = vpack.c.b16 %v1180, %v1179
    %1197 = vmatprep.subr.bf16.mxu0 0
    %1198 = vmatpush1.bf16.msra.mxu0 %v1181
    %1199 = vmatprep.subr.bf16.mxu0 0
    %1200 = vmatpush1.bf16.msra.mxu0 %v1182
    %1201 = vmatprep.subr.bf16.mxu0 0
    %1202 = vmatpush1.bf16.msra.mxu0 %v1183
    %1203 = vmatprep.subr.bf16.mxu0 0
    %1204 = vmatpush1.bf16.msra.mxu0 %v1184
    %1205 = vmatprep.subr.bf16.mxu0 0
    %1206 = vmatpush1.bf16.msra.mxu0 %v1185
    %1207 = vmatprep.subr.bf16.mxu0 0
    %1208 = vmatpush1.bf16.msra.mxu0 %v1186
    %1209 = vmatprep.subr.bf16.mxu0 0
    %1210 = vmatpush1.bf16.msra.mxu0 %v1187
    %1211 = vmatprep.subr.bf16.mxu0 0
    %1212 = vmatpush1.bf16.msra.mxu0 %v1188
    %1213 = vmatprep.subr.bf16.mxu0 0
    %1214 = vmatpush1.bf16.msra.mxu0 0
    %1215 = vmatprep.subr.bf16.mxu0 0
    %1216 = vmatpush1.bf16.msra.mxu0 0
    %1217 = vmatprep.subr.bf16.mxu0 0
    %1218 = vmatpush1.bf16.msra.mxu0 0
    %1219 = vmatprep.subr.bf16.mxu0 0
    %1220 = vmatpush1.bf16.msra.mxu0 0
    %1221 = vmatprep.subr.bf16.mxu0 0
    %1222 = vmatpush1.bf16.msra.mxu0 0
    %1223 = vmatprep.subr.bf16.mxu0 0
    %1224 = vmatpush1.bf16.msra.mxu0 0
    %1225 = vmatprep.subr.bf16.mxu0 0
    %1226 = vmatpush1.bf16.msra.mxu0 0
    %1227 = vmatprep.subr.bf16.mxu0 0
    %1228 = vmatpush1.bf16.msra.mxu0 0
    %1229 = vmatprep.mubr.bf16.mxu0 0
    %1230 = vmatmul.mubr.bf16.gmra.mrb[0].mxu0 %v970
    %v1231 = vpop.f32.mrb[0].mxu0
    %v1232 = vadd.f32 %v1143, %v1231
    %v1233 = vpop.f32.mrb[0].mxu0
    %v1234 = vpop.f32.mrb[0].mxu0
    %v1235 = vadd.f32 %v1146, %v1234
    %v1236 = vpop.f32.mrb[0].mxu0
    %1237 = vdwg.mxu0
    %v1238 = vadd.f32 %v1232, %v281
    %v1239 = vadd.f32 %v1235, %v284
    %v1240 = vsub.f32 0.0, %v1238
    %v1241 = vsub.f32 0.0, %v1239
    %v1242 = vmul.f32 %v1240, 1.442695
    %v1243 = vpow.pop %v1242
    %v1244 = vmul.f32 %v1241, 1.442695
    %v1245 = vpow.pop %v1244
    %v1246 = vadd.f32 %v1243, 1.0
    %v1247 = vadd.f32 %v1245, 1.0
    %v1248 = vrcp.pop %v1246
    %v1249 = vmul.f32 1.0, %v1248
    %v1250 = vrcp.pop %v1247
    %v1251 = vmul.f32 1.0, %v1250
    %v1268 = vunpack.c.l.b16 %v470
    %v1269 = vunpack.c.l.b16 %v471
    %v1270 = vunpack.c.l.b16 %v472
    %v1271 = vunpack.c.l.b16 %v473
    %v1272 = vunpack.c.l.b16 %v474
    %v1273 = vunpack.c.l.b16 %v475
    %v1274 = vunpack.c.l.b16 %v476
    %v1275 = vunpack.c.l.b16 %v477
    %v1276 = vunpack.c.l.b16 %v478
    %v1277 = vunpack.c.l.b16 %v479
    %v1278 = vunpack.c.l.b16 %v480
    %v1279 = vunpack.c.l.b16 %v481
    %v1280 = vunpack.c.l.b16 %v482
    %v1281 = vunpack.c.l.b16 %v483
    %v1282 = vunpack.c.l.b16 %v484
    %v1283 = vunpack.c.l.b16 %v485
    %v1284 = vpack.c.b16 %v1269, %v1268
    %v1285 = vpack.c.b16 %v1271, %v1270
    %v1286 = vpack.c.b16 %v1273, %v1272
    %v1287 = vpack.c.b16 %v1275, %v1274
    %v1288 = vpack.c.b16 %v1277, %v1276
    %v1289 = vpack.c.b16 %v1279, %v1278
    %v1290 = vpack.c.b16 %v1281, %v1280
    %v1291 = vpack.c.b16 %v1283, %v1282
    %1300 = vmatprep.subr.bf16.mxu0 0
    %1301 = vmatpush1.bf16.msra.mxu0 %v1284
    %1302 = vmatprep.subr.bf16.mxu0 0
    %1303 = vmatpush1.bf16.msra.mxu0 %v1285
    %1304 = vmatprep.subr.bf16.mxu0 0
    %1305 = vmatpush1.bf16.msra.mxu0 %v1286
    %1306 = vmatprep.subr.bf16.mxu0 0
    %1307 = vmatpush1.bf16.msra.mxu0 %v1287
    %1308 = vmatprep.subr.bf16.mxu0 0
    %1309 = vmatpush1.bf16.msra.mxu0 %v1288
    %1310 = vmatprep.subr.bf16.mxu0 0
    %1311 = vmatpush1.bf16.msra.mxu0 %v1289
    %1312 = vmatprep.subr.bf16.mxu0 0
    %1313 = vmatpush1.bf16.msra.mxu0 %v1290
    %1314 = vmatprep.subr.bf16.mxu0 0
    %1315 = vmatpush1.bf16.msra.mxu0 %v1291
    %1316 = vmatprep.subr.bf16.mxu0 0
    %1317 = vmatpush1.bf16.msra.mxu0 0
    %1318 = vmatprep.subr.bf16.mxu0 0
    %1319 = vmatpush1.bf16.msra.mxu0 0
    %1320 = vmatprep.subr.bf16.mxu0 0
    %1321 = vmatpush1.bf16.msra.mxu0 0
    %1322 = vmatprep.subr.bf16.mxu0 0
    %1323 = vmatpush1.bf16.msra.mxu0 0
    %1324 = vmatprep.subr.bf16.mxu0 0
    %1325 = vmatpush1.bf16.msra.mxu0 0
    %1326 = vmatprep.subr.bf16.mxu0 0
    %1327 = vmatpush1.bf16.msra.mxu0 0
    %1328 = vmatprep.subr.bf16.mxu0 0
    %1329 = vmatpush1.bf16.msra.mxu0 0
    %1330 = vmatprep.subr.bf16.mxu0 0
    %1331 = vmatpush1.bf16.msra.mxu0 0
    %1332 = vmatprep.mubr.bf16.mxu0 0
    %1333 = vmatmul.mubr.bf16.gmra.mrb[0].mxu0 %v829
    %v1334 = vpop.f32.mrb[0].mxu0
    %v1335 = vadd.f32 0.0, %v1334
    %v1336 = vpop.f32.mrb[0].mxu0
    %v1337 = vpop.f32.mrb[0].mxu0
    %v1338 = vadd.f32 0.0, %v1337
    %v1339 = vpop.f32.mrb[0].mxu0
    %1340 = vdwg.mxu0
    %v1357 = vunpack.c.l.b16 %v420
    %v1358 = vunpack.c.l.b16 %v421
    %v1359 = vunpack.c.l.b16 %v422
    %v1360 = vunpack.c.l.b16 %v423
    %v1361 = vunpack.c.l.b16 %v424
    %v1362 = vunpack.c.l.b16 %v425
    %v1363 = vunpack.c.l.b16 %v426
    %v1364 = vunpack.c.l.b16 %v427
    %v1365 = vunpack.c.l.b16 %v428
    %v1366 = vunpack.c.l.b16 %v429
    %v1367 = vunpack.c.l.b16 %v430
    %v1368 = vunpack.c.l.b16 %v431
    %v1369 = vunpack.c.l.b16 %v432
    %v1370 = vunpack.c.l.b16 %v433
    %v1371 = vunpack.c.l.b16 %v434
    %v1372 = vunpack.c.l.b16 %v435
    %v1373 = vpack.c.b16 %v1358, %v1357
    %v1374 = vpack.c.b16 %v1360, %v1359
    %v1375 = vpack.c.b16 %v1362, %v1361
    %v1376 = vpack.c.b16 %v1364, %v1363
    %v1377 = vpack.c.b16 %v1366, %v1365
    %v1378 = vpack.c.b16 %v1368, %v1367
    %v1379 = vpack.c.b16 %v1370, %v1369
    %v1380 = vpack.c.b16 %v1372, %v1371
    %1389 = vmatprep.subr.bf16.mxu0 0
    %1390 = vmatpush1.bf16.msra.mxu0 %v1373
    %1391 = vmatprep.subr.bf16.mxu0 0
    %1392 = vmatpush1.bf16.msra.mxu0 %v1374
    %1393 = vmatprep.subr.bf16.mxu0 0
    %1394 = vmatpush1.bf16.msra.mxu0 %v1375
    %1395 = vmatprep.subr.bf16.mxu0 0
    %1396 = vmatpush1.bf16.msra.mxu0 %v1376
    %1397 = vmatprep.subr.bf16.mxu0 0
    %1398 = vmatpush1.bf16.msra.mxu0 %v1377
    %1399 = vmatprep.subr.bf16.mxu0 0
    %1400 = vmatpush1.bf16.msra.mxu0 %v1378
    %1401 = vmatprep.subr.bf16.mxu0 0
    %1402 = vmatpush1.bf16.msra.mxu0 %v1379
    %1403 = vmatprep.subr.bf16.mxu0 0
    %1404 = vmatpush1.bf16.msra.mxu0 %v1380
    %1405 = vmatprep.subr.bf16.mxu0 0
    %1406 = vmatpush1.bf16.msra.mxu0 0
    %1407 = vmatprep.subr.bf16.mxu0 0
    %1408 = vmatpush1.bf16.msra.mxu0 0
    %1409 = vmatprep.subr.bf16.mxu0 0
    %1410 = vmatpush1.bf16.msra.mxu0 0
    %1411 = vmatprep.subr.bf16.mxu0 0
    %1412 = vmatpush1.bf16.msra.mxu0 0
    %1413 = vmatprep.subr.bf16.mxu0 0
    %1414 = vmatpush1.bf16.msra.mxu0 0
    %1415 = vmatprep.subr.bf16.mxu0 0
    %1416 = vmatpush1.bf16.msra.mxu0 0
    %1417 = vmatprep.subr.bf16.mxu0 0
    %1418 = vmatpush1.bf16.msra.mxu0 0
    %1419 = vmatprep.subr.bf16.mxu0 0
    %1420 = vmatpush1.bf16.msra.mxu0 0
    %1421 = vmatprep.mubr.bf16.mxu0 0
    %1422 = vmatmul.mubr.bf16.gmra.mrb[0].mxu0 %v970
    %v1423 = vpop.f32.mrb[0].mxu0
    %v1424 = vadd.f32 %v1335, %v1423
    %v1425 = vpop.f32.mrb[0].mxu0
    %v1426 = vpop.f32.mrb[0].mxu0
    %v1427 = vadd.f32 %v1338, %v1426
    %v1428 = vpop.f32.mrb[0].mxu0
    %1429 = vdwg.mxu0
    %v1430 = vadd.f32 %v1424, %v335
    %v1431 = vadd.f32 %v1427, %v338
    %v1432 = vsub.f32 0.0, %v1430
    %v1433 = vsub.f32 0.0, %v1431
    %v1434 = vmul.f32 %v1432, 1.442695
    %v1435 = vpow.pop %v1434
    %v1436 = vmul.f32 %v1433, 1.442695
    %v1437 = vpow.pop %v1436
    %v1438 = vadd.f32 %v1435, 1.0
    %v1439 = vadd.f32 %v1437, 1.0
    %v1440 = vrcp.pop %v1438
    %v1441 = vmul.f32 1.0, %v1440
    %v1442 = vrcp.pop %v1439
    %v1443 = vmul.f32 1.0, %v1442
    %v1460 = vunpack.c.l.b16 %v437
    %v1461 = vunpack.c.l.b16 %v438
    %v1462 = vunpack.c.l.b16 %v439
    %v1463 = vunpack.c.l.b16 %v440
    %v1464 = vunpack.c.l.b16 %v441
    %v1465 = vunpack.c.l.b16 %v442
    %v1466 = vunpack.c.l.b16 %v443
    %v1467 = vunpack.c.l.b16 %v444
    %v1468 = vunpack.c.l.b16 %v445
    %v1469 = vunpack.c.l.b16 %v446
    %v1470 = vunpack.c.l.b16 %v447
    %v1471 = vunpack.c.l.b16 %v448
    %v1472 = vunpack.c.l.b16 %v449
    %v1473 = vunpack.c.l.b16 %v450
    %v1474 = vunpack.c.l.b16 %v451
    %v1475 = vunpack.c.l.b16 %v452
    %v1476 = vpack.c.b16 %v1461, %v1460
    %v1477 = vpack.c.b16 %v1463, %v1462
    %v1478 = vpack.c.b16 %v1465, %v1464
    %v1479 = vpack.c.b16 %v1467, %v1466
    %v1480 = vpack.c.b16 %v1469, %v1468
    %v1481 = vpack.c.b16 %v1471, %v1470
    %v1482 = vpack.c.b16 %v1473, %v1472
    %v1483 = vpack.c.b16 %v1475, %v1474
    %1492 = vmatprep.subr.bf16.mxu0 0
    %1493 = vmatpush1.bf16.msra.mxu0 %v1476
    %1494 = vmatprep.subr.bf16.mxu0 0
    %1495 = vmatpush1.bf16.msra.mxu0 %v1477
    %1496 = vmatprep.subr.bf16.mxu0 0
    %1497 = vmatpush1.bf16.msra.mxu0 %v1478
    %1498 = vmatprep.subr.bf16.mxu0 0
    %1499 = vmatpush1.bf16.msra.mxu0 %v1479
    %1500 = vmatprep.subr.bf16.mxu0 0
    %1501 = vmatpush1.bf16.msra.mxu0 %v1480
    %1502 = vmatprep.subr.bf16.mxu0 0
    %1503 = vmatpush1.bf16.msra.mxu0 %v1481
    %1504 = vmatprep.subr.bf16.mxu0 0
    %1505 = vmatpush1.bf16.msra.mxu0 %v1482
    %1506 = vmatprep.subr.bf16.mxu0 0
    %1507 = vmatpush1.bf16.msra.mxu0 %v1483
    %1508 = vmatprep.subr.bf16.mxu0 0
    %1509 = vmatpush1.bf16.msra.mxu0 0
    %1510 = vmatprep.subr.bf16.mxu0 0
    %1511 = vmatpush1.bf16.msra.mxu0 0
    %1512 = vmatprep.subr.bf16.mxu0 0
    %1513 = vmatpush1.bf16.msra.mxu0 0
    %1514 = vmatprep.subr.bf16.mxu0 0
    %1515 = vmatpush1.bf16.msra.mxu0 0
    %1516 = vmatprep.subr.bf16.mxu0 0
    %1517 = vmatpush1.bf16.msra.mxu0 0
    %1518 = vmatprep.subr.bf16.mxu0 0
    %1519 = vmatpush1.bf16.msra.mxu0 0
    %1520 = vmatprep.subr.bf16.mxu0 0
    %1521 = vmatpush1.bf16.msra.mxu0 0
    %1522 = vmatprep.subr.bf16.mxu0 0
    %1523 = vmatpush1.bf16.msra.mxu0 0
    %1524 = vmatprep.mubr.bf16.mxu0 0
    %1525 = vmatmul.mubr.bf16.gmra.mrb[0].mxu0 %v970
    %v1526 = vpop.f32.mrb[0].mxu0
    %v1527 = vadd.f32 %v389, %v1526
    %v1528 = vpop.f32.mrb[0].mxu0
    %v1529 = vpop.f32.mrb[0].mxu0
    %v1530 = vadd.f32 %v392, %v1529
    %v1531 = vpop.f32.mrb[0].mxu0
    %1532 = vdwg.mxu0
    %v1533 = vmul.f32 %v1249, %v1054
    %v1534 = vmul.f32 %v1251, %v1057
    %v1535 = vadd.f32 %v1527, %v1533
    %v1536 = vadd.f32 %v1530, %v1534
    %v1537 = vtanh.pop %v1535
    %v1538 = vtanh.pop %v1536
    %v1539 = vsub.f32 1.0, %v1441
    %v1540 = vsub.f32 1.0, %v1443
    %v1541 = vmul.f32 %v1539, %v1537
    %v1542 = vmul.f32 %v1540, %v1538
    %v1543 = vmul.f32 %v1441, %v828
    %v1544 = vmul.f32 %v1443, %v828
    %v1545 = vadd.f32 %v1541, %v1543
    %v1546 = vadd.f32 %v1542, %v1544
    %v1547 = vpack.c.bf16 %v1546, %v1545
    %v1564 = vunpack.c.l.b16 %v808
    %v1565 = vunpack.c.l.b16 %v809
    %v1566 = vunpack.c.l.b16 %v810
    %v1567 = vunpack.c.l.b16 %v811
    %v1568 = vunpack.c.l.b16 %v812
    %v1569 = vunpack.c.l.b16 %v813
    %v1570 = vunpack.c.l.b16 %v814
    %v1571 = vunpack.c.l.b16 %v815
    %v1572 = vunpack.c.l.b16 %v816
    %v1573 = vunpack.c.l.b16 %v817
    %v1574 = vunpack.c.l.b16 %v818
    %v1575 = vunpack.c.l.b16 %v819
    %v1576 = vunpack.c.l.b16 %v820
    %v1577 = vunpack.c.l.b16 %v821
    %v1578 = vunpack.c.l.b16 %v822
    %v1579 = vunpack.c.l.b16 %v823
    %v1580 = vpack.c.b16 %v1565, %v1564
    %v1581 = vpack.c.b16 %v1567, %v1566
    %v1582 = vpack.c.b16 %v1569, %v1568
    %v1583 = vpack.c.b16 %v1571, %v1570
    %v1584 = vpack.c.b16 %v1573, %v1572
    %v1585 = vpack.c.b16 %v1575, %v1574
    %v1586 = vpack.c.b16 %v1577, %v1576
    %v1587 = vpack.c.b16 %v1579, %v1578
    %1596 = vmatprep.subr.bf16.mxu0 0
    %1597 = vmatpush1.bf16.msra.mxu0 %v1580
    %1598 = vmatprep.subr.bf16.mxu0 0
    %1599 = vmatpush1.bf16.msra.mxu0 %v1581
    %1600 = vmatprep.subr.bf16.mxu0 0
    %1601 = vmatpush1.bf16.msra.mxu0 %v1582
    %1602 = vmatprep.subr.bf16.mxu0 0
    %1603 = vmatpush1.bf16.msra.mxu0 %v1583
    %1604 = vmatprep.subr.bf16.mxu0 0
    %1605 = vmatpush1.bf16.msra.mxu0 %v1584
    %1606 = vmatprep.subr.bf16.mxu0 0
    %1607 = vmatpush1.bf16.msra.mxu0 %v1585
    %1608 = vmatprep.subr.bf16.mxu0 0
    %1609 = vmatpush1.bf16.msra.mxu0 %v1586
    %1610 = vmatprep.subr.bf16.mxu0 0
    %1611 = vmatpush1.bf16.msra.mxu0 %v1587
    %1612 = vmatprep.subr.bf16.mxu0 0
    %1613 = vmatpush1.bf16.msra.mxu0 0
    %1614 = vmatprep.subr.bf16.mxu0 0
    %1615 = vmatpush1.bf16.msra.mxu0 0
    %1616 = vmatprep.subr.bf16.mxu0 0
    %1617 = vmatpush1.bf16.msra.mxu0 0
    %1618 = vmatprep.subr.bf16.mxu0 0
    %1619 = vmatpush1.bf16.msra.mxu0 0
    %1620 = vmatprep.subr.bf16.mxu0 0
    %1621 = vmatpush1.bf16.msra.mxu0 0
    %1622 = vmatprep.subr.bf16.mxu0 0
    %1623 = vmatpush1.bf16.msra.mxu0 0
    %1624 = vmatprep.subr.bf16.mxu0 0
    %1625 = vmatpush1.bf16.msra.mxu0 0
    %1626 = vmatprep.subr.bf16.mxu0 0
    %1627 = vmatpush1.bf16.msra.mxu0 0
    %1628 = vmatprep.mubr.bf16.mxu0 0
    %1629 = vmatmul.mubr.bf16.gmra.mrb[0].mxu0 %v1547
    %v1630 = vpop.f32.mrb[0].mxu0
    %v1631 = vadd.f32 0.0, %v1630
    %v1632 = vpop.f32.mrb[0].mxu0
    %v1633 = vpop.f32.mrb[0].mxu0
    %v1634 = vadd.f32 0.0, %v1633
    %v1635 = vpop.f32.mrb[0].mxu0
    %1636 = vdwg.mxu0
    %v1637 = vpack.c.bf16 %v1634, %v1631
    %v1640 = vunpack.c.l.b16 %v202
    %v1641 = vunpack.c.l.b16 %v203
    %v1642 = vpack.c.b16 %v1641, %v1640
    %v1644 = vsel %vm925, %v1642, 0
    %1646 = vmatprep.subr.bf16.mxu0 0
    %1647 = vmatpush1.bf16.msra.mxu0 %v1637
    %1648 = vmatprep.subr.bf16.mxu0 0
    %1649 = vmatpush1.bf16.msra.mxu0 0
    %1650 = vmatprep.subr.bf16.mxu0 0
    %1651 = vmatpush1.bf16.msra.mxu0 0
    %1652 = vmatprep.subr.bf16.mxu0 0
    %1653 = vmatpush1.bf16.msra.mxu0 0
    %1654 = vmatprep.subr.bf16.mxu0 0
    %1655 = vmatpush1.bf16.msra.mxu0 0
    %1656 = vmatprep.subr.bf16.mxu0 0
    %1657 = vmatpush1.bf16.msra.mxu0 0
    %1658 = vmatprep.subr.bf16.mxu0 0
    %1659 = vmatpush1.bf16.msra.mxu0 0
    %1660 = vmatprep.subr.bf16.mxu0 0
    %1661 = vmatpush1.bf16.msra.mxu0 0
    %1662 = vmatprep.subr.bf16.mxu0 0
    %1663 = vmatpush1.bf16.msra.mxu0 0
    %1664 = vmatprep.subr.bf16.mxu0 0
    %1665 = vmatpush1.bf16.msra.mxu0 0
    %1666 = vmatprep.subr.bf16.mxu0 0
    %1667 = vmatpush1.bf16.msra.mxu0 0
    %1668 = vmatprep.subr.bf16.mxu0 0
    %1669 = vmatpush1.bf16.msra.mxu0 0
    %1670 = vmatprep.subr.bf16.mxu0 0
    %1671 = vmatpush1.bf16.msra.mxu0 0
    %1672 = vmatprep.subr.bf16.mxu0 0
    %1673 = vmatpush1.bf16.msra.mxu0 0
    %1674 = vmatprep.subr.bf16.mxu0 0
    %1675 = vmatpush1.bf16.msra.mxu0 0
    %1676 = vmatprep.subr.bf16.mxu0 0
    %1677 = vmatpush1.bf16.msra.mxu0 0
    %1678 = vmatprep.mubr.bf16.mxu0 0
    %1679 = vmatmul.mubr.bf16.gmra.mrb[0].mxu0 %v1644
    %v1680 = vpop.f32.mrb[0].mxu0
    %v1681 = vadd.f32 %v538, %v1680
    %v1682 = vpop.f32.mrb[0].mxu0
    %v1683 = vpop.f32.mrb[0].mxu0
    %v1684 = vadd.f32 %v539, %v1683
    %v1685 = vpop.f32.mrb[0].mxu0
    %1686 = vdwg.mxu0
    %v1687 = vpack.c.bf16 %v1684, %v1681
    %v1704 = vunpack.c.l.b16 %v792
    %v1705 = vunpack.c.l.b16 %v793
    %v1706 = vunpack.c.l.b16 %v794
    %v1707 = vunpack.c.l.b16 %v795
    %v1708 = vunpack.c.l.b16 %v796
    %v1709 = vunpack.c.l.b16 %v797
    %v1710 = vunpack.c.l.b16 %v798
    %v1711 = vunpack.c.l.b16 %v799
    %v1712 = vunpack.c.l.b16 %v800
    %v1713 = vunpack.c.l.b16 %v801
    %v1714 = vunpack.c.l.b16 %v802
    %v1715 = vunpack.c.l.b16 %v803
    %v1716 = vunpack.c.l.b16 %v804
    %v1717 = vunpack.c.l.b16 %v805
    %v1718 = vunpack.c.l.b16 %v806
    %v1719 = vunpack.c.l.b16 %v807
    %v1720 = vpack.c.b16 %v1705, %v1704
    %v1721 = vpack.c.b16 %v1707, %v1706
    %v1722 = vpack.c.b16 %v1709, %v1708
    %v1723 = vpack.c.b16 %v1711, %v1710
    %v1724 = vpack.c.b16 %v1713, %v1712
    %v1725 = vpack.c.b16 %v1715, %v1714
    %v1726 = vpack.c.b16 %v1717, %v1716
    %v1727 = vpack.c.b16 %v1719, %v1718
    %1736 = vmatprep.subr.bf16.mxu0 0
    %1737 = vmatpush1.bf16.msra.mxu0 %v1720
    %1738 = vmatprep.subr.bf16.mxu0 0
    %1739 = vmatpush1.bf16.msra.mxu0 %v1721
    %1740 = vmatprep.subr.bf16.mxu0 0
    %1741 = vmatpush1.bf16.msra.mxu0 %v1722
    %1742 = vmatprep.subr.bf16.mxu0 0
    %1743 = vmatpush1.bf16.msra.mxu0 %v1723
    %1744 = vmatprep.subr.bf16.mxu0 0
    %1745 = vmatpush1.bf16.msra.mxu0 %v1724
    %1746 = vmatprep.subr.bf16.mxu0 0
    %1747 = vmatpush1.bf16.msra.mxu0 %v1725
    %1748 = vmatprep.subr.bf16.mxu0 0
    %1749 = vmatpush1.bf16.msra.mxu0 %v1726
    %1750 = vmatprep.subr.bf16.mxu0 0
    %1751 = vmatpush1.bf16.msra.mxu0 %v1727
    %1752 = vmatprep.subr.bf16.mxu0 0
    %1753 = vmatpush1.bf16.msra.mxu0 0
    %1754 = vmatprep.subr.bf16.mxu0 0
    %1755 = vmatpush1.bf16.msra.mxu0 0
    %1756 = vmatprep.subr.bf16.mxu0 0
    %1757 = vmatpush1.bf16.msra.mxu0 0
    %1758 = vmatprep.subr.bf16.mxu0 0
    %1759 = vmatpush1.bf16.msra.mxu0 0
    %1760 = vmatprep.subr.bf16.mxu0 0
    %1761 = vmatpush1.bf16.msra.mxu0 0
    %1762 = vmatprep.subr.bf16.mxu0 0
    %1763 = vmatpush1.bf16.msra.mxu0 0
    %1764 = vmatprep.subr.bf16.mxu0 0
    %1765 = vmatpush1.bf16.msra.mxu0 0
    %1766 = vmatprep.subr.bf16.mxu0 0
    %1767 = vmatpush1.bf16.msra.mxu0 0
    %1768 = vmatprep.mubr.bf16.mxu0 0
    %1769 = vmatmul.mubr.bf16.gmra.mrb[0].mxu0 %v1547
    %v1770 = vpop.f32.mrb[0].mxu0
    %v1771 = vadd.f32 %v706, %v1770
    %v1772 = vpop.f32.mrb[0].mxu0
    %v1773 = vpop.f32.mrb[0].mxu0
    %v1774 = vadd.f32 %v706, %v1773
    %v1775 = vpop.f32.mrb[0].mxu0
    %1776 = vdwg.mxu0
    %v1793 = vunpack.c.l.b16 %v758
    %v1794 = vunpack.c.l.b16 %v759
    %v1795 = vunpack.c.l.b16 %v760
    %v1796 = vunpack.c.l.b16 %v761
    %v1797 = vunpack.c.l.b16 %v762
    %v1798 = vunpack.c.l.b16 %v763
    %v1799 = vunpack.c.l.b16 %v764
    %v1800 = vunpack.c.l.b16 %v765
    %v1801 = vunpack.c.l.b16 %v766
    %v1802 = vunpack.c.l.b16 %v767
    %v1803 = vunpack.c.l.b16 %v768
    %v1804 = vunpack.c.l.b16 %v769
    %v1805 = vunpack.c.l.b16 %v770
    %v1806 = vunpack.c.l.b16 %v771
    %v1807 = vunpack.c.l.b16 %v772
    %v1808 = vunpack.c.l.b16 %v773
    %v1809 = vpack.c.b16 %v1794, %v1793
    %v1810 = vpack.c.b16 %v1796, %v1795
    %v1811 = vpack.c.b16 %v1798, %v1797
    %v1812 = vpack.c.b16 %v1800, %v1799
    %v1813 = vpack.c.b16 %v1802, %v1801
    %v1814 = vpack.c.b16 %v1804, %v1803
    %v1815 = vpack.c.b16 %v1806, %v1805
    %v1816 = vpack.c.b16 %v1808, %v1807
    %1825 = vmatprep.subr.bf16.mxu0 0
    %1826 = vmatpush1.bf16.msra.mxu0 %v1809
    %1827 = vmatprep.subr.bf16.mxu0 0
    %1828 = vmatpush1.bf16.msra.mxu0 %v1810
    %1829 = vmatprep.subr.bf16.mxu0 0
    %1830 = vmatpush1.bf16.msra.mxu0 %v1811
    %1831 = vmatprep.subr.bf16.mxu0 0
    %1832 = vmatpush1.bf16.msra.mxu0 %v1812
    %1833 = vmatprep.subr.bf16.mxu0 0
    %1834 = vmatpush1.bf16.msra.mxu0 %v1813
    %1835 = vmatprep.subr.bf16.mxu0 0
    %1836 = vmatpush1.bf16.msra.mxu0 %v1814
    %1837 = vmatprep.subr.bf16.mxu0 0
    %1838 = vmatpush1.bf16.msra.mxu0 %v1815
    %1839 = vmatprep.subr.bf16.mxu0 0
    %1840 = vmatpush1.bf16.msra.mxu0 %v1816
    %1841 = vmatprep.subr.bf16.mxu0 0
    %1842 = vmatpush1.bf16.msra.mxu0 0
    %1843 = vmatprep.subr.bf16.mxu0 0
    %1844 = vmatpush1.bf16.msra.mxu0 0
    %1845 = vmatprep.subr.bf16.mxu0 0
    %1846 = vmatpush1.bf16.msra.mxu0 0
    %1847 = vmatprep.subr.bf16.mxu0 0
    %1848 = vmatpush1.bf16.msra.mxu0 0
    %1849 = vmatprep.subr.bf16.mxu0 0
    %1850 = vmatpush1.bf16.msra.mxu0 0
    %1851 = vmatprep.subr.bf16.mxu0 0
    %1852 = vmatpush1.bf16.msra.mxu0 0
    %1853 = vmatprep.subr.bf16.mxu0 0
    %1854 = vmatpush1.bf16.msra.mxu0 0
    %1855 = vmatprep.subr.bf16.mxu0 0
    %1856 = vmatpush1.bf16.msra.mxu0 0
    %1857 = vmatprep.mubr.bf16.mxu0 0
    %1858 = vmatmul.mubr.bf16.gmra.mrb[0].mxu0 %v1547
    %v1859 = vpop.f32.mrb[0].mxu0
    %v1860 = vadd.f32 0.0, %v1859
    %v1861 = vpop.f32.mrb[0].mxu0
    %v1862 = vpop.f32.mrb[0].mxu0
    %v1863 = vadd.f32 0.0, %v1862
    %v1864 = vpop.f32.mrb[0].mxu0
    %1865 = vdwg.mxu0
    %v1882 = vunpack.c.l.b16 %v708
    %v1883 = vunpack.c.l.b16 %v709
    %v1884 = vunpack.c.l.b16 %v710
    %v1885 = vunpack.c.l.b16 %v711
    %v1886 = vunpack.c.l.b16 %v712
    %v1887 = vunpack.c.l.b16 %v713
    %v1888 = vunpack.c.l.b16 %v714
    %v1889 = vunpack.c.l.b16 %v715
    %v1890 = vunpack.c.l.b16 %v716
    %v1891 = vunpack.c.l.b16 %v717
    %v1892 = vunpack.c.l.b16 %v718
    %v1893 = vunpack.c.l.b16 %v719
    %v1894 = vunpack.c.l.b16 %v720
    %v1895 = vunpack.c.l.b16 %v721
    %v1896 = vunpack.c.l.b16 %v722
    %v1897 = vunpack.c.l.b16 %v723
    %v1898 = vpack.c.b16 %v1883, %v1882
    %v1899 = vpack.c.b16 %v1885, %v1884
    %v1900 = vpack.c.b16 %v1887, %v1886
    %v1901 = vpack.c.b16 %v1889, %v1888
    %v1902 = vpack.c.b16 %v1891, %v1890
    %v1903 = vpack.c.b16 %v1893, %v1892
    %v1904 = vpack.c.b16 %v1895, %v1894
    %v1905 = vpack.c.b16 %v1897, %v1896
    %1914 = vmatprep.subr.bf16.mxu0 0
    %1915 = vmatpush1.bf16.msra.mxu0 %v1898
    %1916 = vmatprep.subr.bf16.mxu0 0
    %1917 = vmatpush1.bf16.msra.mxu0 %v1899
    %1918 = vmatprep.subr.bf16.mxu0 0
    %1919 = vmatpush1.bf16.msra.mxu0 %v1900
    %1920 = vmatprep.subr.bf16.mxu0 0
    %1921 = vmatpush1.bf16.msra.mxu0 %v1901
    %1922 = vmatprep.subr.bf16.mxu0 0
    %1923 = vmatpush1.bf16.msra.mxu0 %v1902
    %1924 = vmatprep.subr.bf16.mxu0 0
    %1925 = vmatpush1.bf16.msra.mxu0 %v1903
    %1926 = vmatprep.subr.bf16.mxu0 0
    %1927 = vmatpush1.bf16.msra.mxu0 %v1904
    %1928 = vmatprep.subr.bf16.mxu0 0
    %1929 = vmatpush1.bf16.msra.mxu0 %v1905
    %1930 = vmatprep.subr.bf16.mxu0 0
    %1931 = vmatpush1.bf16.msra.mxu0 0
    %1932 = vmatprep.subr.bf16.mxu0 0
    %1933 = vmatpush1.bf16.msra.mxu0 0
    %1934 = vmatprep.subr.bf16.mxu0 0
    %1935 = vmatpush1.bf16.msra.mxu0 0
    %1936 = vmatprep.subr.bf16.mxu0 0
    %1937 = vmatpush1.bf16.msra.mxu0 0
    %1938 = vmatprep.subr.bf16.mxu0 0
    %1939 = vmatpush1.bf16.msra.mxu0 0
    %1940 = vmatprep.subr.bf16.mxu0 0
    %1941 = vmatpush1.bf16.msra.mxu0 0
    %1942 = vmatprep.subr.bf16.mxu0 0
    %1943 = vmatpush1.bf16.msra.mxu0 0
    %1944 = vmatprep.subr.bf16.mxu0 0
    %1945 = vmatpush1.bf16.msra.mxu0 0
    %1946 = vmatprep.mubr.bf16.mxu0 0
    %1947 = vmatmul.mubr.bf16.gmra.mrb[0].mxu0 %v1687
    %v1948 = vpop.f32.mrb[0].mxu0
    %v1949 = vadd.f32 %v1860, %v1948
    %v1950 = vpop.f32.mrb[0].mxu0
    %v1951 = vpop.f32.mrb[0].mxu0
    %v1952 = vadd.f32 %v1863, %v1951
    %v1953 = vpop.f32.mrb[0].mxu0
    %1954 = vdwg.mxu0
    %v1955 = vadd.f32 %v1949, %v586
    %v1956 = vadd.f32 %v1952, %v589
    %v1957 = vsub.f32 0.0, %v1955
    %v1958 = vsub.f32 0.0, %v1956
    %v1959 = vmul.f32 %v1957, 1.442695
    %v1960 = vpow.pop %v1959
    %v1961 = vmul.f32 %v1958, 1.442695
    %v1962 = vpow.pop %v1961
    %v1963 = vadd.f32 %v1960, 1.0
    %v1964 = vadd.f32 %v1962, 1.0
    %v1965 = vrcp.pop %v1963
    %v1966 = vmul.f32 1.0, %v1965
    %v1967 = vrcp.pop %v1964
    %v1968 = vmul.f32 1.0, %v1967
    %v1985 = vunpack.c.l.b16 %v775
    %v1986 = vunpack.c.l.b16 %v776
    %v1987 = vunpack.c.l.b16 %v777
    %v1988 = vunpack.c.l.b16 %v778
    %v1989 = vunpack.c.l.b16 %v779
    %v1990 = vunpack.c.l.b16 %v780
    %v1991 = vunpack.c.l.b16 %v781
    %v1992 = vunpack.c.l.b16 %v782
    %v1993 = vunpack.c.l.b16 %v783
    %v1994 = vunpack.c.l.b16 %v784
    %v1995 = vunpack.c.l.b16 %v785
    %v1996 = vunpack.c.l.b16 %v786
    %v1997 = vunpack.c.l.b16 %v787
    %v1998 = vunpack.c.l.b16 %v788
    %v1999 = vunpack.c.l.b16 %v789
    %v2000 = vunpack.c.l.b16 %v790
    %v2001 = vpack.c.b16 %v1986, %v1985
    %v2002 = vpack.c.b16 %v1988, %v1987
    %v2003 = vpack.c.b16 %v1990, %v1989
    %v2004 = vpack.c.b16 %v1992, %v1991
    %v2005 = vpack.c.b16 %v1994, %v1993
    %v2006 = vpack.c.b16 %v1996, %v1995
    %v2007 = vpack.c.b16 %v1998, %v1997
    %v2008 = vpack.c.b16 %v2000, %v1999
    %2017 = vmatprep.subr.bf16.mxu0 0
    %2018 = vmatpush1.bf16.msra.mxu0 %v2001
    %2019 = vmatprep.subr.bf16.mxu0 0
    %2020 = vmatpush1.bf16.msra.mxu0 %v2002
    %2021 = vmatprep.subr.bf16.mxu0 0
    %2022 = vmatpush1.bf16.msra.mxu0 %v2003
    %2023 = vmatprep.subr.bf16.mxu0 0
    %2024 = vmatpush1.bf16.msra.mxu0 %v2004
    %2025 = vmatprep.subr.bf16.mxu0 0
    %2026 = vmatpush1.bf16.msra.mxu0 %v2005
    %2027 = vmatprep.subr.bf16.mxu0 0
    %2028 = vmatpush1.bf16.msra.mxu0 %v2006
    %2029 = vmatprep.subr.bf16.mxu0 0
    %2030 = vmatpush1.bf16.msra.mxu0 %v2007
    %2031 = vmatprep.subr.bf16.mxu0 0
    %2032 = vmatpush1.bf16.msra.mxu0 %v2008
    %2033 = vmatprep.subr.bf16.mxu0 0
    %2034 = vmatpush1.bf16.msra.mxu0 0
    %2035 = vmatprep.subr.bf16.mxu0 0
    %2036 = vmatpush1.bf16.msra.mxu0 0
    %2037 = vmatprep.subr.bf16.mxu0 0
    %2038 = vmatpush1.bf16.msra.mxu0 0
    %2039 = vmatprep.subr.bf16.mxu0 0
    %2040 = vmatpush1.bf16.msra.mxu0 0
    %2041 = vmatprep.subr.bf16.mxu0 0
    %2042 = vmatpush1.bf16.msra.mxu0 0
    %2043 = vmatprep.subr.bf16.mxu0 0
    %2044 = vmatpush1.bf16.msra.mxu0 0
    %2045 = vmatprep.subr.bf16.mxu0 0
    %2046 = vmatpush1.bf16.msra.mxu0 0
    %2047 = vmatprep.subr.bf16.mxu0 0
    %2048 = vmatpush1.bf16.msra.mxu0 0
    %2049 = vmatprep.mubr.bf16.mxu0 0
    %2050 = vmatmul.mubr.bf16.gmra.mrb[0].mxu0 %v1547
    %v2051 = vpop.f32.mrb[0].mxu0
    %v2052 = vadd.f32 0.0, %v2051
    %v2053 = vpop.f32.mrb[0].mxu0
    %v2054 = vpop.f32.mrb[0].mxu0
    %v2055 = vadd.f32 0.0, %v2054
    %v2056 = vpop.f32.mrb[0].mxu0
    %2057 = vdwg.mxu0
    %v2074 = vunpack.c.l.b16 %v725
    %v2075 = vunpack.c.l.b16 %v726
    %v2076 = vunpack.c.l.b16 %v727
    %v2077 = vunpack.c.l.b16 %v728
    %v2078 = vunpack.c.l.b16 %v729
    %v2079 = vunpack.c.l.b16 %v730
    %v2080 = vunpack.c.l.b16 %v731
    %v2081 = vunpack.c.l.b16 %v732
    %v2082 = vunpack.c.l.b16 %v733
    %v2083 = vunpack.c.l.b16 %v734
    %v2084 = vunpack.c.l.b16 %v735
    %v2085 = vunpack.c.l.b16 %v736
    %v2086 = vunpack.c.l.b16 %v737
    %v2087 = vunpack.c.l.b16 %v738
    %v2088 = vunpack.c.l.b16 %v739
    %v2089 = vunpack.c.l.b16 %v740
    %v2090 = vpack.c.b16 %v2075, %v2074
    %v2091 = vpack.c.b16 %v2077, %v2076
    %v2092 = vpack.c.b16 %v2079, %v2078
    %v2093 = vpack.c.b16 %v2081, %v2080
    %v2094 = vpack.c.b16 %v2083, %v2082
    %v2095 = vpack.c.b16 %v2085, %v2084
    %v2096 = vpack.c.b16 %v2087, %v2086
    %v2097 = vpack.c.b16 %v2089, %v2088
    %2106 = vmatprep.subr.bf16.mxu0 0
    %2107 = vmatpush1.bf16.msra.mxu0 %v2090
    %2108 = vmatprep.subr.bf16.mxu0 0
    %2109 = vmatpush1.bf16.msra.mxu0 %v2091
    %2110 = vmatprep.subr.bf16.mxu0 0
    %2111 = vmatpush1.bf16.msra.mxu0 %v2092
    %2112 = vmatprep.subr.bf16.mxu0 0
    %2113 = vmatpush1.bf16.msra.mxu0 %v2093
    %2114 = vmatprep.subr.bf16.mxu0 0
    %2115 = vmatpush1.bf16.msra.mxu0 %v2094
    %2116 = vmatprep.subr.bf16.mxu0 0
    %2117 = vmatpush1.bf16.msra.mxu0 %v2095
    %2118 = vmatprep.subr.bf16.mxu0 0
    %2119 = vmatpush1.bf16.msra.mxu0 %v2096
    %2120 = vmatprep.subr.bf16.mxu0 0
    %2121 = vmatpush1.bf16.msra.mxu0 %v2097
    %2122 = vmatprep.subr.bf16.mxu0 0
    %2123 = vmatpush1.bf16.msra.mxu0 0
    %2124 = vmatprep.subr.bf16.mxu0 0
    %2125 = vmatpush1.bf16.msra.mxu0 0
    %2126 = vmatprep.subr.bf16.mxu0 0
    %2127 = vmatpush1.bf16.msra.mxu0 0
    %2128 = vmatprep.subr.bf16.mxu0 0
    %2129 = vmatpush1.bf16.msra.mxu0 0
    %2130 = vmatprep.subr.bf16.mxu0 0
    %2131 = vmatpush1.bf16.msra.mxu0 0
    %2132 = vmatprep.subr.bf16.mxu0 0
    %2133 = vmatpush1.bf16.msra.mxu0 0
    %2134 = vmatprep.subr.bf16.mxu0 0
    %2135 = vmatpush1.bf16.msra.mxu0 0
    %2136 = vmatprep.subr.bf16.mxu0 0
    %2137 = vmatpush1.bf16.msra.mxu0 0
    %2138 = vmatprep.mubr.bf16.mxu0 0
    %2139 = vmatmul.mubr.bf16.gmra.mrb[0].mxu0 %v1687
    %v2140 = vpop.f32.mrb[0].mxu0
    %v2141 = vadd.f32 %v2052, %v2140
    %v2142 = vpop.f32.mrb[0].mxu0
    %v2143 = vpop.f32.mrb[0].mxu0
    %v2144 = vadd.f32 %v2055, %v2143
    %v2145 = vpop.f32.mrb[0].mxu0
    %2146 = vdwg.mxu0
    %v2147 = vadd.f32 %v2141, %v640
    %v2148 = vadd.f32 %v2144, %v643
    %v2149 = vsub.f32 0.0, %v2147
    %v2150 = vsub.f32 0.0, %v2148
    %v2151 = vmul.f32 %v2149, 1.442695
    %v2152 = vpow.pop %v2151
    %v2153 = vmul.f32 %v2150, 1.442695
    %v2154 = vpow.pop %v2153
    %v2155 = vadd.f32 %v2152, 1.0
    %v2156 = vadd.f32 %v2154, 1.0
    %v2157 = vrcp.pop %v2155
    %v2158 = vmul.f32 1.0, %v2157
    %v2159 = vrcp.pop %v2156
    %v2160 = vmul.f32 1.0, %v2159
    %v2177 = vunpack.c.l.b16 %v742
    %v2178 = vunpack.c.l.b16 %v743
    %v2179 = vunpack.c.l.b16 %v744
    %v2180 = vunpack.c.l.b16 %v745
    %v2181 = vunpack.c.l.b16 %v746
    %v2182 = vunpack.c.l.b16 %v747
    %v2183 = vunpack.c.l.b16 %v748
    %v2184 = vunpack.c.l.b16 %v749
    %v2185 = vunpack.c.l.b16 %v750
    %v2186 = vunpack.c.l.b16 %v751
    %v2187 = vunpack.c.l.b16 %v752
    %v2188 = vunpack.c.l.b16 %v753
    %v2189 = vunpack.c.l.b16 %v754
    %v2190 = vunpack.c.l.b16 %v755
    %v2191 = vunpack.c.l.b16 %v756
    %v2192 = vunpack.c.l.b16 %v757
    %v2193 = vpack.c.b16 %v2178, %v2177
    %v2194 = vpack.c.b16 %v2180, %v2179
    %v2195 = vpack.c.b16 %v2182, %v2181
    %v2196 = vpack.c.b16 %v2184, %v2183
    %v2197 = vpack.c.b16 %v2186, %v2185
    %v2198 = vpack.c.b16 %v2188, %v2187
    %v2199 = vpack.c.b16 %v2190, %v2189
    %v2200 = vpack.c.b16 %v2192, %v2191
    %2209 = vmatprep.subr.bf16.mxu0 0
    %2210 = vmatpush1.bf16.msra.mxu0 %v2193
    %2211 = vmatprep.subr.bf16.mxu0 0
    %2212 = vmatpush1.bf16.msra.mxu0 %v2194
    %2213 = vmatprep.subr.bf16.mxu0 0
    %2214 = vmatpush1.bf16.msra.mxu0 %v2195
    %2215 = vmatprep.subr.bf16.mxu0 0
    %2216 = vmatpush1.bf16.msra.mxu0 %v2196
    %2217 = vmatprep.subr.bf16.mxu0 0
    %2218 = vmatpush1.bf16.msra.mxu0 %v2197
    %2219 = vmatprep.subr.bf16.mxu0 0
    %2220 = vmatpush1.bf16.msra.mxu0 %v2198
    %2221 = vmatprep.subr.bf16.mxu0 0
    %2222 = vmatpush1.bf16.msra.mxu0 %v2199
    %2223 = vmatprep.subr.bf16.mxu0 0
    %2224 = vmatpush1.bf16.msra.mxu0 %v2200
    %2225 = vmatprep.subr.bf16.mxu0 0
    %2226 = vmatpush1.bf16.msra.mxu0 0
    %2227 = vmatprep.subr.bf16.mxu0 0
    %2228 = vmatpush1.bf16.msra.mxu0 0
    %2229 = vmatprep.subr.bf16.mxu0 0
    %2230 = vmatpush1.bf16.msra.mxu0 0
    %2231 = vmatprep.subr.bf16.mxu0 0
    %2232 = vmatpush1.bf16.msra.mxu0 0
    %2233 = vmatprep.subr.bf16.mxu0 0
    %2234 = vmatpush1.bf16.msra.mxu0 0
    %2235 = vmatprep.subr.bf16.mxu0 0
    %2236 = vmatpush1.bf16.msra.mxu0 0
    %2237 = vmatprep.subr.bf16.mxu0 0
    %2238 = vmatpush1.bf16.msra.mxu0 0
    %2239 = vmatprep.subr.bf16.mxu0 0
    %2240 = vmatpush1.bf16.msra.mxu0 0
    %2241 = vmatprep.mubr.bf16.mxu0 0
    %2242 = vmatmul.mubr.bf16.gmra.mrb[0].mxu0 %v1687
    %v2243 = vpop.f32.mrb[0].mxu0
    %v2244 = vadd.f32 %v694, %v2243
    %v2245 = vpop.f32.mrb[0].mxu0
    %v2246 = vpop.f32.mrb[0].mxu0
    %v2247 = vadd.f32 %v697, %v2246
    %v2248 = vpop.f32.mrb[0].mxu0
    %2249 = vdwg.mxu0
    %v2250 = vmul.f32 %v1966, %v1771
    %v2251 = vmul.f32 %v1968, %v1774
    %v2252 = vadd.f32 %v2244, %v2250
    %v2253 = vadd.f32 %v2247, %v2251
    %v2254 = vtanh.pop %v2252
    %v2255 = vtanh.pop %v2253
    %v2256 = vsub.f32 1.0, %v2158
    %v2257 = vsub.f32 1.0, %v2160
    %v2258 = vmul.f32 %v2256, %v2254
    %v2259 = vmul.f32 %v2257, %v2255
    %v2260 = vmul.f32 %v2158, %v1545
    %v2261 = vmul.f32 %v2160, %v1546
    %v2262 = vadd.f32 %v2258, %v2260
    %v2263 = vadd.f32 %v2259, %v2261
    %v2264 = vpack.c.bf16 %v2263, %v2262
    %2265 = vmatprep.subr.bf16.mxu0 0
    %2266 = vmatpush1.bf16.msra.mxu0 %v862
    %2267 = vmatprep.subr.bf16.mxu0 0
    %2268 = vmatpush1.bf16.msra.mxu0 %v863
    %2269 = vmatprep.subr.bf16.mxu0 0
    %2270 = vmatpush1.bf16.msra.mxu0 %v864
    %2271 = vmatprep.subr.bf16.mxu0 0
    %2272 = vmatpush1.bf16.msra.mxu0 %v865
    %2273 = vmatprep.subr.bf16.mxu0 0
    %2274 = vmatpush1.bf16.msra.mxu0 %v866
    %2275 = vmatprep.subr.bf16.mxu0 0
    %2276 = vmatpush1.bf16.msra.mxu0 %v867
    %2277 = vmatprep.subr.bf16.mxu0 0
    %2278 = vmatpush1.bf16.msra.mxu0 %v868
    %2279 = vmatprep.subr.bf16.mxu0 0
    %2280 = vmatpush1.bf16.msra.mxu0 %v869
    %2281 = vmatprep.subr.bf16.mxu0 0
    %2282 = vmatpush1.bf16.msra.mxu0 0
    %2283 = vmatprep.subr.bf16.mxu0 0
    %2284 = vmatpush1.bf16.msra.mxu0 0
    %2285 = vmatprep.subr.bf16.mxu0 0
    %2286 = vmatpush1.bf16.msra.mxu0 0
    %2287 = vmatprep.subr.bf16.mxu0 0
    %2288 = vmatpush1.bf16.msra.mxu0 0
    %2289 = vmatprep.subr.bf16.mxu0 0
    %2290 = vmatpush1.bf16.msra.mxu0 0
    %2291 = vmatprep.subr.bf16.mxu0 0
    %2292 = vmatpush1.bf16.msra.mxu0 0
    %2293 = vmatprep.subr.bf16.mxu0 0
    %2294 = vmatpush1.bf16.msra.mxu0 0
    %2295 = vmatprep.subr.bf16.mxu0 0
    %2296 = vmatpush1.bf16.msra.mxu0 0
    %2297 = vmatprep.mubr.bf16.mxu0 0
    %2298 = vmatmul.mubr.bf16.gmra.mrb[0].mxu0 %v2264
    %v2299 = vpop.f32.mrb[0].mxu0
    %v2300 = vadd.f32 0.0, %v2299
    %v2301 = vpop.f32.mrb[0].mxu0
    %v2302 = vpop.f32.mrb[0].mxu0
    %v2303 = vadd.f32 0.0, %v2302
    %v2304 = vpop.f32.mrb[0].mxu0
    %2305 = vdwg.mxu0
    %v2306 = vpack.c.bf16 %v2303, %v2300
    %2307 = vmatprep.subr.bf16.mxu0 0
    %2308 = vmatpush1.bf16.msra.mxu0 %v2306
    %2309 = vmatprep.subr.bf16.mxu0 0
    %2310 = vmatpush1.bf16.msra.mxu0 0
    %2311 = vmatprep.subr.bf16.mxu0 0
    %2312 = vmatpush1.bf16.msra.mxu0 0
    %2313 = vmatprep.subr.bf16.mxu0 0
    %2314 = vmatpush1.bf16.msra.mxu0 0
    %2315 = vmatprep.subr.bf16.mxu0 0
    %2316 = vmatpush1.bf16.msra.mxu0 0
    %2317 = vmatprep.subr.bf16.mxu0 0
    %2318 = vmatpush1.bf16.msra.mxu0 0
    %2319 = vmatprep.subr.bf16.mxu0 0
    %2320 = vmatpush1.bf16.msra.mxu0 0
    %2321 = vmatprep.subr.bf16.mxu0 0
    %2322 = vmatpush1.bf16.msra.mxu0 0
    %2323 = vmatprep.subr.bf16.mxu0 0
    %2324 = vmatpush1.bf16.msra.mxu0 0
    %2325 = vmatprep.subr.bf16.mxu0 0
    %2326 = vmatpush1.bf16.msra.mxu0 0
    %2327 = vmatprep.subr.bf16.mxu0 0
    %2328 = vmatpush1.bf16.msra.mxu0 0
    %2329 = vmatprep.subr.bf16.mxu0 0
    %2330 = vmatpush1.bf16.msra.mxu0 0
    %2331 = vmatprep.subr.bf16.mxu0 0
    %2332 = vmatpush1.bf16.msra.mxu0 0
    %2333 = vmatprep.subr.bf16.mxu0 0
    %2334 = vmatpush1.bf16.msra.mxu0 0
    %2335 = vmatprep.subr.bf16.mxu0 0
    %2336 = vmatpush1.bf16.msra.mxu0 0
    %2337 = vmatprep.subr.bf16.mxu0 0
    %2338 = vmatpush1.bf16.msra.mxu0 0
    %2339 = vmatprep.mubr.bf16.mxu0 0
    %2340 = vmatmul.mubr.bf16.gmra.mrb[0].mxu0 %v927
    %v2341 = vpop.f32.mrb[0].mxu0
    %v2342 = vadd.f32 %v223, %v2341
    %v2343 = vpop.f32.mrb[0].mxu0
    %v2344 = vpop.f32.mrb[0].mxu0
    %v2345 = vadd.f32 %v224, %v2344
    %v2346 = vpop.f32.mrb[0].mxu0
    %2347 = vdwg.mxu0
    %v2348 = vpack.c.bf16 %v2345, %v2342
    %2349 = vmatprep.subr.bf16.mxu0 0
    %2350 = vmatpush1.bf16.msra.mxu0 %v1003
    %2351 = vmatprep.subr.bf16.mxu0 0
    %2352 = vmatpush1.bf16.msra.mxu0 %v1004
    %2353 = vmatprep.subr.bf16.mxu0 0
    %2354 = vmatpush1.bf16.msra.mxu0 %v1005
    %2355 = vmatprep.subr.bf16.mxu0 0
    %2356 = vmatpush1.bf16.msra.mxu0 %v1006
    %2357 = vmatprep.subr.bf16.mxu0 0
    %2358 = vmatpush1.bf16.msra.mxu0 %v1007
    %2359 = vmatprep.subr.bf16.mxu0 0
    %2360 = vmatpush1.bf16.msra.mxu0 %v1008
    %2361 = vmatprep.subr.bf16.mxu0 0
    %2362 = vmatpush1.bf16.msra.mxu0 %v1009
    %2363 = vmatprep.subr.bf16.mxu0 0
    %2364 = vmatpush1.bf16.msra.mxu0 %v1010
    %2365 = vmatprep.subr.bf16.mxu0 0
    %2366 = vmatpush1.bf16.msra.mxu0 0
    %2367 = vmatprep.subr.bf16.mxu0 0
    %2368 = vmatpush1.bf16.msra.mxu0 0
    %2369 = vmatprep.subr.bf16.mxu0 0
    %2370 = vmatpush1.bf16.msra.mxu0 0
    %2371 = vmatprep.subr.bf16.mxu0 0
    %2372 = vmatpush1.bf16.msra.mxu0 0
    %2373 = vmatprep.subr.bf16.mxu0 0
    %2374 = vmatpush1.bf16.msra.mxu0 0
    %2375 = vmatprep.subr.bf16.mxu0 0
    %2376 = vmatpush1.bf16.msra.mxu0 0
    %2377 = vmatprep.subr.bf16.mxu0 0
    %2378 = vmatpush1.bf16.msra.mxu0 0
    %2379 = vmatprep.subr.bf16.mxu0 0
    %2380 = vmatpush1.bf16.msra.mxu0 0
    %2381 = vmatprep.mubr.bf16.mxu0 0
    %2382 = vmatmul.mubr.bf16.gmra.mrb[0].mxu0 %v2264
    %v2383 = vpop.f32.mrb[0].mxu0
    %v2384 = vadd.f32 %v401, %v2383
    %v2385 = vpop.f32.mrb[0].mxu0
    %v2386 = vpop.f32.mrb[0].mxu0
    %v2387 = vadd.f32 %v401, %v2386
    %v2388 = vpop.f32.mrb[0].mxu0
    %2389 = vdwg.mxu0
    %2390 = vmatprep.subr.bf16.mxu0 0
    %2391 = vmatpush1.bf16.msra.mxu0 %v1092
    %2392 = vmatprep.subr.bf16.mxu0 0
    %2393 = vmatpush1.bf16.msra.mxu0 %v1093
    %2394 = vmatprep.subr.bf16.mxu0 0
    %2395 = vmatpush1.bf16.msra.mxu0 %v1094
    %2396 = vmatprep.subr.bf16.mxu0 0
    %2397 = vmatpush1.bf16.msra.mxu0 %v1095
    %2398 = vmatprep.subr.bf16.mxu0 0
    %2399 = vmatpush1.bf16.msra.mxu0 %v1096
    %2400 = vmatprep.subr.bf16.mxu0 0
    %2401 = vmatpush1.bf16.msra.mxu0 %v1097
    %2402 = vmatprep.subr.bf16.mxu0 0
    %2403 = vmatpush1.bf16.msra.mxu0 %v1098
    %2404 = vmatprep.subr.bf16.mxu0 0
    %2405 = vmatpush1.bf16.msra.mxu0 %v1099
    %2406 = vmatprep.subr.bf16.mxu0 0
    %2407 = vmatpush1.bf16.msra.mxu0 0
    %2408 = vmatprep.subr.bf16.mxu0 0
    %2409 = vmatpush1.bf16.msra.mxu0 0
    %2410 = vmatprep.subr.bf16.mxu0 0
    %2411 = vmatpush1.bf16.msra.mxu0 0
    %2412 = vmatprep.subr.bf16.mxu0 0
    %2413 = vmatpush1.bf16.msra.mxu0 0
    %2414 = vmatprep.subr.bf16.mxu0 0
    %2415 = vmatpush1.bf16.msra.mxu0 0
    %2416 = vmatprep.subr.bf16.mxu0 0
    %2417 = vmatpush1.bf16.msra.mxu0 0
    %2418 = vmatprep.subr.bf16.mxu0 0
    %2419 = vmatpush1.bf16.msra.mxu0 0
    %2420 = vmatprep.subr.bf16.mxu0 0
    %2421 = vmatpush1.bf16.msra.mxu0 0
    %2422 = vmatprep.mubr.bf16.mxu0 0
    %2423 = vmatmul.mubr.bf16.gmra.mrb[0].mxu0 %v2264
    %v2424 = vpop.f32.mrb[0].mxu0
    %v2425 = vadd.f32 0.0, %v2424
    %v2426 = vpop.f32.mrb[0].mxu0
    %v2427 = vpop.f32.mrb[0].mxu0
    %v2428 = vadd.f32 0.0, %v2427
    %v2429 = vpop.f32.mrb[0].mxu0
    %2430 = vdwg.mxu0
    %2431 = vmatprep.subr.bf16.mxu0 0
    %2432 = vmatpush1.bf16.msra.mxu0 %v1181
    %2433 = vmatprep.subr.bf16.mxu0 0
    %2434 = vmatpush1.bf16.msra.mxu0 %v1182
    %2435 = vmatprep.subr.bf16.mxu0 0
    %2436 = vmatpush1.bf16.msra.mxu0 %v1183
    %2437 = vmatprep.subr.bf16.mxu0 0
    %2438 = vmatpush1.bf16.msra.mxu0 %v1184
    %2439 = vmatprep.subr.bf16.mxu0 0
    %2440 = vmatpush1.bf16.msra.mxu0 %v1185
    %2441 = vmatprep.subr.bf16.mxu0 0
    %2442 = vmatpush1.bf16.msra.mxu0 %v1186
    %2443 = vmatprep.subr.bf16.mxu0 0
    %2444 = vmatpush1.bf16.msra.mxu0 %v1187
    %2445 = vmatprep.subr.bf16.mxu0 0
    %2446 = vmatpush1.bf16.msra.mxu0 %v1188
    %2447 = vmatprep.subr.bf16.mxu0 0
    %2448 = vmatpush1.bf16.msra.mxu0 0
    %2449 = vmatprep.subr.bf16.mxu0 0
    %2450 = vmatpush1.bf16.msra.mxu0 0
    %2451 = vmatprep.subr.bf16.mxu0 0
    %2452 = vmatpush1.bf16.msra.mxu0 0
    %2453 = vmatprep.subr.bf16.mxu0 0
    %2454 = vmatpush1.bf16.msra.mxu0 0
    %2455 = vmatprep.subr.bf16.mxu0 0
    %2456 = vmatpush1.bf16.msra.mxu0 0
    %2457 = vmatprep.subr.bf16.mxu0 0
    %2458 = vmatpush1.bf16.msra.mxu0 0
    %2459 = vmatprep.subr.bf16.mxu0 0
    %2460 = vmatpush1.bf16.msra.mxu0 0
    %2461 = vmatprep.subr.bf16.mxu0 0
    %2462 = vmatpush1.bf16.msra.mxu0 0
    %2463 = vmatprep.mubr.bf16.mxu0 0
    %2464 = vmatmul.mubr.bf16.gmra.mrb[0].mxu0 %v2348
    %v2465 = vpop.f32.mrb[0].mxu0
    %v2466 = vadd.f32 %v2425, %v2465
    %v2467 = vpop.f32.mrb[0].mxu0
    %v2468 = vpop.f32.mrb[0].mxu0
    %v2469 = vadd.f32 %v2428, %v2468
    %v2470 = vpop.f32.mrb[0].mxu0
    %2471 = vdwg.mxu0
    %v2472 = vadd.f32 %v2466, %v281
    %v2473 = vadd.f32 %v2469, %v284
    %v2474 = vsub.f32 0.0, %v2472
    %v2475 = vsub.f32 0.0, %v2473
    %v2476 = vmul.f32 %v2474, 1.442695
    %v2477 = vpow.pop %v2476
    %v2478 = vmul.f32 %v2475, 1.442695
    %v2479 = vpow.pop %v2478
    %v2480 = vadd.f32 %v2477, 1.0
    %v2481 = vadd.f32 %v2479, 1.0
    %v2482 = vrcp.pop %v2480
    %v2483 = vmul.f32 1.0, %v2482
    %v2484 = vrcp.pop %v2481
    %v2485 = vmul.f32 1.0, %v2484
    %2486 = vmatprep.subr.bf16.mxu0 0
    %2487 = vmatpush1.bf16.msra.mxu0 %v1284
    %2488 = vmatprep.subr.bf16.mxu0 0
    %2489 = vmatpush1.bf16.msra.mxu0 %v1285
    %2490 = vmatprep.subr.bf16.mxu0 0
    %2491 = vmatpush1.bf16.msra.mxu0 %v1286
    %2492 = vmatprep.subr.bf16.mxu0 0
    %2493 = vmatpush1.bf16.msra.mxu0 %v1287
    %2494 = vmatprep.subr.bf16.mxu0 0
    %2495 = vmatpush1.bf16.msra.mxu0 %v1288
    %2496 = vmatprep.subr.bf16.mxu0 0
    %2497 = vmatpush1.bf16.msra.mxu0 %v1289
    %2498 = vmatprep.subr.bf16.mxu0 0
    %2499 = vmatpush1.bf16.msra.mxu0 %v1290
    %2500 = vmatprep.subr.bf16.mxu0 0
    %2501 = vmatpush1.bf16.msra.mxu0 %v1291
    %2502 = vmatprep.subr.bf16.mxu0 0
    %2503 = vmatpush1.bf16.msra.mxu0 0
    %2504 = vmatprep.subr.bf16.mxu0 0
    %2505 = vmatpush1.bf16.msra.mxu0 0
    %2506 = vmatprep.subr.bf16.mxu0 0
    %2507 = vmatpush1.bf16.msra.mxu0 0
    %2508 = vmatprep.subr.bf16.mxu0 0
    %2509 = vmatpush1.bf16.msra.mxu0 0
    %2510 = vmatprep.subr.bf16.mxu0 0
    %2511 = vmatpush1.bf16.msra.mxu0 0
    %2512 = vmatprep.subr.bf16.mxu0 0
    %2513 = vmatpush1.bf16.msra.mxu0 0
    %2514 = vmatprep.subr.bf16.mxu0 0
    %2515 = vmatpush1.bf16.msra.mxu0 0
    %2516 = vmatprep.subr.bf16.mxu0 0
    %2517 = vmatpush1.bf16.msra.mxu0 0
    %2518 = vmatprep.mubr.bf16.mxu0 0
    %2519 = vmatmul.mubr.bf16.gmra.mrb[0].mxu0 %v2264
    %v2520 = vpop.f32.mrb[0].mxu0
    %v2521 = vadd.f32 0.0, %v2520
    %v2522 = vpop.f32.mrb[0].mxu0
    %v2523 = vpop.f32.mrb[0].mxu0
    %v2524 = vadd.f32 0.0, %v2523
    %v2525 = vpop.f32.mrb[0].mxu0
    %2526 = vdwg.mxu0
    %2527 = vmatprep.subr.bf16.mxu0 0
    %2528 = vmatpush1.bf16.msra.mxu0 %v1373
    %2529 = vmatprep.subr.bf16.mxu0 0
    %2530 = vmatpush1.bf16.msra.mxu0 %v1374
    %2531 = vmatprep.subr.bf16.mxu0 0
    %2532 = vmatpush1.bf16.msra.mxu0 %v1375
    %2533 = vmatprep.subr.bf16.mxu0 0
    %2534 = vmatpush1.bf16.msra.mxu0 %v1376
    %2535 = vmatprep.subr.bf16.mxu0 0
    %2536 = vmatpush1.bf16.msra.mxu0 %v1377
    %2537 = vmatprep.subr.bf16.mxu0 0
    %2538 = vmatpush1.bf16.msra.mxu0 %v1378
    %2539 = vmatprep.subr.bf16.mxu0 0
    %2540 = vmatpush1.bf16.msra.mxu0 %v1379
    %2541 = vmatprep.subr.bf16.mxu0 0
    %2542 = vmatpush1.bf16.msra.mxu0 %v1380
    %2543 = vmatprep.subr.bf16.mxu0 0
    %2544 = vmatpush1.bf16.msra.mxu0 0
    %2545 = vmatprep.subr.bf16.mxu0 0
    %2546 = vmatpush1.bf16.msra.mxu0 0
    %2547 = vmatprep.subr.bf16.mxu0 0
    %2548 = vmatpush1.bf16.msra.mxu0 0
    %2549 = vmatprep.subr.bf16.mxu0 0
    %2550 = vmatpush1.bf16.msra.mxu0 0
    %2551 = vmatprep.subr.bf16.mxu0 0
    %2552 = vmatpush1.bf16.msra.mxu0 0
    %2553 = vmatprep.subr.bf16.mxu0 0
    %2554 = vmatpush1.bf16.msra.mxu0 0
    %2555 = vmatprep.subr.bf16.mxu0 0
    %2556 = vmatpush1.bf16.msra.mxu0 0
    %2557 = vmatprep.subr.bf16.mxu0 0
    %2558 = vmatpush1.bf16.msra.mxu0 0
    %2559 = vmatprep.mubr.bf16.mxu0 0
    %2560 = vmatmul.mubr.bf16.gmra.mrb[0].mxu0 %v2348
    %v2561 = vpop.f32.mrb[0].mxu0
    %v2562 = vadd.f32 %v2521, %v2561
    %v2563 = vpop.f32.mrb[0].mxu0
    %v2564 = vpop.f32.mrb[0].mxu0
    %v2565 = vadd.f32 %v2524, %v2564
    %v2566 = vpop.f32.mrb[0].mxu0
    %2567 = vdwg.mxu0
    %v2568 = vadd.f32 %v2562, %v335
    %v2569 = vadd.f32 %v2565, %v338
    %v2570 = vsub.f32 0.0, %v2568
    %v2571 = vsub.f32 0.0, %v2569
    %v2572 = vmul.f32 %v2570, 1.442695
    %v2573 = vpow.pop %v2572
    %v2574 = vmul.f32 %v2571, 1.442695
    %v2575 = vpow.pop %v2574
    %v2576 = vadd.f32 %v2573, 1.0
    %v2577 = vadd.f32 %v2575, 1.0
    %v2578 = vrcp.pop %v2576
    %v2579 = vmul.f32 1.0, %v2578
    %v2580 = vrcp.pop %v2577
    %v2581 = vmul.f32 1.0, %v2580
    %2582 = vmatprep.subr.bf16.mxu0 0
    %2583 = vmatpush1.bf16.msra.mxu0 %v1476
    %2584 = vmatprep.subr.bf16.mxu0 0
    %2585 = vmatpush1.bf16.msra.mxu0 %v1477
    %2586 = vmatprep.subr.bf16.mxu0 0
    %2587 = vmatpush1.bf16.msra.mxu0 %v1478
    %2588 = vmatprep.subr.bf16.mxu0 0
    %2589 = vmatpush1.bf16.msra.mxu0 %v1479
    %2590 = vmatprep.subr.bf16.mxu0 0
    %2591 = vmatpush1.bf16.msra.mxu0 %v1480
    %2592 = vmatprep.subr.bf16.mxu0 0
    %2593 = vmatpush1.bf16.msra.mxu0 %v1481
    %2594 = vmatprep.subr.bf16.mxu0 0
    %2595 = vmatpush1.bf16.msra.mxu0 %v1482
    %2596 = vmatprep.subr.bf16.mxu0 0
    %2597 = vmatpush1.bf16.msra.mxu0 %v1483
    %2598 = vmatprep.subr.bf16.mxu0 0
    %2599 = vmatpush1.bf16.msra.mxu0 0
    %2600 = vmatprep.subr.bf16.mxu0 0
    %2601 = vmatpush1.bf16.msra.mxu0 0
    %2602 = vmatprep.subr.bf16.mxu0 0
    %2603 = vmatpush1.bf16.msra.mxu0 0
    %2604 = vmatprep.subr.bf16.mxu0 0
    %2605 = vmatpush1.bf16.msra.mxu0 0
    %2606 = vmatprep.subr.bf16.mxu0 0
    %2607 = vmatpush1.bf16.msra.mxu0 0
    %2608 = vmatprep.subr.bf16.mxu0 0
    %2609 = vmatpush1.bf16.msra.mxu0 0
    %2610 = vmatprep.subr.bf16.mxu0 0
    %2611 = vmatpush1.bf16.msra.mxu0 0
    %2612 = vmatprep.subr.bf16.mxu0 0
    %2613 = vmatpush1.bf16.msra.mxu0 0
    %2614 = vmatprep.mubr.bf16.mxu0 0
    %2615 = vmatmul.mubr.bf16.gmra.mrb[0].mxu0 %v2348
    %v2616 = vpop.f32.mrb[0].mxu0
    %v2617 = vadd.f32 %v389, %v2616
    %v2618 = vpop.f32.mrb[0].mxu0
    %v2619 = vpop.f32.mrb[0].mxu0
    %v2620 = vadd.f32 %v392, %v2619
    %v2621 = vpop.f32.mrb[0].mxu0
    %2622 = vdwg.mxu0
    %v2623 = vmul.f32 %v2483, %v2384
    %v2624 = vmul.f32 %v2485, %v2387
    %v2625 = vadd.f32 %v2617, %v2623
    %v2626 = vadd.f32 %v2620, %v2624
    %v2627 = vtanh.pop %v2625
    %v2628 = vtanh.pop %v2626
    %v2629 = vsub.f32 1.0, %v2579
    %v2630 = vsub.f32 1.0, %v2581
    %v2631 = vmul.f32 %v2629, %v2627
    %v2632 = vmul.f32 %v2630, %v2628
    %v2633 = vmul.f32 %v2579, %v2262
    %v2634 = vmul.f32 %v2581, %v2263
    %v2635 = vadd.f32 %v2631, %v2633
    %v2636 = vadd.f32 %v2632, %v2634
    %v2637 = vpack.c.bf16 %v2636, %v2635
    %2638 = vmatprep.subr.bf16.mxu0 0
    %2639 = vmatpush1.bf16.msra.mxu0 %v1580
    %2640 = vmatprep.subr.bf16.mxu0 0
    %2641 = vmatpush1.bf16.msra.mxu0 %v1581
    %2642 = vmatprep.subr.bf16.mxu0 0
    %2643 = vmatpush1.bf16.msra.mxu0 %v1582
    %2644 = vmatprep.subr.bf16.mxu0 0
    %2645 = vmatpush1.bf16.msra.mxu0 %v1583
    %2646 = vmatprep.subr.bf16.mxu0 0
    %2647 = vmatpush1.bf16.msra.mxu0 %v1584
    %2648 = vmatprep.subr.bf16.mxu0 0
    %2649 = vmatpush1.bf16.msra.mxu0 %v1585
    %2650 = vmatprep.subr.bf16.mxu0 0
    %2651 = vmatpush1.bf16.msra.mxu0 %v1586
    %2652 = vmatprep.subr.bf16.mxu0 0
    %2653 = vmatpush1.bf16.msra.mxu0 %v1587
    %2654 = vmatprep.subr.bf16.mxu0 0
    %2655 = vmatpush1.bf16.msra.mxu0 0
    %2656 = vmatprep.subr.bf16.mxu0 0
    %2657 = vmatpush1.bf16.msra.mxu0 0
    %2658 = vmatprep.subr.bf16.mxu0 0
    %2659 = vmatpush1.bf16.msra.mxu0 0
    %2660 = vmatprep.subr.bf16.mxu0 0
    %2661 = vmatpush1.bf16.msra.mxu0 0
    %2662 = vmatprep.subr.bf16.mxu0 0
    %2663 = vmatpush1.bf16.msra.mxu0 0
    %2664 = vmatprep.subr.bf16.mxu0 0
    %2665 = vmatpush1.bf16.msra.mxu0 0
    %2666 = vmatprep.subr.bf16.mxu0 0
    %2667 = vmatpush1.bf16.msra.mxu0 0
    %2668 = vmatprep.subr.bf16.mxu0 0
    %2669 = vmatpush1.bf16.msra.mxu0 0
    %2670 = vmatprep.mubr.bf16.mxu0 0
    %2671 = vmatmul.mubr.bf16.gmra.mrb[0].mxu0 %v2637
    %v2672 = vpop.f32.mrb[0].mxu0
    %v2673 = vadd.f32 0.0, %v2672
    %v2674 = vpop.f32.mrb[0].mxu0
    %v2675 = vpop.f32.mrb[0].mxu0
    %v2676 = vadd.f32 0.0, %v2675
    %v2677 = vpop.f32.mrb[0].mxu0
    %2678 = vdwg.mxu0
    %v2679 = vpack.c.bf16 %v2676, %v2673
    %2680 = vmatprep.subr.bf16.mxu0 0
    %2681 = vmatpush1.bf16.msra.mxu0 %v2679
    %2682 = vmatprep.subr.bf16.mxu0 0
    %2683 = vmatpush1.bf16.msra.mxu0 0
    %2684 = vmatprep.subr.bf16.mxu0 0
    %2685 = vmatpush1.bf16.msra.mxu0 0
    %2686 = vmatprep.subr.bf16.mxu0 0
    %2687 = vmatpush1.bf16.msra.mxu0 0
    %2688 = vmatprep.subr.bf16.mxu0 0
    %2689 = vmatpush1.bf16.msra.mxu0 0
    %2690 = vmatprep.subr.bf16.mxu0 0
    %2691 = vmatpush1.bf16.msra.mxu0 0
    %2692 = vmatprep.subr.bf16.mxu0 0
    %2693 = vmatpush1.bf16.msra.mxu0 0
    %2694 = vmatprep.subr.bf16.mxu0 0
    %2695 = vmatpush1.bf16.msra.mxu0 0
    %2696 = vmatprep.subr.bf16.mxu0 0
    %2697 = vmatpush1.bf16.msra.mxu0 0
    %2698 = vmatprep.subr.bf16.mxu0 0
    %2699 = vmatpush1.bf16.msra.mxu0 0
    %2700 = vmatprep.subr.bf16.mxu0 0
    %2701 = vmatpush1.bf16.msra.mxu0 0
    %2702 = vmatprep.subr.bf16.mxu0 0
    %2703 = vmatpush1.bf16.msra.mxu0 0
    %2704 = vmatprep.subr.bf16.mxu0 0
    %2705 = vmatpush1.bf16.msra.mxu0 0
    %2706 = vmatprep.subr.bf16.mxu0 0
    %2707 = vmatpush1.bf16.msra.mxu0 0
    %2708 = vmatprep.subr.bf16.mxu0 0
    %2709 = vmatpush1.bf16.msra.mxu0 0
    %2710 = vmatprep.subr.bf16.mxu0 0
    %2711 = vmatpush1.bf16.msra.mxu0 0
    %2712 = vmatprep.mubr.bf16.mxu0 0
    %2713 = vmatmul.mubr.bf16.gmra.mrb[0].mxu0 %v1644
    %v2714 = vpop.f32.mrb[0].mxu0
    %v2715 = vadd.f32 %v538, %v2714
    %v2716 = vpop.f32.mrb[0].mxu0
    %v2717 = vpop.f32.mrb[0].mxu0
    %v2718 = vadd.f32 %v539, %v2717
    %v2719 = vpop.f32.mrb[0].mxu0
    %2720 = vdwg.mxu0
    %v2721 = vpack.c.bf16 %v2718, %v2715
    %2722 = vmatprep.subr.bf16.mxu0 0
    %2723 = vmatpush1.bf16.msra.mxu0 %v1720
    %2724 = vmatprep.subr.bf16.mxu0 0
    %2725 = vmatpush1.bf16.msra.mxu0 %v1721
    %2726 = vmatprep.subr.bf16.mxu0 0
    %2727 = vmatpush1.bf16.msra.mxu0 %v1722
    %2728 = vmatprep.subr.bf16.mxu0 0
    %2729 = vmatpush1.bf16.msra.mxu0 %v1723
    %2730 = vmatprep.subr.bf16.mxu0 0
    %2731 = vmatpush1.bf16.msra.mxu0 %v1724
    %2732 = vmatprep.subr.bf16.mxu0 0
    %2733 = vmatpush1.bf16.msra.mxu0 %v1725
    %2734 = vmatprep.subr.bf16.mxu0 0
    %2735 = vmatpush1.bf16.msra.mxu0 %v1726
    %2736 = vmatprep.subr.bf16.mxu0 0
    %2737 = vmatpush1.bf16.msra.mxu0 %v1727
    %2738 = vmatprep.subr.bf16.mxu0 0
    %2739 = vmatpush1.bf16.msra.mxu0 0
    %2740 = vmatprep.subr.bf16.mxu0 0
    %2741 = vmatpush1.bf16.msra.mxu0 0
    %2742 = vmatprep.subr.bf16.mxu0 0
    %2743 = vmatpush1.bf16.msra.mxu0 0
    %2744 = vmatprep.subr.bf16.mxu0 0
    %2745 = vmatpush1.bf16.msra.mxu0 0
    %2746 = vmatprep.subr.bf16.mxu0 0
    %2747 = vmatpush1.bf16.msra.mxu0 0
    %2748 = vmatprep.subr.bf16.mxu0 0
    %2749 = vmatpush1.bf16.msra.mxu0 0
    %2750 = vmatprep.subr.bf16.mxu0 0
    %2751 = vmatpush1.bf16.msra.mxu0 0
    %2752 = vmatprep.subr.bf16.mxu0 0
    %2753 = vmatpush1.bf16.msra.mxu0 0
    %2754 = vmatprep.mubr.bf16.mxu0 0
    %2755 = vmatmul.mubr.bf16.gmra.mrb[0].mxu0 %v2637
    %v2756 = vpop.f32.mrb[0].mxu0
    %v2757 = vadd.f32 %v706, %v2756
    %v2758 = vpop.f32.mrb[0].mxu0
    %v2759 = vpop.f32.mrb[0].mxu0
    %v2760 = vadd.f32 %v706, %v2759
    %v2761 = vpop.f32.mrb[0].mxu0
    %2762 = vdwg.mxu0
    %2763 = vmatprep.subr.bf16.mxu0 0
    %2764 = vmatpush1.bf16.msra.mxu0 %v1809
    %2765 = vmatprep.subr.bf16.mxu0 0
    %2766 = vmatpush1.bf16.msra.mxu0 %v1810
    %2767 = vmatprep.subr.bf16.mxu0 0
    %2768 = vmatpush1.bf16.msra.mxu0 %v1811
    %2769 = vmatprep.subr.bf16.mxu0 0
    %2770 = vmatpush1.bf16.msra.mxu0 %v1812
    %2771 = vmatprep.subr.bf16.mxu0 0
    %2772 = vmatpush1.bf16.msra.mxu0 %v1813
    %2773 = vmatprep.subr.bf16.mxu0 0
    %2774 = vmatpush1.bf16.msra.mxu0 %v1814
    %2775 = vmatprep.subr.bf16.mxu0 0
    %2776 = vmatpush1.bf16.msra.mxu0 %v1815
    %2777 = vmatprep.subr.bf16.mxu0 0
    %2778 = vmatpush1.bf16.msra.mxu0 %v1816
    %2779 = vmatprep.subr.bf16.mxu0 0
    %2780 = vmatpush1.bf16.msra.mxu0 0
    %2781 = vmatprep.subr.bf16.mxu0 0
    %2782 = vmatpush1.bf16.msra.mxu0 0
    %2783 = vmatprep.subr.bf16.mxu0 0
    %2784 = vmatpush1.bf16.msra.mxu0 0
    %2785 = vmatprep.subr.bf16.mxu0 0
    %2786 = vmatpush1.bf16.msra.mxu0 0
    %2787 = vmatprep.subr.bf16.mxu0 0
    %2788 = vmatpush1.bf16.msra.mxu0 0
    %2789 = vmatprep.subr.bf16.mxu0 0
    %2790 = vmatpush1.bf16.msra.mxu0 0
    %2791 = vmatprep.subr.bf16.mxu0 0
    %2792 = vmatpush1.bf16.msra.mxu0 0
    %2793 = vmatprep.subr.bf16.mxu0 0
    %2794 = vmatpush1.bf16.msra.mxu0 0
    %2795 = vmatprep.mubr.bf16.mxu0 0
    %2796 = vmatmul.mubr.bf16.gmra.mrb[0].mxu0 %v2637
    %v2797 = vpop.f32.mrb[0].mxu0
    %v2798 = vadd.f32 0.0, %v2797
    %v2799 = vpop.f32.mrb[0].mxu0
    %v2800 = vpop.f32.mrb[0].mxu0
    %v2801 = vadd.f32 0.0, %v2800
    %v2802 = vpop.f32.mrb[0].mxu0
    %2803 = vdwg.mxu0
    %2804 = vmatprep.subr.bf16.mxu0 0
    %2805 = vmatpush1.bf16.msra.mxu0 %v1898
    %2806 = vmatprep.subr.bf16.mxu0 0
    %2807 = vmatpush1.bf16.msra.mxu0 %v1899
    %2808 = vmatprep.subr.bf16.mxu0 0
    %2809 = vmatpush1.bf16.msra.mxu0 %v1900
    %2810 = vmatprep.subr.bf16.mxu0 0
    %2811 = vmatpush1.bf16.msra.mxu0 %v1901
    %2812 = vmatprep.subr.bf16.mxu0 0
    %2813 = vmatpush1.bf16.msra.mxu0 %v1902
    %2814 = vmatprep.subr.bf16.mxu0 0
    %2815 = vmatpush1.bf16.msra.mxu0 %v1903
    %2816 = vmatprep.subr.bf16.mxu0 0
    %2817 = vmatpush1.bf16.msra.mxu0 %v1904
    %2818 = vmatprep.subr.bf16.mxu0 0
    %2819 = vmatpush1.bf16.msra.mxu0 %v1905
    %2820 = vmatprep.subr.bf16.mxu0 0
    %2821 = vmatpush1.bf16.msra.mxu0 0
    %2822 = vmatprep.subr.bf16.mxu0 0
    %2823 = vmatpush1.bf16.msra.mxu0 0
    %2824 = vmatprep.subr.bf16.mxu0 0
    %2825 = vmatpush1.bf16.msra.mxu0 0
    %2826 = vmatprep.subr.bf16.mxu0 0
    %2827 = vmatpush1.bf16.msra.mxu0 0
    %2828 = vmatprep.subr.bf16.mxu0 0
    %2829 = vmatpush1.bf16.msra.mxu0 0
    %2830 = vmatprep.subr.bf16.mxu0 0
    %2831 = vmatpush1.bf16.msra.mxu0 0
    %2832 = vmatprep.subr.bf16.mxu0 0
    %2833 = vmatpush1.bf16.msra.mxu0 0
    %2834 = vmatprep.subr.bf16.mxu0 0
    %2835 = vmatpush1.bf16.msra.mxu0 0
    %2836 = vmatprep.mubr.bf16.mxu0 0
    %2837 = vmatmul.mubr.bf16.gmra.mrb[0].mxu0 %v2721
    %v2838 = vpop.f32.mrb[0].mxu0
    %v2839 = vadd.f32 %v2798, %v2838
    %v2840 = vpop.f32.mrb[0].mxu0
    %v2841 = vpop.f32.mrb[0].mxu0
    %v2842 = vadd.f32 %v2801, %v2841
    %v2843 = vpop.f32.mrb[0].mxu0
    %2844 = vdwg.mxu0
    %v2845 = vadd.f32 %v2839, %v586
    %v2846 = vadd.f32 %v2842, %v589
    %v2847 = vsub.f32 0.0, %v2845
    %v2848 = vsub.f32 0.0, %v2846
    %v2849 = vmul.f32 %v2847, 1.442695
    %v2850 = vpow.pop %v2849
    %v2851 = vmul.f32 %v2848, 1.442695
    %v2852 = vpow.pop %v2851
    %v2853 = vadd.f32 %v2850, 1.0
    %v2854 = vadd.f32 %v2852, 1.0
    %v2855 = vrcp.pop %v2853
    %v2856 = vmul.f32 1.0, %v2855
    %v2857 = vrcp.pop %v2854
    %v2858 = vmul.f32 1.0, %v2857
    %2859 = vmatprep.subr.bf16.mxu0 0
    %2860 = vmatpush1.bf16.msra.mxu0 %v2001
    %2861 = vmatprep.subr.bf16.mxu0 0
    %2862 = vmatpush1.bf16.msra.mxu0 %v2002
    %2863 = vmatprep.subr.bf16.mxu0 0
    %2864 = vmatpush1.bf16.msra.mxu0 %v2003
    %2865 = vmatprep.subr.bf16.mxu0 0
    %2866 = vmatpush1.bf16.msra.mxu0 %v2004
    %2867 = vmatprep.subr.bf16.mxu0 0
    %2868 = vmatpush1.bf16.msra.mxu0 %v2005
    %2869 = vmatprep.subr.bf16.mxu0 0
    %2870 = vmatpush1.bf16.msra.mxu0 %v2006
    %2871 = vmatprep.subr.bf16.mxu0 0
    %2872 = vmatpush1.bf16.msra.mxu0 %v2007
    %2873 = vmatprep.subr.bf16.mxu0 0
    %2874 = vmatpush1.bf16.msra.mxu0 %v2008
    %2875 = vmatprep.subr.bf16.mxu0 0
    %2876 = vmatpush1.bf16.msra.mxu0 0
    %2877 = vmatprep.subr.bf16.mxu0 0
    %2878 = vmatpush1.bf16.msra.mxu0 0
    %2879 = vmatprep.subr.bf16.mxu0 0
    %2880 = vmatpush1.bf16.msra.mxu0 0
    %2881 = vmatprep.subr.bf16.mxu0 0
    %2882 = vmatpush1.bf16.msra.mxu0 0
    %2883 = vmatprep.subr.bf16.mxu0 0
    %2884 = vmatpush1.bf16.msra.mxu0 0
    %2885 = vmatprep.subr.bf16.mxu0 0
    %2886 = vmatpush1.bf16.msra.mxu0 0
    %2887 = vmatprep.subr.bf16.mxu0 0
    %2888 = vmatpush1.bf16.msra.mxu0 0
    %2889 = vmatprep.subr.bf16.mxu0 0
    %2890 = vmatpush1.bf16.msra.mxu0 0
    %2891 = vmatprep.mubr.bf16.mxu0 0
    %2892 = vmatmul.mubr.bf16.gmra.mrb[0].mxu0 %v2637
    %v2893 = vpop.f32.mrb[0].mxu0
    %v2894 = vadd.f32 0.0, %v2893
    %v2895 = vpop.f32.mrb[0].mxu0
    %v2896 = vpop.f32.mrb[0].mxu0
    %v2897 = vadd.f32 0.0, %v2896
    %v2898 = vpop.f32.mrb[0].mxu0
    %2899 = vdwg.mxu0
    %2900 = vmatprep.subr.bf16.mxu0 0
    %2901 = vmatpush1.bf16.msra.mxu0 %v2090
    %2902 = vmatprep.subr.bf16.mxu0 0
    %2903 = vmatpush1.bf16.msra.mxu0 %v2091
    %2904 = vmatprep.subr.bf16.mxu0 0
    %2905 = vmatpush1.bf16.msra.mxu0 %v2092
    %2906 = vmatprep.subr.bf16.mxu0 0
    %2907 = vmatpush1.bf16.msra.mxu0 %v2093
    %2908 = vmatprep.subr.bf16.mxu0 0
    %2909 = vmatpush1.bf16.msra.mxu0 %v2094
    %2910 = vmatprep.subr.bf16.mxu0 0
    %2911 = vmatpush1.bf16.msra.mxu0 %v2095
    %2912 = vmatprep.subr.bf16.mxu0 0
    %2913 = vmatpush1.bf16.msra.mxu0 %v2096
    %2914 = vmatprep.subr.bf16.mxu0 0
    %2915 = vmatpush1.bf16.msra.mxu0 %v2097
    %2916 = vmatprep.subr.bf16.mxu0 0
    %2917 = vmatpush1.bf16.msra.mxu0 0
    %2918 = vmatprep.subr.bf16.mxu0 0
    %2919 = vmatpush1.bf16.msra.mxu0 0
    %2920 = vmatprep.subr.bf16.mxu0 0
    %2921 = vmatpush1.bf16.msra.mxu0 0
    %2922 = vmatprep.subr.bf16.mxu0 0
    %2923 = vmatpush1.bf16.msra.mxu0 0
    %2924 = vmatprep.subr.bf16.mxu0 0
    %2925 = vmatpush1.bf16.msra.mxu0 0
    %2926 = vmatprep.subr.bf16.mxu0 0
    %2927 = vmatpush1.bf16.msra.mxu0 0
    %2928 = vmatprep.subr.bf16.mxu0 0
    %2929 = vmatpush1.bf16.msra.mxu0 0
    %2930 = vmatprep.subr.bf16.mxu0 0
    %2931 = vmatpush1.bf16.msra.mxu0 0
    %2932 = vmatprep.mubr.bf16.mxu0 0
    %2933 = vmatmul.mubr.bf16.gmra.mrb[0].mxu0 %v2721
    %v2934 = vpop.f32.mrb[0].mxu0
    %v2935 = vadd.f32 %v2894, %v2934
    %v2936 = vpop.f32.mrb[0].mxu0
    %v2937 = vpop.f32.mrb[0].mxu0
    %v2938 = vadd.f32 %v2897, %v2937
    %v2939 = vpop.f32.mrb[0].mxu0
    %2940 = vdwg.mxu0
    %v2941 = vadd.f32 %v2935, %v640
    %v2942 = vadd.f32 %v2938, %v643
    %v2943 = vsub.f32 0.0, %v2941
    %v2944 = vsub.f32 0.0, %v2942
    %v2945 = vmul.f32 %v2943, 1.442695
    %v2946 = vpow.pop %v2945
    %v2947 = vmul.f32 %v2944, 1.442695
    %v2948 = vpow.pop %v2947
    %v2949 = vadd.f32 %v2946, 1.0
    %v2950 = vadd.f32 %v2948, 1.0
    %v2951 = vrcp.pop %v2949
    %v2952 = vmul.f32 1.0, %v2951
    %v2953 = vrcp.pop %v2950
    %v2954 = vmul.f32 1.0, %v2953
    %2955 = vmatprep.subr.bf16.mxu0 0
    %2956 = vmatpush1.bf16.msra.mxu0 %v2193
    %2957 = vmatprep.subr.bf16.mxu0 0
    %2958 = vmatpush1.bf16.msra.mxu0 %v2194
    %2959 = vmatprep.subr.bf16.mxu0 0
    %2960 = vmatpush1.bf16.msra.mxu0 %v2195
    %2961 = vmatprep.subr.bf16.mxu0 0
    %2962 = vmatpush1.bf16.msra.mxu0 %v2196
    %2963 = vmatprep.subr.bf16.mxu0 0
    %2964 = vmatpush1.bf16.msra.mxu0 %v2197
    %2965 = vmatprep.subr.bf16.mxu0 0
    %2966 = vmatpush1.bf16.msra.mxu0 %v2198
    %2967 = vmatprep.subr.bf16.mxu0 0
    %2968 = vmatpush1.bf16.msra.mxu0 %v2199
    %2969 = vmatprep.subr.bf16.mxu0 0
    %2970 = vmatpush1.bf16.msra.mxu0 %v2200
    %2971 = vmatprep.subr.bf16.mxu0 0
    %2972 = vmatpush1.bf16.msra.mxu0 0
    %2973 = vmatprep.subr.bf16.mxu0 0
    %2974 = vmatpush1.bf16.msra.mxu0 0
    %2975 = vmatprep.subr.bf16.mxu0 0
    %2976 = vmatpush1.bf16.msra.mxu0 0
    %2977 = vmatprep.subr.bf16.mxu0 0
    %2978 = vmatpush1.bf16.msra.mxu0 0
    %2979 = vmatprep.subr.bf16.mxu0 0
    %2980 = vmatpush1.bf16.msra.mxu0 0
    %2981 = vmatprep.subr.bf16.mxu0 0
    %2982 = vmatpush1.bf16.msra.mxu0 0
    %2983 = vmatprep.subr.bf16.mxu0 0
    %2984 = vmatpush1.bf16.msra.mxu0 0
    %2985 = vmatprep.subr.bf16.mxu0 0
    %2986 = vmatpush1.bf16.msra.mxu0 0
    %2987 = vmatprep.mubr.bf16.mxu0 0
    %2988 = vmatmul.mubr.bf16.gmra.mrb[0].mxu0 %v2721
    %v2989 = vpop.f32.mrb[0].mxu0
    %v2990 = vadd.f32 %v694, %v2989
    %v2991 = vpop.f32.mrb[0].mxu0
    %v2992 = vpop.f32.mrb[0].mxu0
    %v2993 = vadd.f32 %v697, %v2992
    %v2994 = vpop.f32.mrb[0].mxu0
    %2995 = vdwg.mxu0
    %v2996 = vmul.f32 %v2856, %v2757
    %v2997 = vmul.f32 %v2858, %v2760
    %v2998 = vadd.f32 %v2990, %v2996
    %v2999 = vadd.f32 %v2993, %v2997
    %v3000 = vtanh.pop %v2998
    %v3001 = vtanh.pop %v2999
    %v3002 = vsub.f32 1.0, %v2952
    %v3003 = vsub.f32 1.0, %v2954
    %v3004 = vmul.f32 %v3002, %v3000
    %v3005 = vmul.f32 %v3003, %v3001
    %v3006 = vmul.f32 %v2952, %v2635
    %v3007 = vmul.f32 %v2954, %v2636
    %v3008 = vadd.f32 %v3004, %v3006
    %v3009 = vadd.f32 %v3005, %v3007
    %v3010 = vpack.c.bf16 %v3009, %v3008
    %3011 = vmatprep.subr.bf16.mxu0 0
    %3012 = vmatpush1.bf16.msra.mxu0 %v862
    %3013 = vmatprep.subr.bf16.mxu0 0
    %3014 = vmatpush1.bf16.msra.mxu0 %v863
    %3015 = vmatprep.subr.bf16.mxu0 0
    %3016 = vmatpush1.bf16.msra.mxu0 %v864
    %3017 = vmatprep.subr.bf16.mxu0 0
    %3018 = vmatpush1.bf16.msra.mxu0 %v865
    %3019 = vmatprep.subr.bf16.mxu0 0
    %3020 = vmatpush1.bf16.msra.mxu0 %v866
    %3021 = vmatprep.subr.bf16.mxu0 0
    %3022 = vmatpush1.bf16.msra.mxu0 %v867
    %3023 = vmatprep.subr.bf16.mxu0 0
    %3024 = vmatpush1.bf16.msra.mxu0 %v868
    %3025 = vmatprep.subr.bf16.mxu0 0
    %3026 = vmatpush1.bf16.msra.mxu0 %v869
    %3027 = vmatprep.subr.bf16.mxu0 0
    %3028 = vmatpush1.bf16.msra.mxu0 0
    %3029 = vmatprep.subr.bf16.mxu0 0
    %3030 = vmatpush1.bf16.msra.mxu0 0
    %3031 = vmatprep.subr.bf16.mxu0 0
    %3032 = vmatpush1.bf16.msra.mxu0 0
    %3033 = vmatprep.subr.bf16.mxu0 0
    %3034 = vmatpush1.bf16.msra.mxu0 0
    %3035 = vmatprep.subr.bf16.mxu0 0
    %3036 = vmatpush1.bf16.msra.mxu0 0
    %3037 = vmatprep.subr.bf16.mxu0 0
    %3038 = vmatpush1.bf16.msra.mxu0 0
    %3039 = vmatprep.subr.bf16.mxu0 0
    %3040 = vmatpush1.bf16.msra.mxu0 0
    %3041 = vmatprep.subr.bf16.mxu0 0
    %3042 = vmatpush1.bf16.msra.mxu0 0
    %3043 = vmatprep.mubr.bf16.mxu0 0
    %3044 = vmatmul.mubr.bf16.gmra.mrb[0].mxu0 %v3010
    %v3045 = vpop.f32.mrb[0].mxu0
    %v3046 = vadd.f32 0.0, %v3045
    %v3047 = vpop.f32.mrb[0].mxu0
    %v3048 = vpop.f32.mrb[0].mxu0
    %v3049 = vadd.f32 0.0, %v3048
    %v3050 = vpop.f32.mrb[0].mxu0
    %3051 = vdwg.mxu0
    %v3052 = vpack.c.bf16 %v3049, %v3046
    %3053 = vmatprep.subr.bf16.mxu0 0
    %3054 = vmatpush1.bf16.msra.mxu0 %v3052
    %3055 = vmatprep.subr.bf16.mxu0 0
    %3056 = vmatpush1.bf16.msra.mxu0 0
    %3057 = vmatprep.subr.bf16.mxu0 0
    %3058 = vmatpush1.bf16.msra.mxu0 0
    %3059 = vmatprep.subr.bf16.mxu0 0
    %3060 = vmatpush1.bf16.msra.mxu0 0
    %3061 = vmatprep.subr.bf16.mxu0 0
    %3062 = vmatpush1.bf16.msra.mxu0 0
    %3063 = vmatprep.subr.bf16.mxu0 0
    %3064 = vmatpush1.bf16.msra.mxu0 0
    %3065 = vmatprep.subr.bf16.mxu0 0
    %3066 = vmatpush1.bf16.msra.mxu0 0
    %3067 = vmatprep.subr.bf16.mxu0 0
    %3068 = vmatpush1.bf16.msra.mxu0 0
    %3069 = vmatprep.subr.bf16.mxu0 0
    %3070 = vmatpush1.bf16.msra.mxu0 0
    %3071 = vmatprep.subr.bf16.mxu0 0
    %3072 = vmatpush1.bf16.msra.mxu0 0
    %3073 = vmatprep.subr.bf16.mxu0 0
    %3074 = vmatpush1.bf16.msra.mxu0 0
    %3075 = vmatprep.subr.bf16.mxu0 0
    %3076 = vmatpush1.bf16.msra.mxu0 0
    %3077 = vmatprep.subr.bf16.mxu0 0
    %3078 = vmatpush1.bf16.msra.mxu0 0
    %3079 = vmatprep.subr.bf16.mxu0 0
    %3080 = vmatpush1.bf16.msra.mxu0 0
    %3081 = vmatprep.subr.bf16.mxu0 0
    %3082 = vmatpush1.bf16.msra.mxu0 0
    %3083 = vmatprep.subr.bf16.mxu0 0
    %3084 = vmatpush1.bf16.msra.mxu0 0
    %3085 = vmatprep.mubr.bf16.mxu0 0
    %3086 = vmatmul.mubr.bf16.gmra.mrb[0].mxu0 %v927
    %v3087 = vpop.f32.mrb[0].mxu0
    %v3088 = vadd.f32 %v223, %v3087
    %v3089 = vpop.f32.mrb[0].mxu0
    %v3090 = vpop.f32.mrb[0].mxu0
    %v3091 = vadd.f32 %v224, %v3090
    %v3092 = vpop.f32.mrb[0].mxu0
    %3093 = vdwg.mxu0
    %v3094 = vpack.c.bf16 %v3091, %v3088
    %3095 = vmatprep.subr.bf16.mxu0 0
    %3096 = vmatpush1.bf16.msra.mxu0 %v1003
    %3097 = vmatprep.subr.bf16.mxu0 0
    %3098 = vmatpush1.bf16.msra.mxu0 %v1004
    %3099 = vmatprep.subr.bf16.mxu0 0
    %3100 = vmatpush1.bf16.msra.mxu0 %v1005
    %3101 = vmatprep.subr.bf16.mxu0 0
    %3102 = vmatpush1.bf16.msra.mxu0 %v1006
    %3103 = vmatprep.subr.bf16.mxu0 0
    %3104 = vmatpush1.bf16.msra.mxu0 %v1007
    %3105 = vmatprep.subr.bf16.mxu0 0
    %3106 = vmatpush1.bf16.msra.mxu0 %v1008
    %3107 = vmatprep.subr.bf16.mxu0 0
    %3108 = vmatpush1.bf16.msra.mxu0 %v1009
    %3109 = vmatprep.subr.bf16.mxu0 0
    %3110 = vmatpush1.bf16.msra.mxu0 %v1010
    %3111 = vmatprep.subr.bf16.mxu0 0
    %3112 = vmatpush1.bf16.msra.mxu0 0
    %3113 = vmatprep.subr.bf16.mxu0 0
    %3114 = vmatpush1.bf16.msra.mxu0 0
    %3115 = vmatprep.subr.bf16.mxu0 0
    %3116 = vmatpush1.bf16.msra.mxu0 0
    %3117 = vmatprep.subr.bf16.mxu0 0
    %3118 = vmatpush1.bf16.msra.mxu0 0
    %3119 = vmatprep.subr.bf16.mxu0 0
    %3120 = vmatpush1.bf16.msra.mxu0 0
    %3121 = vmatprep.subr.bf16.mxu0 0
    %3122 = vmatpush1.bf16.msra.mxu0 0
    %3123 = vmatprep.subr.bf16.mxu0 0
    %3124 = vmatpush1.bf16.msra.mxu0 0
    %3125 = vmatprep.subr.bf16.mxu0 0
    %3126 = vmatpush1.bf16.msra.mxu0 0
    %3127 = vmatprep.mubr.bf16.mxu0 0
    %3128 = vmatmul.mubr.bf16.gmra.mrb[0].mxu0 %v3010
    %v3129 = vpop.f32.mrb[0].mxu0
    %v3130 = vadd.f32 %v401, %v3129
    %v3131 = vpop.f32.mrb[0].mxu0
    %v3132 = vpop.f32.mrb[0].mxu0
    %v3133 = vadd.f32 %v401, %v3132
    %v3134 = vpop.f32.mrb[0].mxu0
    %3135 = vdwg.mxu0
    %3136 = vmatprep.subr.bf16.mxu0 0
    %3137 = vmatpush1.bf16.msra.mxu0 %v1092
    %3138 = vmatprep.subr.bf16.mxu0 0
    %3139 = vmatpush1.bf16.msra.mxu0 %v1093
    %3140 = vmatprep.subr.bf16.mxu0 0
    %3141 = vmatpush1.bf16.msra.mxu0 %v1094
    %3142 = vmatprep.subr.bf16.mxu0 0
    %3143 = vmatpush1.bf16.msra.mxu0 %v1095
    %3144 = vmatprep.subr.bf16.mxu0 0
    %3145 = vmatpush1.bf16.msra.mxu0 %v1096
    %3146 = vmatprep.subr.bf16.mxu0 0
    %3147 = vmatpush1.bf16.msra.mxu0 %v1097
    %3148 = vmatprep.subr.bf16.mxu0 0
    %3149 = vmatpush1.bf16.msra.mxu0 %v1098
    %3150 = vmatprep.subr.bf16.mxu0 0
    %3151 = vmatpush1.bf16.msra.mxu0 %v1099
    %3152 = vmatprep.subr.bf16.mxu0 0
    %3153 = vmatpush1.bf16.msra.mxu0 0
    %3154 = vmatprep.subr.bf16.mxu0 0
    %3155 = vmatpush1.bf16.msra.mxu0 0
    %3156 = vmatprep.subr.bf16.mxu0 0
    %3157 = vmatpush1.bf16.msra.mxu0 0
    %3158 = vmatprep.subr.bf16.mxu0 0
    %3159 = vmatpush1.bf16.msra.mxu0 0
    %3160 = vmatprep.subr.bf16.mxu0 0
    %3161 = vmatpush1.bf16.msra.mxu0 0
    %3162 = vmatprep.subr.bf16.mxu0 0
    %3163 = vmatpush1.bf16.msra.mxu0 0
    %3164 = vmatprep.subr.bf16.mxu0 0
    %3165 = vmatpush1.bf16.msra.mxu0 0
    %3166 = vmatprep.subr.bf16.mxu0 0
    %3167 = vmatpush1.bf16.msra.mxu0 0
    %3168 = vmatprep.mubr.bf16.mxu0 0
    %3169 = vmatmul.mubr.bf16.gmra.mrb[0].mxu0 %v3010
    %v3170 = vpop.f32.mrb[0].mxu0
    %v3171 = vadd.f32 0.0, %v3170
    %v3172 = vpop.f32.mrb[0].mxu0
    %v3173 = vpop.f32.mrb[0].mxu0
    %v3174 = vadd.f32 0.0, %v3173
    %v3175 = vpop.f32.mrb[0].mxu0
    %3176 = vdwg.mxu0
    %3177 = vmatprep.subr.bf16.mxu0 0
    %3178 = vmatpush1.bf16.msra.mxu0 %v1181
    %3179 = vmatprep.subr.bf16.mxu0 0
    %3180 = vmatpush1.bf16.msra.mxu0 %v1182
    %3181 = vmatprep.subr.bf16.mxu0 0
    %3182 = vmatpush1.bf16.msra.mxu0 %v1183
    %3183 = vmatprep.subr.bf16.mxu0 0
    %3184 = vmatpush1.bf16.msra.mxu0 %v1184
    %3185 = vmatprep.subr.bf16.mxu0 0
    %3186 = vmatpush1.bf16.msra.mxu0 %v1185
    %3187 = vmatprep.subr.bf16.mxu0 0
    %3188 = vmatpush1.bf16.msra.mxu0 %v1186
    %3189 = vmatprep.subr.bf16.mxu0 0
    %3190 = vmatpush1.bf16.msra.mxu0 %v1187
    %3191 = vmatprep.subr.bf16.mxu0 0
    %3192 = vmatpush1.bf16.msra.mxu0 %v1188
    %3193 = vmatprep.subr.bf16.mxu0 0
    %3194 = vmatpush1.bf16.msra.mxu0 0
    %3195 = vmatprep.subr.bf16.mxu0 0
    %3196 = vmatpush1.bf16.msra.mxu0 0
    %3197 = vmatprep.subr.bf16.mxu0 0
    %3198 = vmatpush1.bf16.msra.mxu0 0
    %3199 = vmatprep.subr.bf16.mxu0 0
    %3200 = vmatpush1.bf16.msra.mxu0 0
    %3201 = vmatprep.subr.bf16.mxu0 0
    %3202 = vmatpush1.bf16.msra.mxu0 0
    %3203 = vmatprep.subr.bf16.mxu0 0
    %3204 = vmatpush1.bf16.msra.mxu0 0
    %3205 = vmatprep.subr.bf16.mxu0 0
    %3206 = vmatpush1.bf16.msra.mxu0 0
    %3207 = vmatprep.subr.bf16.mxu0 0
    %3208 = vmatpush1.bf16.msra.mxu0 0
    %3209 = vmatprep.mubr.bf16.mxu0 0
    %3210 = vmatmul.mubr.bf16.gmra.mrb[0].mxu0 %v3094
    %v3211 = vpop.f32.mrb[0].mxu0
    %v3212 = vadd.f32 %v3171, %v3211
    %v3213 = vpop.f32.mrb[0].mxu0
    %v3214 = vpop.f32.mrb[0].mxu0
    %v3215 = vadd.f32 %v3174, %v3214
    %v3216 = vpop.f32.mrb[0].mxu0
    %3217 = vdwg.mxu0
    %v3218 = vadd.f32 %v3212, %v281
    %v3219 = vadd.f32 %v3215, %v284
    %v3220 = vsub.f32 0.0, %v3218
    %v3221 = vsub.f32 0.0, %v3219
    %v3222 = vmul.f32 %v3220, 1.442695
    %v3223 = vpow.pop %v3222
    %v3224 = vmul.f32 %v3221, 1.442695
    %v3225 = vpow.pop %v3224
    %v3226 = vadd.f32 %v3223, 1.0
    %v3227 = vadd.f32 %v3225, 1.0
    %v3228 = vrcp.pop %v3226
    %v3229 = vmul.f32 1.0, %v3228
    %v3230 = vrcp.pop %v3227
    %v3231 = vmul.f32 1.0, %v3230
    %3232 = vmatprep.subr.bf16.mxu0 0
    %3233 = vmatpush1.bf16.msra.mxu0 %v1284
    %3234 = vmatprep.subr.bf16.mxu0 0
    %3235 = vmatpush1.bf16.msra.mxu0 %v1285
    %3236 = vmatprep.subr.bf16.mxu0 0
    %3237 = vmatpush1.bf16.msra.mxu0 %v1286
    %3238 = vmatprep.subr.bf16.mxu0 0
    %3239 = vmatpush1.bf16.msra.mxu0 %v1287
    %3240 = vmatprep.subr.bf16.mxu0 0
    %3241 = vmatpush1.bf16.msra.mxu0 %v1288
    %3242 = vmatprep.subr.bf16.mxu0 0
    %3243 = vmatpush1.bf16.msra.mxu0 %v1289
    %3244 = vmatprep.subr.bf16.mxu0 0
    %3245 = vmatpush1.bf16.msra.mxu0 %v1290
    %3246 = vmatprep.subr.bf16.mxu0 0
    %3247 = vmatpush1.bf16.msra.mxu0 %v1291
    %3248 = vmatprep.subr.bf16.mxu0 0
    %3249 = vmatpush1.bf16.msra.mxu0 0
    %3250 = vmatprep.subr.bf16.mxu0 0
    %3251 = vmatpush1.bf16.msra.mxu0 0
    %3252 = vmatprep.subr.bf16.mxu0 0
    %3253 = vmatpush1.bf16.msra.mxu0 0
    %3254 = vmatprep.subr.bf16.mxu0 0
    %3255 = vmatpush1.bf16.msra.mxu0 0
    %3256 = vmatprep.subr.bf16.mxu0 0
    %3257 = vmatpush1.bf16.msra.mxu0 0
    %3258 = vmatprep.subr.bf16.mxu0 0
    %3259 = vmatpush1.bf16.msra.mxu0 0
    %3260 = vmatprep.subr.bf16.mxu0 0
    %3261 = vmatpush1.bf16.msra.mxu0 0
    %3262 = vmatprep.subr.bf16.mxu0 0
    %3263 = vmatpush1.bf16.msra.mxu0 0
    %3264 = vmatprep.mubr.bf16.mxu0 0
    %3265 = vmatmul.mubr.bf16.gmra.mrb[0].mxu0 %v3010
    %v3266 = vpop.f32.mrb[0].mxu0
    %v3267 = vadd.f32 0.0, %v3266
    %v3268 = vpop.f32.mrb[0].mxu0
    %v3269 = vpop.f32.mrb[0].mxu0
    %v3270 = vadd.f32 0.0, %v3269
    %v3271 = vpop.f32.mrb[0].mxu0
    %3272 = vdwg.mxu0
    %3273 = vmatprep.subr.bf16.mxu0 0
    %3274 = vmatpush1.bf16.msra.mxu0 %v1373
    %3275 = vmatprep.subr.bf16.mxu0 0
    %3276 = vmatpush1.bf16.msra.mxu0 %v1374
    %3277 = vmatprep.subr.bf16.mxu0 0
    %3278 = vmatpush1.bf16.msra.mxu0 %v1375
    %3279 = vmatprep.subr.bf16.mxu0 0
    %3280 = vmatpush1.bf16.msra.mxu0 %v1376
    %3281 = vmatprep.subr.bf16.mxu0 0
    %3282 = vmatpush1.bf16.msra.mxu0 %v1377
    %3283 = vmatprep.subr.bf16.mxu0 0
    %3284 = vmatpush1.bf16.msra.mxu0 %v1378
    %3285 = vmatprep.subr.bf16.mxu0 0
    %3286 = vmatpush1.bf16.msra.mxu0 %v1379
    %3287 = vmatprep.subr.bf16.mxu0 0
    %3288 = vmatpush1.bf16.msra.mxu0 %v1380
    %3289 = vmatprep.subr.bf16.mxu0 0
    %3290 = vmatpush1.bf16.msra.mxu0 0
    %3291 = vmatprep.subr.bf16.mxu0 0
    %3292 = vmatpush1.bf16.msra.mxu0 0
    %3293 = vmatprep.subr.bf16.mxu0 0
    %3294 = vmatpush1.bf16.msra.mxu0 0
    %3295 = vmatprep.subr.bf16.mxu0 0
    %3296 = vmatpush1.bf16.msra.mxu0 0
    %3297 = vmatprep.subr.bf16.mxu0 0
    %3298 = vmatpush1.bf16.msra.mxu0 0
    %3299 = vmatprep.subr.bf16.mxu0 0
    %3300 = vmatpush1.bf16.msra.mxu0 0
    %3301 = vmatprep.subr.bf16.mxu0 0
    %3302 = vmatpush1.bf16.msra.mxu0 0
    %3303 = vmatprep.subr.bf16.mxu0 0
    %3304 = vmatpush1.bf16.msra.mxu0 0
    %3305 = vmatprep.mubr.bf16.mxu0 0
    %3306 = vmatmul.mubr.bf16.gmra.mrb[0].mxu0 %v3094
    %v3307 = vpop.f32.mrb[0].mxu0
    %v3308 = vadd.f32 %v3267, %v3307
    %v3309 = vpop.f32.mrb[0].mxu0
    %v3310 = vpop.f32.mrb[0].mxu0
    %v3311 = vadd.f32 %v3270, %v3310
    %v3312 = vpop.f32.mrb[0].mxu0
    %3313 = vdwg.mxu0
    %v3314 = vadd.f32 %v3308, %v335
    %v3315 = vadd.f32 %v3311, %v338
    %v3316 = vsub.f32 0.0, %v3314
    %v3317 = vsub.f32 0.0, %v3315
    %v3318 = vmul.f32 %v3316, 1.442695
    %v3319 = vpow.pop %v3318
    %v3320 = vmul.f32 %v3317, 1.442695
    %v3321 = vpow.pop %v3320
    %v3322 = vadd.f32 %v3319, 1.0
    %v3323 = vadd.f32 %v3321, 1.0
    %v3324 = vrcp.pop %v3322
    %v3325 = vmul.f32 1.0, %v3324
    %v3326 = vrcp.pop %v3323
    %v3327 = vmul.f32 1.0, %v3326
    %3328 = vmatprep.subr.bf16.mxu0 0
    %3329 = vmatpush1.bf16.msra.mxu0 %v1476
    %3330 = vmatprep.subr.bf16.mxu0 0
    %3331 = vmatpush1.bf16.msra.mxu0 %v1477
    %3332 = vmatprep.subr.bf16.mxu0 0
    %3333 = vmatpush1.bf16.msra.mxu0 %v1478
    %3334 = vmatprep.subr.bf16.mxu0 0
    %3335 = vmatpush1.bf16.msra.mxu0 %v1479
    %3336 = vmatprep.subr.bf16.mxu0 0
    %3337 = vmatpush1.bf16.msra.mxu0 %v1480
    %3338 = vmatprep.subr.bf16.mxu0 0
    %3339 = vmatpush1.bf16.msra.mxu0 %v1481
    %3340 = vmatprep.subr.bf16.mxu0 0
    %3341 = vmatpush1.bf16.msra.mxu0 %v1482
    %3342 = vmatprep.subr.bf16.mxu0 0
    %3343 = vmatpush1.bf16.msra.mxu0 %v1483
    %3344 = vmatprep.subr.bf16.mxu0 0
    %3345 = vmatpush1.bf16.msra.mxu0 0
    %3346 = vmatprep.subr.bf16.mxu0 0
    %3347 = vmatpush1.bf16.msra.mxu0 0
    %3348 = vmatprep.subr.bf16.mxu0 0
    %3349 = vmatpush1.bf16.msra.mxu0 0
    %3350 = vmatprep.subr.bf16.mxu0 0
    %3351 = vmatpush1.bf16.msra.mxu0 0
    %3352 = vmatprep.subr.bf16.mxu0 0
    %3353 = vmatpush1.bf16.msra.mxu0 0
    %3354 = vmatprep.subr.bf16.mxu0 0
    %3355 = vmatpush1.bf16.msra.mxu0 0
    %3356 = vmatprep.subr.bf16.mxu0 0
    %3357 = vmatpush1.bf16.msra.mxu0 0
    %3358 = vmatprep.subr.bf16.mxu0 0
    %3359 = vmatpush1.bf16.msra.mxu0 0
    %3360 = vmatprep.mubr.bf16.mxu0 0
    %3361 = vmatmul.mubr.bf16.gmra.mrb[0].mxu0 %v3094
    %v3362 = vpop.f32.mrb[0].mxu0
    %v3363 = vadd.f32 %v389, %v3362
    %v3364 = vpop.f32.mrb[0].mxu0
    %v3365 = vpop.f32.mrb[0].mxu0
    %v3366 = vadd.f32 %v392, %v3365
    %v3367 = vpop.f32.mrb[0].mxu0
    %3368 = vdwg.mxu0
    %v3369 = vmul.f32 %v3229, %v3130
    %v3370 = vmul.f32 %v3231, %v3133
    %v3371 = vadd.f32 %v3363, %v3369
    %v3372 = vadd.f32 %v3366, %v3370
    %v3373 = vtanh.pop %v3371
    %v3374 = vtanh.pop %v3372
    %v3375 = vsub.f32 1.0, %v3325
    %v3376 = vsub.f32 1.0, %v3327
    %v3377 = vmul.f32 %v3375, %v3373
    %v3378 = vmul.f32 %v3376, %v3374
    %v3379 = vmul.f32 %v3325, %v3008
    %v3380 = vmul.f32 %v3327, %v3009
    %v3381 = vadd.f32 %v3377, %v3379
    %v3382 = vadd.f32 %v3378, %v3380
    %v3383 = vpack.c.bf16 %v3382, %v3381
    %3384 = vmatprep.subr.bf16.mxu0 0
    %3385 = vmatpush1.bf16.msra.mxu0 %v1580
    %3386 = vmatprep.subr.bf16.mxu0 0
    %3387 = vmatpush1.bf16.msra.mxu0 %v1581
    %3388 = vmatprep.subr.bf16.mxu0 0
    %3389 = vmatpush1.bf16.msra.mxu0 %v1582
    %3390 = vmatprep.subr.bf16.mxu0 0
    %3391 = vmatpush1.bf16.msra.mxu0 %v1583
    %3392 = vmatprep.subr.bf16.mxu0 0
    %3393 = vmatpush1.bf16.msra.mxu0 %v1584
    %3394 = vmatprep.subr.bf16.mxu0 0
    %3395 = vmatpush1.bf16.msra.mxu0 %v1585
    %3396 = vmatprep.subr.bf16.mxu0 0
    %3397 = vmatpush1.bf16.msra.mxu0 %v1586
    %3398 = vmatprep.subr.bf16.mxu0 0
    %3399 = vmatpush1.bf16.msra.mxu0 %v1587
    %3400 = vmatprep.subr.bf16.mxu0 0
    %3401 = vmatpush1.bf16.msra.mxu0 0
    %3402 = vmatprep.subr.bf16.mxu0 0
    %3403 = vmatpush1.bf16.msra.mxu0 0
    %3404 = vmatprep.subr.bf16.mxu0 0
    %3405 = vmatpush1.bf16.msra.mxu0 0
    %3406 = vmatprep.subr.bf16.mxu0 0
    %3407 = vmatpush1.bf16.msra.mxu0 0
    %3408 = vmatprep.subr.bf16.mxu0 0
    %3409 = vmatpush1.bf16.msra.mxu0 0
    %3410 = vmatprep.subr.bf16.mxu0 0
    %3411 = vmatpush1.bf16.msra.mxu0 0
    %3412 = vmatprep.subr.bf16.mxu0 0
    %3413 = vmatpush1.bf16.msra.mxu0 0
    %3414 = vmatprep.subr.bf16.mxu0 0
    %3415 = vmatpush1.bf16.msra.mxu0 0
    %3416 = vmatprep.mubr.bf16.mxu0 0
    %3417 = vmatmul.mubr.bf16.gmra.mrb[0].mxu0 %v3383
    %v3418 = vpop.f32.mrb[0].mxu0
    %v3419 = vadd.f32 0.0, %v3418
    %v3420 = vpop.f32.mrb[0].mxu0
    %v3421 = vpop.f32.mrb[0].mxu0
    %v3422 = vadd.f32 0.0, %v3421
    %v3423 = vpop.f32.mrb[0].mxu0
    %3424 = vdwg.mxu0
    %v3425 = vpack.c.bf16 %v3422, %v3419
    %3426 = vmatprep.subr.bf16.mxu0 0
    %3427 = vmatpush1.bf16.msra.mxu0 %v3425
    %3428 = vmatprep.subr.bf16.mxu0 0
    %3429 = vmatpush1.bf16.msra.mxu0 0
    %3430 = vmatprep.subr.bf16.mxu0 0
    %3431 = vmatpush1.bf16.msra.mxu0 0
    %3432 = vmatprep.subr.bf16.mxu0 0
    %3433 = vmatpush1.bf16.msra.mxu0 0
    %3434 = vmatprep.subr.bf16.mxu0 0
    %3435 = vmatpush1.bf16.msra.mxu0 0
    %3436 = vmatprep.subr.bf16.mxu0 0
    %3437 = vmatpush1.bf16.msra.mxu0 0
    %3438 = vmatprep.subr.bf16.mxu0 0
    %3439 = vmatpush1.bf16.msra.mxu0 0
    %3440 = vmatprep.subr.bf16.mxu0 0
    %3441 = vmatpush1.bf16.msra.mxu0 0
    %3442 = vmatprep.subr.bf16.mxu0 0
    %3443 = vmatpush1.bf16.msra.mxu0 0
    %3444 = vmatprep.subr.bf16.mxu0 0
    %3445 = vmatpush1.bf16.msra.mxu0 0
    %3446 = vmatprep.subr.bf16.mxu0 0
    %3447 = vmatpush1.bf16.msra.mxu0 0
    %3448 = vmatprep.subr.bf16.mxu0 0
    %3449 = vmatpush1.bf16.msra.mxu0 0
    %3450 = vmatprep.subr.bf16.mxu0 0
    %3451 = vmatpush1.bf16.msra.mxu0 0
    %3452 = vmatprep.subr.bf16.mxu0 0
    %3453 = vmatpush1.bf16.msra.mxu0 0
    %3454 = vmatprep.subr.bf16.mxu0 0
    %3455 = vmatpush1.bf16.msra.mxu0 0
    %3456 = vmatprep.subr.bf16.mxu0 0
    %3457 = vmatpush1.bf16.msra.mxu0 0
    %3458 = vmatprep.mubr.bf16.mxu0 0
    %3459 = vmatmul.mubr.bf16.gmra.mrb[0].mxu0 %v1644
    %v3460 = vpop.f32.mrb[0].mxu0
    %v3461 = vadd.f32 %v538, %v3460
    %v3462 = vpop.f32.mrb[0].mxu0
    %v3463 = vpop.f32.mrb[0].mxu0
    %v3464 = vadd.f32 %v539, %v3463
    %v3465 = vpop.f32.mrb[0].mxu0
    %3466 = vdwg.mxu0
    %v3467 = vpack.c.bf16 %v3464, %v3461
    %3468 = vmatprep.subr.bf16.mxu0 0
    %3469 = vmatpush1.bf16.msra.mxu0 %v1720
    %3470 = vmatprep.subr.bf16.mxu0 0
    %3471 = vmatpush1.bf16.msra.mxu0 %v1721
    %3472 = vmatprep.subr.bf16.mxu0 0
    %3473 = vmatpush1.bf16.msra.mxu0 %v1722
    %3474 = vmatprep.subr.bf16.mxu0 0
    %3475 = vmatpush1.bf16.msra.mxu0 %v1723
    %3476 = vmatprep.subr.bf16.mxu0 0
    %3477 = vmatpush1.bf16.msra.mxu0 %v1724
    %3478 = vmatprep.subr.bf16.mxu0 0
    %3479 = vmatpush1.bf16.msra.mxu0 %v1725
    %3480 = vmatprep.subr.bf16.mxu0 0
    %3481 = vmatpush1.bf16.msra.mxu0 %v1726
    %3482 = vmatprep.subr.bf16.mxu0 0
    %3483 = vmatpush1.bf16.msra.mxu0 %v1727
    %3484 = vmatprep.subr.bf16.mxu0 0
    %3485 = vmatpush1.bf16.msra.mxu0 0
    %3486 = vmatprep.subr.bf16.mxu0 0
    %3487 = vmatpush1.bf16.msra.mxu0 0
    %3488 = vmatprep.subr.bf16.mxu0 0
    %3489 = vmatpush1.bf16.msra.mxu0 0
    %3490 = vmatprep.subr.bf16.mxu0 0
    %3491 = vmatpush1.bf16.msra.mxu0 0
    %3492 = vmatprep.subr.bf16.mxu0 0
    %3493 = vmatpush1.bf16.msra.mxu0 0
    %3494 = vmatprep.subr.bf16.mxu0 0
    %3495 = vmatpush1.bf16.msra.mxu0 0
    %3496 = vmatprep.subr.bf16.mxu0 0
    %3497 = vmatpush1.bf16.msra.mxu0 0
    %3498 = vmatprep.subr.bf16.mxu0 0
    %3499 = vmatpush1.bf16.msra.mxu0 0
    %3500 = vmatprep.mubr.bf16.mxu0 0
    %3501 = vmatmul.mubr.bf16.gmra.mrb[0].mxu0 %v3383
    %v3502 = vpop.f32.mrb[0].mxu0
    %v3503 = vadd.f32 %v706, %v3502
    %v3504 = vpop.f32.mrb[0].mxu0
    %v3505 = vpop.f32.mrb[0].mxu0
    %v3506 = vadd.f32 %v706, %v3505
    %v3507 = vpop.f32.mrb[0].mxu0
    %3508 = vdwg.mxu0
    %3509 = vmatprep.subr.bf16.mxu0 0
    %3510 = vmatpush1.bf16.msra.mxu0 %v1809
    %3511 = vmatprep.subr.bf16.mxu0 0
    %3512 = vmatpush1.bf16.msra.mxu0 %v1810
    %3513 = vmatprep.subr.bf16.mxu0 0
    %3514 = vmatpush1.bf16.msra.mxu0 %v1811
    %3515 = vmatprep.subr.bf16.mxu0 0
    %3516 = vmatpush1.bf16.msra.mxu0 %v1812
    %3517 = vmatprep.subr.bf16.mxu0 0
    %3518 = vmatpush1.bf16.msra.mxu0 %v1813
    %3519 = vmatprep.subr.bf16.mxu0 0
    %3520 = vmatpush1.bf16.msra.mxu0 %v1814
    %3521 = vmatprep.subr.bf16.mxu0 0
    %3522 = vmatpush1.bf16.msra.mxu0 %v1815
    %3523 = vmatprep.subr.bf16.mxu0 0
    %3524 = vmatpush1.bf16.msra.mxu0 %v1816
    %3525 = vmatprep.subr.bf16.mxu0 0
    %3526 = vmatpush1.bf16.msra.mxu0 0
    %3527 = vmatprep.subr.bf16.mxu0 0
    %3528 = vmatpush1.bf16.msra.mxu0 0
    %3529 = vmatprep.subr.bf16.mxu0 0
    %3530 = vmatpush1.bf16.msra.mxu0 0
    %3531 = vmatprep.subr.bf16.mxu0 0
    %3532 = vmatpush1.bf16.msra.mxu0 0
    %3533 = vmatprep.subr.bf16.mxu0 0
    %3534 = vmatpush1.bf16.msra.mxu0 0
    %3535 = vmatprep.subr.bf16.mxu0 0
    %3536 = vmatpush1.bf16.msra.mxu0 0
    %3537 = vmatprep.subr.bf16.mxu0 0
    %3538 = vmatpush1.bf16.msra.mxu0 0
    %3539 = vmatprep.subr.bf16.mxu0 0
    %3540 = vmatpush1.bf16.msra.mxu0 0
    %3541 = vmatprep.mubr.bf16.mxu0 0
    %3542 = vmatmul.mubr.bf16.gmra.mrb[0].mxu0 %v3383
    %v3543 = vpop.f32.mrb[0].mxu0
    %v3544 = vadd.f32 0.0, %v3543
    %v3545 = vpop.f32.mrb[0].mxu0
    %v3546 = vpop.f32.mrb[0].mxu0
    %v3547 = vadd.f32 0.0, %v3546
    %v3548 = vpop.f32.mrb[0].mxu0
    %3549 = vdwg.mxu0
    %3550 = vmatprep.subr.bf16.mxu0 0
    %3551 = vmatpush1.bf16.msra.mxu0 %v1898
    %3552 = vmatprep.subr.bf16.mxu0 0
    %3553 = vmatpush1.bf16.msra.mxu0 %v1899
    %3554 = vmatprep.subr.bf16.mxu0 0
    %3555 = vmatpush1.bf16.msra.mxu0 %v1900
    %3556 = vmatprep.subr.bf16.mxu0 0
    %3557 = vmatpush1.bf16.msra.mxu0 %v1901
    %3558 = vmatprep.subr.bf16.mxu0 0
    %3559 = vmatpush1.bf16.msra.mxu0 %v1902
    %3560 = vmatprep.subr.bf16.mxu0 0
    %3561 = vmatpush1.bf16.msra.mxu0 %v1903
    %3562 = vmatprep.subr.bf16.mxu0 0
    %3563 = vmatpush1.bf16.msra.mxu0 %v1904
    %3564 = vmatprep.subr.bf16.mxu0 0
    %3565 = vmatpush1.bf16.msra.mxu0 %v1905
    %3566 = vmatprep.subr.bf16.mxu0 0
    %3567 = vmatpush1.bf16.msra.mxu0 0
    %3568 = vmatprep.subr.bf16.mxu0 0
    %3569 = vmatpush1.bf16.msra.mxu0 0
    %3570 = vmatprep.subr.bf16.mxu0 0
    %3571 = vmatpush1.bf16.msra.mxu0 0
    %3572 = vmatprep.subr.bf16.mxu0 0
    %3573 = vmatpush1.bf16.msra.mxu0 0
    %3574 = vmatprep.subr.bf16.mxu0 0
    %3575 = vmatpush1.bf16.msra.mxu0 0
    %3576 = vmatprep.subr.bf16.mxu0 0
    %3577 = vmatpush1.bf16.msra.mxu0 0
    %3578 = vmatprep.subr.bf16.mxu0 0
    %3579 = vmatpush1.bf16.msra.mxu0 0
    %3580 = vmatprep.subr.bf16.mxu0 0
    %3581 = vmatpush1.bf16.msra.mxu0 0
    %3582 = vmatprep.mubr.bf16.mxu0 0
    %3583 = vmatmul.mubr.bf16.gmra.mrb[0].mxu0 %v3467
    %v3584 = vpop.f32.mrb[0].mxu0
    %v3585 = vadd.f32 %v3544, %v3584
    %v3586 = vpop.f32.mrb[0].mxu0
    %v3587 = vpop.f32.mrb[0].mxu0
    %v3588 = vadd.f32 %v3547, %v3587
    %v3589 = vpop.f32.mrb[0].mxu0
    %3590 = vdwg.mxu0
    %v3591 = vadd.f32 %v3585, %v586
    %v3592 = vadd.f32 %v3588, %v589
    %v3593 = vsub.f32 0.0, %v3591
    %v3594 = vsub.f32 0.0, %v3592
    %v3595 = vmul.f32 %v3593, 1.442695
    %v3596 = vpow.pop %v3595
    %v3597 = vmul.f32 %v3594, 1.442695
    %v3598 = vpow.pop %v3597
    %v3599 = vadd.f32 %v3596, 1.0
    %v3600 = vadd.f32 %v3598, 1.0
    %v3601 = vrcp.pop %v3599
    %v3602 = vmul.f32 1.0, %v3601
    %v3603 = vrcp.pop %v3600
    %v3604 = vmul.f32 1.0, %v3603
    %3605 = vmatprep.subr.bf16.mxu0 0
    %3606 = vmatpush1.bf16.msra.mxu0 %v2001
    %3607 = vmatprep.subr.bf16.mxu0 0
    %3608 = vmatpush1.bf16.msra.mxu0 %v2002
    %3609 = vmatprep.subr.bf16.mxu0 0
    %3610 = vmatpush1.bf16.msra.mxu0 %v2003
    %3611 = vmatprep.subr.bf16.mxu0 0
    %3612 = vmatpush1.bf16.msra.mxu0 %v2004
    %3613 = vmatprep.subr.bf16.mxu0 0
    %3614 = vmatpush1.bf16.msra.mxu0 %v2005
    %3615 = vmatprep.subr.bf16.mxu0 0
    %3616 = vmatpush1.bf16.msra.mxu0 %v2006
    %3617 = vmatprep.subr.bf16.mxu0 0
    %3618 = vmatpush1.bf16.msra.mxu0 %v2007
    %3619 = vmatprep.subr.bf16.mxu0 0
    %3620 = vmatpush1.bf16.msra.mxu0 %v2008
    %3621 = vmatprep.subr.bf16.mxu0 0
    %3622 = vmatpush1.bf16.msra.mxu0 0
    %3623 = vmatprep.subr.bf16.mxu0 0
    %3624 = vmatpush1.bf16.msra.mxu0 0
    %3625 = vmatprep.subr.bf16.mxu0 0
    %3626 = vmatpush1.bf16.msra.mxu0 0
    %3627 = vmatprep.subr.bf16.mxu0 0
    %3628 = vmatpush1.bf16.msra.mxu0 0
    %3629 = vmatprep.subr.bf16.mxu0 0
    %3630 = vmatpush1.bf16.msra.mxu0 0
    %3631 = vmatprep.subr.bf16.mxu0 0
    %3632 = vmatpush1.bf16.msra.mxu0 0
    %3633 = vmatprep.subr.bf16.mxu0 0
    %3634 = vmatpush1.bf16.msra.mxu0 0
    %3635 = vmatprep.subr.bf16.mxu0 0
    %3636 = vmatpush1.bf16.msra.mxu0 0
    %3637 = vmatprep.mubr.bf16.mxu0 0
    %3638 = vmatmul.mubr.bf16.gmra.mrb[0].mxu0 %v3383
    %v3639 = vpop.f32.mrb[0].mxu0
    %v3640 = vadd.f32 0.0, %v3639
    %v3641 = vpop.f32.mrb[0].mxu0
    %v3642 = vpop.f32.mrb[0].mxu0
    %v3643 = vadd.f32 0.0, %v3642
    %v3644 = vpop.f32.mrb[0].mxu0
    %3645 = vdwg.mxu0
    %3646 = vmatprep.subr.bf16.mxu0 0
    %3647 = vmatpush1.bf16.msra.mxu0 %v2090
    %3648 = vmatprep.subr.bf16.mxu0 0
    %3649 = vmatpush1.bf16.msra.mxu0 %v2091
    %3650 = vmatprep.subr.bf16.mxu0 0
    %3651 = vmatpush1.bf16.msra.mxu0 %v2092
    %3652 = vmatprep.subr.bf16.mxu0 0
    %3653 = vmatpush1.bf16.msra.mxu0 %v2093
    %3654 = vmatprep.subr.bf16.mxu0 0
    %3655 = vmatpush1.bf16.msra.mxu0 %v2094
    %3656 = vmatprep.subr.bf16.mxu0 0
    %3657 = vmatpush1.bf16.msra.mxu0 %v2095
    %3658 = vmatprep.subr.bf16.mxu0 0
    %3659 = vmatpush1.bf16.msra.mxu0 %v2096
    %3660 = vmatprep.subr.bf16.mxu0 0
    %3661 = vmatpush1.bf16.msra.mxu0 %v2097
    %3662 = vmatprep.subr.bf16.mxu0 0
    %3663 = vmatpush1.bf16.msra.mxu0 0
    %3664 = vmatprep.subr.bf16.mxu0 0
    %3665 = vmatpush1.bf16.msra.mxu0 0
    %3666 = vmatprep.subr.bf16.mxu0 0
    %3667 = vmatpush1.bf16.msra.mxu0 0
    %3668 = vmatprep.subr.bf16.mxu0 0
    %3669 = vmatpush1.bf16.msra.mxu0 0
    %3670 = vmatprep.subr.bf16.mxu0 0
    %3671 = vmatpush1.bf16.msra.mxu0 0
    %3672 = vmatprep.subr.bf16.mxu0 0
    %3673 = vmatpush1.bf16.msra.mxu0 0
    %3674 = vmatprep.subr.bf16.mxu0 0
    %3675 = vmatpush1.bf16.msra.mxu0 0
    %3676 = vmatprep.subr.bf16.mxu0 0
    %3677 = vmatpush1.bf16.msra.mxu0 0
    %3678 = vmatprep.mubr.bf16.mxu0 0
    %3679 = vmatmul.mubr.bf16.gmra.mrb[0].mxu0 %v3467
    %v3680 = vpop.f32.mrb[0].mxu0
    %v3681 = vadd.f32 %v3640, %v3680
    %v3682 = vpop.f32.mrb[0].mxu0
    %v3683 = vpop.f32.mrb[0].mxu0
    %v3684 = vadd.f32 %v3643, %v3683
    %v3685 = vpop.f32.mrb[0].mxu0
    %3686 = vdwg.mxu0
    %v3687 = vadd.f32 %v3681, %v640
    %v3688 = vadd.f32 %v3684, %v643
    %v3689 = vsub.f32 0.0, %v3687
    %v3690 = vsub.f32 0.0, %v3688
    %v3691 = vmul.f32 %v3689, 1.442695
    %v3692 = vpow.pop %v3691
    %v3693 = vmul.f32 %v3690, 1.442695
    %v3694 = vpow.pop %v3693
    %v3695 = vadd.f32 %v3692, 1.0
    %v3696 = vadd.f32 %v3694, 1.0
    %v3697 = vrcp.pop %v3695
    %v3698 = vmul.f32 1.0, %v3697
    %v3699 = vrcp.pop %v3696
    %v3700 = vmul.f32 1.0, %v3699
    %3701 = vmatprep.subr.bf16.mxu0 0
    %3702 = vmatpush1.bf16.msra.mxu0 %v2193
    %3703 = vmatprep.subr.bf16.mxu0 0
    %3704 = vmatpush1.bf16.msra.mxu0 %v2194
    %3705 = vmatprep.subr.bf16.mxu0 0
    %3706 = vmatpush1.bf16.msra.mxu0 %v2195
    %3707 = vmatprep.subr.bf16.mxu0 0
    %3708 = vmatpush1.bf16.msra.mxu0 %v2196
    %3709 = vmatprep.subr.bf16.mxu0 0
    %3710 = vmatpush1.bf16.msra.mxu0 %v2197
    %3711 = vmatprep.subr.bf16.mxu0 0
    %3712 = vmatpush1.bf16.msra.mxu0 %v2198
    %3713 = vmatprep.subr.bf16.mxu0 0
    %3714 = vmatpush1.bf16.msra.mxu0 %v2199
    %3715 = vmatprep.subr.bf16.mxu0 0
    %3716 = vmatpush1.bf16.msra.mxu0 %v2200
    %3717 = vmatprep.subr.bf16.mxu0 0
    %3718 = vmatpush1.bf16.msra.mxu0 0
    %3719 = vmatprep.subr.bf16.mxu0 0
    %3720 = vmatpush1.bf16.msra.mxu0 0
    %3721 = vmatprep.subr.bf16.mxu0 0
    %3722 = vmatpush1.bf16.msra.mxu0 0
    %3723 = vmatprep.subr.bf16.mxu0 0
    %3724 = vmatpush1.bf16.msra.mxu0 0
    %3725 = vmatprep.subr.bf16.mxu0 0
    %3726 = vmatpush1.bf16.msra.mxu0 0
    %3727 = vmatprep.subr.bf16.mxu0 0
    %3728 = vmatpush1.bf16.msra.mxu0 0
    %3729 = vmatprep.subr.bf16.mxu0 0
    %3730 = vmatpush1.bf16.msra.mxu0 0
    %3731 = vmatprep.subr.bf16.mxu0 0
    %3732 = vmatpush1.bf16.msra.mxu0 0
    %3733 = vmatprep.mubr.bf16.mxu0 0
    %3734 = vmatmul.mubr.bf16.gmra.mrb[0].mxu0 %v3467
    %v3735 = vpop.f32.mrb[0].mxu0
    %v3736 = vadd.f32 %v694, %v3735
    %v3737 = vpop.f32.mrb[0].mxu0
    %v3738 = vpop.f32.mrb[0].mxu0
    %v3739 = vadd.f32 %v697, %v3738
    %v3740 = vpop.f32.mrb[0].mxu0
    %3741 = vdwg.mxu0
    %v3742 = vmul.f32 %v3602, %v3503
    %v3743 = vmul.f32 %v3604, %v3506
    %v3744 = vadd.f32 %v3736, %v3742
    %v3745 = vadd.f32 %v3739, %v3743
    %v3746 = vtanh.pop %v3744
    %v3747 = vtanh.pop %v3745
    %v3748 = vsub.f32 1.0, %v3698
    %v3749 = vsub.f32 1.0, %v3700
    %v3750 = vmul.f32 %v3748, %v3746
    %v3751 = vmul.f32 %v3749, %v3747
    %v3752 = vmul.f32 %v3698, %v3381
    %v3753 = vmul.f32 %v3700, %v3382
    %v3754 = vadd.f32 %v3750, %v3752
    %v3755 = vadd.f32 %v3751, %v3753
    %v3756 = vpack.c.bf16 %v3755, %v3754
    %3757 = vmatprep.subr.bf16.mxu0 0
    %3758 = vmatpush1.bf16.msra.mxu0 %v862
    %3759 = vmatprep.subr.bf16.mxu0 0
    %3760 = vmatpush1.bf16.msra.mxu0 %v863
    %3761 = vmatprep.subr.bf16.mxu0 0
    %3762 = vmatpush1.bf16.msra.mxu0 %v864
    %3763 = vmatprep.subr.bf16.mxu0 0
    %3764 = vmatpush1.bf16.msra.mxu0 %v865
    %3765 = vmatprep.subr.bf16.mxu0 0
    %3766 = vmatpush1.bf16.msra.mxu0 %v866
    %3767 = vmatprep.subr.bf16.mxu0 0
    %3768 = vmatpush1.bf16.msra.mxu0 %v867
    %3769 = vmatprep.subr.bf16.mxu0 0
    %3770 = vmatpush1.bf16.msra.mxu0 %v868
    %3771 = vmatprep.subr.bf16.mxu0 0
    %3772 = vmatpush1.bf16.msra.mxu0 %v869
    %3773 = vmatprep.subr.bf16.mxu0 0
    %3774 = vmatpush1.bf16.msra.mxu0 0
    %3775 = vmatprep.subr.bf16.mxu0 0
    %3776 = vmatpush1.bf16.msra.mxu0 0
    %3777 = vmatprep.subr.bf16.mxu0 0
    %3778 = vmatpush1.bf16.msra.mxu0 0
    %3779 = vmatprep.subr.bf16.mxu0 0
    %3780 = vmatpush1.bf16.msra.mxu0 0
    %3781 = vmatprep.subr.bf16.mxu0 0
    %3782 = vmatpush1.bf16.msra.mxu0 0
    %3783 = vmatprep.subr.bf16.mxu0 0
    %3784 = vmatpush1.bf16.msra.mxu0 0
    %3785 = vmatprep.subr.bf16.mxu0 0
    %3786 = vmatpush1.bf16.msra.mxu0 0
    %3787 = vmatprep.subr.bf16.mxu0 0
    %3788 = vmatpush1.bf16.msra.mxu0 0
    %3789 = vmatprep.mubr.bf16.mxu0 0
    %3790 = vmatmul.mubr.bf16.gmra.mrb[0].mxu0 %v3756
    %v3791 = vpop.f32.mrb[0].mxu0
    %v3792 = vadd.f32 0.0, %v3791
    %v3793 = vpop.f32.mrb[0].mxu0
    %v3794 = vpop.f32.mrb[0].mxu0
    %v3795 = vadd.f32 0.0, %v3794
    %v3796 = vpop.f32.mrb[0].mxu0
    %3797 = vdwg.mxu0
    %v3798 = vpack.c.bf16 %v3795, %v3792
    %3799 = vmatprep.subr.bf16.mxu0 0
    %3800 = vmatpush1.bf16.msra.mxu0 %v3798
    %3801 = vmatprep.subr.bf16.mxu0 0
    %3802 = vmatpush1.bf16.msra.mxu0 0
    %3803 = vmatprep.subr.bf16.mxu0 0
    %3804 = vmatpush1.bf16.msra.mxu0 0
    %3805 = vmatprep.subr.bf16.mxu0 0
    %3806 = vmatpush1.bf16.msra.mxu0 0
    %3807 = vmatprep.subr.bf16.mxu0 0
    %3808 = vmatpush1.bf16.msra.mxu0 0
    %3809 = vmatprep.subr.bf16.mxu0 0
    %3810 = vmatpush1.bf16.msra.mxu0 0
    %3811 = vmatprep.subr.bf16.mxu0 0
    %3812 = vmatpush1.bf16.msra.mxu0 0
    %3813 = vmatprep.subr.bf16.mxu0 0
    %3814 = vmatpush1.bf16.msra.mxu0 0
    %3815 = vmatprep.subr.bf16.mxu0 0
    %3816 = vmatpush1.bf16.msra.mxu0 0
    %3817 = vmatprep.subr.bf16.mxu0 0
    %3818 = vmatpush1.bf16.msra.mxu0 0
    %3819 = vmatprep.subr.bf16.mxu0 0
    %3820 = vmatpush1.bf16.msra.mxu0 0
    %3821 = vmatprep.subr.bf16.mxu0 0
    %3822 = vmatpush1.bf16.msra.mxu0 0
    %3823 = vmatprep.subr.bf16.mxu0 0
    %3824 = vmatpush1.bf16.msra.mxu0 0
    %3825 = vmatprep.subr.bf16.mxu0 0
    %3826 = vmatpush1.bf16.msra.mxu0 0
    %3827 = vmatprep.subr.bf16.mxu0 0
    %3828 = vmatpush1.bf16.msra.mxu0 0
    %3829 = vmatprep.subr.bf16.mxu0 0
    %3830 = vmatpush1.bf16.msra.mxu0 0
    %3831 = vmatprep.mubr.bf16.mxu0 0
    %3832 = vmatmul.mubr.bf16.gmra.mrb[0].mxu0 %v927
    %v3833 = vpop.f32.mrb[0].mxu0
    %v3834 = vadd.f32 %v223, %v3833
    %v3835 = vpop.f32.mrb[0].mxu0
    %v3836 = vpop.f32.mrb[0].mxu0
    %v3837 = vadd.f32 %v224, %v3836
    %v3838 = vpop.f32.mrb[0].mxu0
    %3839 = vdwg.mxu0
    %v3840 = vpack.c.bf16 %v3837, %v3834
    %3841 = vmatprep.subr.bf16.mxu0 0
    %3842 = vmatpush1.bf16.msra.mxu0 %v1003
    %3843 = vmatprep.subr.bf16.mxu0 0
    %3844 = vmatpush1.bf16.msra.mxu0 %v1004
    %3845 = vmatprep.subr.bf16.mxu0 0
    %3846 = vmatpush1.bf16.msra.mxu0 %v1005
    %3847 = vmatprep.subr.bf16.mxu0 0
    %3848 = vmatpush1.bf16.msra.mxu0 %v1006
    %3849 = vmatprep.subr.bf16.mxu0 0
    %3850 = vmatpush1.bf16.msra.mxu0 %v1007
    %3851 = vmatprep.subr.bf16.mxu0 0
    %3852 = vmatpush1.bf16.msra.mxu0 %v1008
    %3853 = vmatprep.subr.bf16.mxu0 0
    %3854 = vmatpush1.bf16.msra.mxu0 %v1009
    %3855 = vmatprep.subr.bf16.mxu0 0
    %3856 = vmatpush1.bf16.msra.mxu0 %v1010
    %3857 = vmatprep.subr.bf16.mxu0 0
    %3858 = vmatpush1.bf16.msra.mxu0 0
    %3859 = vmatprep.subr.bf16.mxu0 0
    %3860 = vmatpush1.bf16.msra.mxu0 0
    %3861 = vmatprep.subr.bf16.mxu0 0
    %3862 = vmatpush1.bf16.msra.mxu0 0
    %3863 = vmatprep.subr.bf16.mxu0 0
    %3864 = vmatpush1.bf16.msra.mxu0 0
    %3865 = vmatprep.subr.bf16.mxu0 0
    %3866 = vmatpush1.bf16.msra.mxu0 0
    %3867 = vmatprep.subr.bf16.mxu0 0
    %3868 = vmatpush1.bf16.msra.mxu0 0
    %3869 = vmatprep.subr.bf16.mxu0 0
    %3870 = vmatpush1.bf16.msra.mxu0 0
    %3871 = vmatprep.subr.bf16.mxu0 0
    %3872 = vmatpush1.bf16.msra.mxu0 0
    %3873 = vmatprep.mubr.bf16.mxu0 0
    %3874 = vmatmul.mubr.bf16.gmra.mrb[0].mxu0 %v3756
    %v3875 = vpop.f32.mrb[0].mxu0
    %v3876 = vadd.f32 %v401, %v3875
    %v3877 = vpop.f32.mrb[0].mxu0
    %v3878 = vpop.f32.mrb[0].mxu0
    %v3879 = vadd.f32 %v401, %v3878
    %v3880 = vpop.f32.mrb[0].mxu0
    %3881 = vdwg.mxu0
    %3882 = vmatprep.subr.bf16.mxu0 0
    %3883 = vmatpush1.bf16.msra.mxu0 %v1092
    %3884 = vmatprep.subr.bf16.mxu0 0
    %3885 = vmatpush1.bf16.msra.mxu0 %v1093
    %3886 = vmatprep.subr.bf16.mxu0 0
    %3887 = vmatpush1.bf16.msra.mxu0 %v1094
    %3888 = vmatprep.subr.bf16.mxu0 0
    %3889 = vmatpush1.bf16.msra.mxu0 %v1095
    %3890 = vmatprep.subr.bf16.mxu0 0
    %3891 = vmatpush1.bf16.msra.mxu0 %v1096
    %3892 = vmatprep.subr.bf16.mxu0 0
    %3893 = vmatpush1.bf16.msra.mxu0 %v1097
    %3894 = vmatprep.subr.bf16.mxu0 0
    %3895 = vmatpush1.bf16.msra.mxu0 %v1098
    %3896 = vmatprep.subr.bf16.mxu0 0
    %3897 = vmatpush1.bf16.msra.mxu0 %v1099
    %3898 = vmatprep.subr.bf16.mxu0 0
    %3899 = vmatpush1.bf16.msra.mxu0 0
    %3900 = vmatprep.subr.bf16.mxu0 0
    %3901 = vmatpush1.bf16.msra.mxu0 0
    %3902 = vmatprep.subr.bf16.mxu0 0
    %3903 = vmatpush1.bf16.msra.mxu0 0
    %3904 = vmatprep.subr.bf16.mxu0 0
    %3905 = vmatpush1.bf16.msra.mxu0 0
    %3906 = vmatprep.subr.bf16.mxu0 0
    %3907 = vmatpush1.bf16.msra.mxu0 0
    %3908 = vmatprep.subr.bf16.mxu0 0
    %3909 = vmatpush1.bf16.msra.mxu0 0
    %3910 = vmatprep.subr.bf16.mxu0 0
    %3911 = vmatpush1.bf16.msra.mxu0 0
    %3912 = vmatprep.subr.bf16.mxu0 0
    %3913 = vmatpush1.bf16.msra.mxu0 0
    %3914 = vmatprep.mubr.bf16.mxu0 0
    %3915 = vmatmul.mubr.bf16.gmra.mrb[0].mxu0 %v3756
    %v3916 = vpop.f32.mrb[0].mxu0
    %v3917 = vadd.f32 0.0, %v3916
    %v3918 = vpop.f32.mrb[0].mxu0
    %v3919 = vpop.f32.mrb[0].mxu0
    %v3920 = vadd.f32 0.0, %v3919
    %v3921 = vpop.f32.mrb[0].mxu0
    %3922 = vdwg.mxu0
    %3923 = vmatprep.subr.bf16.mxu0 0
    %3924 = vmatpush1.bf16.msra.mxu0 %v1181
    %3925 = vmatprep.subr.bf16.mxu0 0
    %3926 = vmatpush1.bf16.msra.mxu0 %v1182
    %3927 = vmatprep.subr.bf16.mxu0 0
    %3928 = vmatpush1.bf16.msra.mxu0 %v1183
    %3929 = vmatprep.subr.bf16.mxu0 0
    %3930 = vmatpush1.bf16.msra.mxu0 %v1184
    %3931 = vmatprep.subr.bf16.mxu0 0
    %3932 = vmatpush1.bf16.msra.mxu0 %v1185
    %3933 = vmatprep.subr.bf16.mxu0 0
    %3934 = vmatpush1.bf16.msra.mxu0 %v1186
    %3935 = vmatprep.subr.bf16.mxu0 0
    %3936 = vmatpush1.bf16.msra.mxu0 %v1187
    %3937 = vmatprep.subr.bf16.mxu0 0
    %3938 = vmatpush1.bf16.msra.mxu0 %v1188
    %3939 = vmatprep.subr.bf16.mxu0 0
    %3940 = vmatpush1.bf16.msra.mxu0 0
    %3941 = vmatprep.subr.bf16.mxu0 0
    %3942 = vmatpush1.bf16.msra.mxu0 0
    %3943 = vmatprep.subr.bf16.mxu0 0
    %3944 = vmatpush1.bf16.msra.mxu0 0
    %3945 = vmatprep.subr.bf16.mxu0 0
    %3946 = vmatpush1.bf16.msra.mxu0 0
    %3947 = vmatprep.subr.bf16.mxu0 0
    %3948 = vmatpush1.bf16.msra.mxu0 0
    %3949 = vmatprep.subr.bf16.mxu0 0
    %3950 = vmatpush1.bf16.msra.mxu0 0
    %3951 = vmatprep.subr.bf16.mxu0 0
    %3952 = vmatpush1.bf16.msra.mxu0 0
    %3953 = vmatprep.subr.bf16.mxu0 0
    %3954 = vmatpush1.bf16.msra.mxu0 0
    %3955 = vmatprep.mubr.bf16.mxu0 0
    %3956 = vmatmul.mubr.bf16.gmra.mrb[0].mxu0 %v3840
    %v3957 = vpop.f32.mrb[0].mxu0
    %v3958 = vadd.f32 %v3917, %v3957
    %v3959 = vpop.f32.mrb[0].mxu0
    %v3960 = vpop.f32.mrb[0].mxu0
    %v3961 = vadd.f32 %v3920, %v3960
    %v3962 = vpop.f32.mrb[0].mxu0
    %3963 = vdwg.mxu0
    %v3964 = vadd.f32 %v3958, %v281
    %v3965 = vadd.f32 %v3961, %v284
    %v3966 = vsub.f32 0.0, %v3964
    %v3967 = vsub.f32 0.0, %v3965
    %v3968 = vmul.f32 %v3966, 1.442695
    %v3969 = vpow.pop %v3968
    %v3970 = vmul.f32 %v3967, 1.442695
    %v3971 = vpow.pop %v3970
    %v3972 = vadd.f32 %v3969, 1.0
    %v3973 = vadd.f32 %v3971, 1.0
    %v3974 = vrcp.pop %v3972
    %v3975 = vmul.f32 1.0, %v3974
    %v3976 = vrcp.pop %v3973
    %v3977 = vmul.f32 1.0, %v3976
    %3978 = vmatprep.subr.bf16.mxu0 0
    %3979 = vmatpush1.bf16.msra.mxu0 %v1284
    %3980 = vmatprep.subr.bf16.mxu0 0
    %3981 = vmatpush1.bf16.msra.mxu0 %v1285
    %3982 = vmatprep.subr.bf16.mxu0 0
    %3983 = vmatpush1.bf16.msra.mxu0 %v1286
    %3984 = vmatprep.subr.bf16.mxu0 0
    %3985 = vmatpush1.bf16.msra.mxu0 %v1287
    %3986 = vmatprep.subr.bf16.mxu0 0
    %3987 = vmatpush1.bf16.msra.mxu0 %v1288
    %3988 = vmatprep.subr.bf16.mxu0 0
    %3989 = vmatpush1.bf16.msra.mxu0 %v1289
    %3990 = vmatprep.subr.bf16.mxu0 0
    %3991 = vmatpush1.bf16.msra.mxu0 %v1290
    %3992 = vmatprep.subr.bf16.mxu0 0
    %3993 = vmatpush1.bf16.msra.mxu0 %v1291
    %3994 = vmatprep.subr.bf16.mxu0 0
    %3995 = vmatpush1.bf16.msra.mxu0 0
    %3996 = vmatprep.subr.bf16.mxu0 0
    %3997 = vmatpush1.bf16.msra.mxu0 0
    %3998 = vmatprep.subr.bf16.mxu0 0
    %3999 = vmatpush1.bf16.msra.mxu0 0
    %4000 = vmatprep.subr.bf16.mxu0 0
    %4001 = vmatpush1.bf16.msra.mxu0 0
    %4002 = vmatprep.subr.bf16.mxu0 0
    %4003 = vmatpush1.bf16.msra.mxu0 0
    %4004 = vmatprep.subr.bf16.mxu0 0
    %4005 = vmatpush1.bf16.msra.mxu0 0
    %4006 = vmatprep.subr.bf16.mxu0 0
    %4007 = vmatpush1.bf16.msra.mxu0 0
    %4008 = vmatprep.subr.bf16.mxu0 0
    %4009 = vmatpush1.bf16.msra.mxu0 0
    %4010 = vmatprep.mubr.bf16.mxu0 0
    %4011 = vmatmul.mubr.bf16.gmra.mrb[0].mxu0 %v3756
    %v4012 = vpop.f32.mrb[0].mxu0
    %v4013 = vadd.f32 0.0, %v4012
    %v4014 = vpop.f32.mrb[0].mxu0
    %v4015 = vpop.f32.mrb[0].mxu0
    %v4016 = vadd.f32 0.0, %v4015
    %v4017 = vpop.f32.mrb[0].mxu0
    %4018 = vdwg.mxu0
    %4019 = vmatprep.subr.bf16.mxu0 0
    %4020 = vmatpush1.bf16.msra.mxu0 %v1373
    %4021 = vmatprep.subr.bf16.mxu0 0
    %4022 = vmatpush1.bf16.msra.mxu0 %v1374
    %4023 = vmatprep.subr.bf16.mxu0 0
    %4024 = vmatpush1.bf16.msra.mxu0 %v1375
    %4025 = vmatprep.subr.bf16.mxu0 0
    %4026 = vmatpush1.bf16.msra.mxu0 %v1376
    %4027 = vmatprep.subr.bf16.mxu0 0
    %4028 = vmatpush1.bf16.msra.mxu0 %v1377
    %4029 = vmatprep.subr.bf16.mxu0 0
    %4030 = vmatpush1.bf16.msra.mxu0 %v1378
    %4031 = vmatprep.subr.bf16.mxu0 0
    %4032 = vmatpush1.bf16.msra.mxu0 %v1379
    %4033 = vmatprep.subr.bf16.mxu0 0
    %4034 = vmatpush1.bf16.msra.mxu0 %v1380
    %4035 = vmatprep.subr.bf16.mxu0 0
    %4036 = vmatpush1.bf16.msra.mxu0 0
    %4037 = vmatprep.subr.bf16.mxu0 0
    %4038 = vmatpush1.bf16.msra.mxu0 0
    %4039 = vmatprep.subr.bf16.mxu0 0
    %4040 = vmatpush1.bf16.msra.mxu0 0
    %4041 = vmatprep.subr.bf16.mxu0 0
    %4042 = vmatpush1.bf16.msra.mxu0 0
    %4043 = vmatprep.subr.bf16.mxu0 0
    %4044 = vmatpush1.bf16.msra.mxu0 0
    %4045 = vmatprep.subr.bf16.mxu0 0
    %4046 = vmatpush1.bf16.msra.mxu0 0
    %4047 = vmatprep.subr.bf16.mxu0 0
    %4048 = vmatpush1.bf16.msra.mxu0 0
    %4049 = vmatprep.subr.bf16.mxu0 0
    %4050 = vmatpush1.bf16.msra.mxu0 0
    %4051 = vmatprep.mubr.bf16.mxu0 0
    %4052 = vmatmul.mubr.bf16.gmra.mrb[0].mxu0 %v3840
    %v4053 = vpop.f32.mrb[0].mxu0
    %v4054 = vadd.f32 %v4013, %v4053
    %v4055 = vpop.f32.mrb[0].mxu0
    %v4056 = vpop.f32.mrb[0].mxu0
    %v4057 = vadd.f32 %v4016, %v4056
    %v4058 = vpop.f32.mrb[0].mxu0
    %4059 = vdwg.mxu0
    %v4060 = vadd.f32 %v4054, %v335
    %v4061 = vadd.f32 %v4057, %v338
    %v4062 = vsub.f32 0.0, %v4060
    %v4063 = vsub.f32 0.0, %v4061
    %v4064 = vmul.f32 %v4062, 1.442695
    %v4065 = vpow.pop %v4064
    %v4066 = vmul.f32 %v4063, 1.442695
    %v4067 = vpow.pop %v4066
    %v4068 = vadd.f32 %v4065, 1.0
    %v4069 = vadd.f32 %v4067, 1.0
    %v4070 = vrcp.pop %v4068
    %v4071 = vmul.f32 1.0, %v4070
    %v4072 = vrcp.pop %v4069
    %v4073 = vmul.f32 1.0, %v4072
    %4074 = vmatprep.subr.bf16.mxu0 0
    %4075 = vmatpush1.bf16.msra.mxu0 %v1476
    %4076 = vmatprep.subr.bf16.mxu0 0
    %4077 = vmatpush1.bf16.msra.mxu0 %v1477
    %4078 = vmatprep.subr.bf16.mxu0 0
    %4079 = vmatpush1.bf16.msra.mxu0 %v1478
    %4080 = vmatprep.subr.bf16.mxu0 0
    %4081 = vmatpush1.bf16.msra.mxu0 %v1479
    %4082 = vmatprep.subr.bf16.mxu0 0
    %4083 = vmatpush1.bf16.msra.mxu0 %v1480
    %4084 = vmatprep.subr.bf16.mxu0 0
    %4085 = vmatpush1.bf16.msra.mxu0 %v1481
    %4086 = vmatprep.subr.bf16.mxu0 0
    %4087 = vmatpush1.bf16.msra.mxu0 %v1482
    %4088 = vmatprep.subr.bf16.mxu0 0
    %4089 = vmatpush1.bf16.msra.mxu0 %v1483
    %4090 = vmatprep.subr.bf16.mxu0 0
    %4091 = vmatpush1.bf16.msra.mxu0 0
    %4092 = vmatprep.subr.bf16.mxu0 0
    %4093 = vmatpush1.bf16.msra.mxu0 0
    %4094 = vmatprep.subr.bf16.mxu0 0
    %4095 = vmatpush1.bf16.msra.mxu0 0
    %4096 = vmatprep.subr.bf16.mxu0 0
    %4097 = vmatpush1.bf16.msra.mxu0 0
    %4098 = vmatprep.subr.bf16.mxu0 0
    %4099 = vmatpush1.bf16.msra.mxu0 0
    %4100 = vmatprep.subr.bf16.mxu0 0
    %4101 = vmatpush1.bf16.msra.mxu0 0
    %4102 = vmatprep.subr.bf16.mxu0 0
    %4103 = vmatpush1.bf16.msra.mxu0 0
    %4104 = vmatprep.subr.bf16.mxu0 0
    %4105 = vmatpush1.bf16.msra.mxu0 0
    %4106 = vmatprep.mubr.bf16.mxu0 0
    %4107 = vmatmul.mubr.bf16.gmra.mrb[0].mxu0 %v3840
    %v4108 = vpop.f32.mrb[0].mxu0
    %v4109 = vadd.f32 %v389, %v4108
    %v4110 = vpop.f32.mrb[0].mxu0
    %v4111 = vpop.f32.mrb[0].mxu0
    %v4112 = vadd.f32 %v392, %v4111
    %v4113 = vpop.f32.mrb[0].mxu0
    %4114 = vdwg.mxu0
    %v4115 = vmul.f32 %v3975, %v3876
    %v4116 = vmul.f32 %v3977, %v3879
    %v4117 = vadd.f32 %v4109, %v4115
    %v4118 = vadd.f32 %v4112, %v4116
    %v4119 = vtanh.pop %v4117
    %v4120 = vtanh.pop %v4118
    %v4121 = vsub.f32 1.0, %v4071
    %v4122 = vsub.f32 1.0, %v4073
    %v4123 = vmul.f32 %v4121, %v4119
    %v4124 = vmul.f32 %v4122, %v4120
    %v4125 = vmul.f32 %v4071, %v3754
    %v4126 = vmul.f32 %v4073, %v3755
    %v4127 = vadd.f32 %v4123, %v4125
    %v4128 = vadd.f32 %v4124, %v4126
    %v4129 = vpack.c.bf16 %v4128, %v4127
    %4130 = vmatprep.subr.bf16.mxu0 0
    %4131 = vmatpush1.bf16.msra.mxu0 %v1580
    %4132 = vmatprep.subr.bf16.mxu0 0
    %4133 = vmatpush1.bf16.msra.mxu0 %v1581
    %4134 = vmatprep.subr.bf16.mxu0 0
    %4135 = vmatpush1.bf16.msra.mxu0 %v1582
    %4136 = vmatprep.subr.bf16.mxu0 0
    %4137 = vmatpush1.bf16.msra.mxu0 %v1583
    %4138 = vmatprep.subr.bf16.mxu0 0
    %4139 = vmatpush1.bf16.msra.mxu0 %v1584
    %4140 = vmatprep.subr.bf16.mxu0 0
    %4141 = vmatpush1.bf16.msra.mxu0 %v1585
    %4142 = vmatprep.subr.bf16.mxu0 0
    %4143 = vmatpush1.bf16.msra.mxu0 %v1586
    %4144 = vmatprep.subr.bf16.mxu0 0
    %4145 = vmatpush1.bf16.msra.mxu0 %v1587
    %4146 = vmatprep.subr.bf16.mxu0 0
    %4147 = vmatpush1.bf16.msra.mxu0 0
    %4148 = vmatprep.subr.bf16.mxu0 0
    %4149 = vmatpush1.bf16.msra.mxu0 0
    %4150 = vmatprep.subr.bf16.mxu0 0
    %4151 = vmatpush1.bf16.msra.mxu0 0
    %4152 = vmatprep.subr.bf16.mxu0 0
    %4153 = vmatpush1.bf16.msra.mxu0 0
    %4154 = vmatprep.subr.bf16.mxu0 0
    %4155 = vmatpush1.bf16.msra.mxu0 0
    %4156 = vmatprep.subr.bf16.mxu0 0
    %4157 = vmatpush1.bf16.msra.mxu0 0
    %4158 = vmatprep.subr.bf16.mxu0 0
    %4159 = vmatpush1.bf16.msra.mxu0 0
    %4160 = vmatprep.subr.bf16.mxu0 0
    %4161 = vmatpush1.bf16.msra.mxu0 0
    %4162 = vmatprep.mubr.bf16.mxu0 0
    %4163 = vmatmul.mubr.bf16.gmra.mrb[0].mxu0 %v4129
    %v4164 = vpop.f32.mrb[0].mxu0
    %v4165 = vadd.f32 0.0, %v4164
    %v4166 = vpop.f32.mrb[0].mxu0
    %v4167 = vpop.f32.mrb[0].mxu0
    %v4168 = vadd.f32 0.0, %v4167
    %v4169 = vpop.f32.mrb[0].mxu0
    %4170 = vdwg.mxu0
    %v4171 = vpack.c.bf16 %v4168, %v4165
    %4172 = vmatprep.subr.bf16.mxu0 0
    %4173 = vmatpush1.bf16.msra.mxu0 %v4171
    %4174 = vmatprep.subr.bf16.mxu0 0
    %4175 = vmatpush1.bf16.msra.mxu0 0
    %4176 = vmatprep.subr.bf16.mxu0 0
    %4177 = vmatpush1.bf16.msra.mxu0 0
    %4178 = vmatprep.subr.bf16.mxu0 0
    %4179 = vmatpush1.bf16.msra.mxu0 0
    %4180 = vmatprep.subr.bf16.mxu0 0
    %4181 = vmatpush1.bf16.msra.mxu0 0
    %4182 = vmatprep.subr.bf16.mxu0 0
    %4183 = vmatpush1.bf16.msra.mxu0 0
    %4184 = vmatprep.subr.bf16.mxu0 0
    %4185 = vmatpush1.bf16.msra.mxu0 0
    %4186 = vmatprep.subr.bf16.mxu0 0
    %4187 = vmatpush1.bf16.msra.mxu0 0
    %4188 = vmatprep.subr.bf16.mxu0 0
    %4189 = vmatpush1.bf16.msra.mxu0 0
    %4190 = vmatprep.subr.bf16.mxu0 0
    %4191 = vmatpush1.bf16.msra.mxu0 0
    %4192 = vmatprep.subr.bf16.mxu0 0
    %4193 = vmatpush1.bf16.msra.mxu0 0
    %4194 = vmatprep.subr.bf16.mxu0 0
    %4195 = vmatpush1.bf16.msra.mxu0 0
    %4196 = vmatprep.subr.bf16.mxu0 0
    %4197 = vmatpush1.bf16.msra.mxu0 0
    %4198 = vmatprep.subr.bf16.mxu0 0
    %4199 = vmatpush1.bf16.msra.mxu0 0
    %4200 = vmatprep.subr.bf16.mxu0 0
    %4201 = vmatpush1.bf16.msra.mxu0 0
    %4202 = vmatprep.subr.bf16.mxu0 0
    %4203 = vmatpush1.bf16.msra.mxu0 0
    %4204 = vmatprep.mubr.bf16.mxu0 0
    %4205 = vmatmul.mubr.bf16.gmra.mrb[0].mxu0 %v1644
    %v4206 = vpop.f32.mrb[0].mxu0
    %v4207 = vadd.f32 %v538, %v4206
    %v4208 = vpop.f32.mrb[0].mxu0
    %v4209 = vpop.f32.mrb[0].mxu0
    %v4210 = vadd.f32 %v539, %v4209
    %v4211 = vpop.f32.mrb[0].mxu0
    %4212 = vdwg.mxu0
    %v4213 = vpack.c.bf16 %v4210, %v4207
    %4214 = vmatprep.subr.bf16.mxu0 0
    %4215 = vmatpush1.bf16.msra.mxu0 %v1720
    %4216 = vmatprep.subr.bf16.mxu0 0
    %4217 = vmatpush1.bf16.msra.mxu0 %v1721
    %4218 = vmatprep.subr.bf16.mxu0 0
    %4219 = vmatpush1.bf16.msra.mxu0 %v1722
    %4220 = vmatprep.subr.bf16.mxu0 0
    %4221 = vmatpush1.bf16.msra.mxu0 %v1723
    %4222 = vmatprep.subr.bf16.mxu0 0
    %4223 = vmatpush1.bf16.msra.mxu0 %v1724
    %4224 = vmatprep.subr.bf16.mxu0 0
    %4225 = vmatpush1.bf16.msra.mxu0 %v1725
    %4226 = vmatprep.subr.bf16.mxu0 0
    %4227 = vmatpush1.bf16.msra.mxu0 %v1726
    %4228 = vmatprep.subr.bf16.mxu0 0
    %4229 = vmatpush1.bf16.msra.mxu0 %v1727
    %4230 = vmatprep.subr.bf16.mxu0 0
    %4231 = vmatpush1.bf16.msra.mxu0 0
    %4232 = vmatprep.subr.bf16.mxu0 0
    %4233 = vmatpush1.bf16.msra.mxu0 0
    %4234 = vmatprep.subr.bf16.mxu0 0
    %4235 = vmatpush1.bf16.msra.mxu0 0
    %4236 = vmatprep.subr.bf16.mxu0 0
    %4237 = vmatpush1.bf16.msra.mxu0 0
    %4238 = vmatprep.subr.bf16.mxu0 0
    %4239 = vmatpush1.bf16.msra.mxu0 0
    %4240 = vmatprep.subr.bf16.mxu0 0
    %4241 = vmatpush1.bf16.msra.mxu0 0
    %4242 = vmatprep.subr.bf16.mxu0 0
    %4243 = vmatpush1.bf16.msra.mxu0 0
    %4244 = vmatprep.subr.bf16.mxu0 0
    %4245 = vmatpush1.bf16.msra.mxu0 0
    %4246 = vmatprep.mubr.bf16.mxu0 0
    %4247 = vmatmul.mubr.bf16.gmra.mrb[0].mxu0 %v4129
    %v4248 = vpop.f32.mrb[0].mxu0
    %v4249 = vadd.f32 %v706, %v4248
    %v4250 = vpop.f32.mrb[0].mxu0
    %v4251 = vpop.f32.mrb[0].mxu0
    %v4252 = vadd.f32 %v706, %v4251
    %v4253 = vpop.f32.mrb[0].mxu0
    %4254 = vdwg.mxu0
    %4255 = vmatprep.subr.bf16.mxu0 0
    %4256 = vmatpush1.bf16.msra.mxu0 %v1809
    %4257 = vmatprep.subr.bf16.mxu0 0
    %4258 = vmatpush1.bf16.msra.mxu0 %v1810
    %4259 = vmatprep.subr.bf16.mxu0 0
    %4260 = vmatpush1.bf16.msra.mxu0 %v1811
    %4261 = vmatprep.subr.bf16.mxu0 0
    %4262 = vmatpush1.bf16.msra.mxu0 %v1812
    %4263 = vmatprep.subr.bf16.mxu0 0
    %4264 = vmatpush1.bf16.msra.mxu0 %v1813
    %4265 = vmatprep.subr.bf16.mxu0 0
    %4266 = vmatpush1.bf16.msra.mxu0 %v1814
    %4267 = vmatprep.subr.bf16.mxu0 0
    %4268 = vmatpush1.bf16.msra.mxu0 %v1815
    %4269 = vmatprep.subr.bf16.mxu0 0
    %4270 = vmatpush1.bf16.msra.mxu0 %v1816
    %4271 = vmatprep.subr.bf16.mxu0 0
    %4272 = vmatpush1.bf16.msra.mxu0 0
    %4273 = vmatprep.subr.bf16.mxu0 0
    %4274 = vmatpush1.bf16.msra.mxu0 0
    %4275 = vmatprep.subr.bf16.mxu0 0
    %4276 = vmatpush1.bf16.msra.mxu0 0
    %4277 = vmatprep.subr.bf16.mxu0 0
    %4278 = vmatpush1.bf16.msra.mxu0 0
    %4279 = vmatprep.subr.bf16.mxu0 0
    %4280 = vmatpush1.bf16.msra.mxu0 0
    %4281 = vmatprep.subr.bf16.mxu0 0
    %4282 = vmatpush1.bf16.msra.mxu0 0
    %4283 = vmatprep.subr.bf16.mxu0 0
    %4284 = vmatpush1.bf16.msra.mxu0 0
    %4285 = vmatprep.subr.bf16.mxu0 0
    %4286 = vmatpush1.bf16.msra.mxu0 0
    %4287 = vmatprep.mubr.bf16.mxu0 0
    %4288 = vmatmul.mubr.bf16.gmra.mrb[0].mxu0 %v4129
    %v4289 = vpop.f32.mrb[0].mxu0
    %v4290 = vadd.f32 0.0, %v4289
    %v4291 = vpop.f32.mrb[0].mxu0
    %v4292 = vpop.f32.mrb[0].mxu0
    %v4293 = vadd.f32 0.0, %v4292
    %v4294 = vpop.f32.mrb[0].mxu0
    %4295 = vdwg.mxu0
    %4296 = vmatprep.subr.bf16.mxu0 0
    %4297 = vmatpush1.bf16.msra.mxu0 %v1898
    %4298 = vmatprep.subr.bf16.mxu0 0
    %4299 = vmatpush1.bf16.msra.mxu0 %v1899
    %4300 = vmatprep.subr.bf16.mxu0 0
    %4301 = vmatpush1.bf16.msra.mxu0 %v1900
    %4302 = vmatprep.subr.bf16.mxu0 0
    %4303 = vmatpush1.bf16.msra.mxu0 %v1901
    %4304 = vmatprep.subr.bf16.mxu0 0
    %4305 = vmatpush1.bf16.msra.mxu0 %v1902
    %4306 = vmatprep.subr.bf16.mxu0 0
    %4307 = vmatpush1.bf16.msra.mxu0 %v1903
    %4308 = vmatprep.subr.bf16.mxu0 0
    %4309 = vmatpush1.bf16.msra.mxu0 %v1904
    %4310 = vmatprep.subr.bf16.mxu0 0
    %4311 = vmatpush1.bf16.msra.mxu0 %v1905
    %4312 = vmatprep.subr.bf16.mxu0 0
    %4313 = vmatpush1.bf16.msra.mxu0 0
    %4314 = vmatprep.subr.bf16.mxu0 0
    %4315 = vmatpush1.bf16.msra.mxu0 0
    %4316 = vmatprep.subr.bf16.mxu0 0
    %4317 = vmatpush1.bf16.msra.mxu0 0
    %4318 = vmatprep.subr.bf16.mxu0 0
    %4319 = vmatpush1.bf16.msra.mxu0 0
    %4320 = vmatprep.subr.bf16.mxu0 0
    %4321 = vmatpush1.bf16.msra.mxu0 0
    %4322 = vmatprep.subr.bf16.mxu0 0
    %4323 = vmatpush1.bf16.msra.mxu0 0
    %4324 = vmatprep.subr.bf16.mxu0 0
    %4325 = vmatpush1.bf16.msra.mxu0 0
    %4326 = vmatprep.subr.bf16.mxu0 0
    %4327 = vmatpush1.bf16.msra.mxu0 0
    %4328 = vmatprep.mubr.bf16.mxu0 0
    %4329 = vmatmul.mubr.bf16.gmra.mrb[0].mxu0 %v4213
    %v4330 = vpop.f32.mrb[0].mxu0
    %v4331 = vadd.f32 %v4290, %v4330
    %v4332 = vpop.f32.mrb[0].mxu0
    %v4333 = vpop.f32.mrb[0].mxu0
    %v4334 = vadd.f32 %v4293, %v4333
    %v4335 = vpop.f32.mrb[0].mxu0
    %4336 = vdwg.mxu0
    %v4337 = vadd.f32 %v4331, %v586
    %v4338 = vadd.f32 %v4334, %v589
    %v4339 = vsub.f32 0.0, %v4337
    %v4340 = vsub.f32 0.0, %v4338
    %v4341 = vmul.f32 %v4339, 1.442695
    %v4342 = vpow.pop %v4341
    %v4343 = vmul.f32 %v4340, 1.442695
    %v4344 = vpow.pop %v4343
    %v4345 = vadd.f32 %v4342, 1.0
    %v4346 = vadd.f32 %v4344, 1.0
    %v4347 = vrcp.pop %v4345
    %v4348 = vmul.f32 1.0, %v4347
    %v4349 = vrcp.pop %v4346
    %v4350 = vmul.f32 1.0, %v4349
    %4351 = vmatprep.subr.bf16.mxu0 0
    %4352 = vmatpush1.bf16.msra.mxu0 %v2001
    %4353 = vmatprep.subr.bf16.mxu0 0
    %4354 = vmatpush1.bf16.msra.mxu0 %v2002
    %4355 = vmatprep.subr.bf16.mxu0 0
    %4356 = vmatpush1.bf16.msra.mxu0 %v2003
    %4357 = vmatprep.subr.bf16.mxu0 0
    %4358 = vmatpush1.bf16.msra.mxu0 %v2004
    %4359 = vmatprep.subr.bf16.mxu0 0
    %4360 = vmatpush1.bf16.msra.mxu0 %v2005
    %4361 = vmatprep.subr.bf16.mxu0 0
    %4362 = vmatpush1.bf16.msra.mxu0 %v2006
    %4363 = vmatprep.subr.bf16.mxu0 0
    %4364 = vmatpush1.bf16.msra.mxu0 %v2007
    %4365 = vmatprep.subr.bf16.mxu0 0
    %4366 = vmatpush1.bf16.msra.mxu0 %v2008
    %4367 = vmatprep.subr.bf16.mxu0 0
    %4368 = vmatpush1.bf16.msra.mxu0 0
    %4369 = vmatprep.subr.bf16.mxu0 0
    %4370 = vmatpush1.bf16.msra.mxu0 0
    %4371 = vmatprep.subr.bf16.mxu0 0
    %4372 = vmatpush1.bf16.msra.mxu0 0
    %4373 = vmatprep.subr.bf16.mxu0 0
    %4374 = vmatpush1.bf16.msra.mxu0 0
    %4375 = vmatprep.subr.bf16.mxu0 0
    %4376 = vmatpush1.bf16.msra.mxu0 0
    %4377 = vmatprep.subr.bf16.mxu0 0
    %4378 = vmatpush1.bf16.msra.mxu0 0
    %4379 = vmatprep.subr.bf16.mxu0 0
    %4380 = vmatpush1.bf16.msra.mxu0 0
    %4381 = vmatprep.subr.bf16.mxu0 0
    %4382 = vmatpush1.bf16.msra.mxu0 0
    %4383 = vmatprep.mubr.bf16.mxu0 0
    %4384 = vmatmul.mubr.bf16.gmra.mrb[0].mxu0 %v4129
    %v4385 = vpop.f32.mrb[0].mxu0
    %v4386 = vadd.f32 0.0, %v4385
    %v4387 = vpop.f32.mrb[0].mxu0
    %v4388 = vpop.f32.mrb[0].mxu0
    %v4389 = vadd.f32 0.0, %v4388
    %v4390 = vpop.f32.mrb[0].mxu0
    %4391 = vdwg.mxu0
    %4392 = vmatprep.subr.bf16.mxu0 0
    %4393 = vmatpush1.bf16.msra.mxu0 %v2090
    %4394 = vmatprep.subr.bf16.mxu0 0
    %4395 = vmatpush1.bf16.msra.mxu0 %v2091
    %4396 = vmatprep.subr.bf16.mxu0 0
    %4397 = vmatpush1.bf16.msra.mxu0 %v2092
    %4398 = vmatprep.subr.bf16.mxu0 0
    %4399 = vmatpush1.bf16.msra.mxu0 %v2093
    %4400 = vmatprep.subr.bf16.mxu0 0
    %4401 = vmatpush1.bf16.msra.mxu0 %v2094
    %4402 = vmatprep.subr.bf16.mxu0 0
    %4403 = vmatpush1.bf16.msra.mxu0 %v2095
    %4404 = vmatprep.subr.bf16.mxu0 0
    %4405 = vmatpush1.bf16.msra.mxu0 %v2096
    %4406 = vmatprep.subr.bf16.mxu0 0
    %4407 = vmatpush1.bf16.msra.mxu0 %v2097
    %4408 = vmatprep.subr.bf16.mxu0 0
    %4409 = vmatpush1.bf16.msra.mxu0 0
    %4410 = vmatprep.subr.bf16.mxu0 0
    %4411 = vmatpush1.bf16.msra.mxu0 0
    %4412 = vmatprep.subr.bf16.mxu0 0
    %4413 = vmatpush1.bf16.msra.mxu0 0
    %4414 = vmatprep.subr.bf16.mxu0 0
    %4415 = vmatpush1.bf16.msra.mxu0 0
    %4416 = vmatprep.subr.bf16.mxu0 0
    %4417 = vmatpush1.bf16.msra.mxu0 0
    %4418 = vmatprep.subr.bf16.mxu0 0
    %4419 = vmatpush1.bf16.msra.mxu0 0
    %4420 = vmatprep.subr.bf16.mxu0 0
    %4421 = vmatpush1.bf16.msra.mxu0 0
    %4422 = vmatprep.subr.bf16.mxu0 0
    %4423 = vmatpush1.bf16.msra.mxu0 0
    %4424 = vmatprep.mubr.bf16.mxu0 0
    %4425 = vmatmul.mubr.bf16.gmra.mrb[0].mxu0 %v4213
    %v4426 = vpop.f32.mrb[0].mxu0
    %v4427 = vadd.f32 %v4386, %v4426
    %v4428 = vpop.f32.mrb[0].mxu0
    %v4429 = vpop.f32.mrb[0].mxu0
    %v4430 = vadd.f32 %v4389, %v4429
    %v4431 = vpop.f32.mrb[0].mxu0
    %4432 = vdwg.mxu0
    %v4433 = vadd.f32 %v4427, %v640
    %v4434 = vadd.f32 %v4430, %v643
    %v4435 = vsub.f32 0.0, %v4433
    %v4436 = vsub.f32 0.0, %v4434
    %v4437 = vmul.f32 %v4435, 1.442695
    %v4438 = vpow.pop %v4437
    %v4439 = vmul.f32 %v4436, 1.442695
    %v4440 = vpow.pop %v4439
    %v4441 = vadd.f32 %v4438, 1.0
    %v4442 = vadd.f32 %v4440, 1.0
    %v4443 = vrcp.pop %v4441
    %v4444 = vmul.f32 1.0, %v4443
    %v4445 = vrcp.pop %v4442
    %v4446 = vmul.f32 1.0, %v4445
    %4447 = vmatprep.subr.bf16.mxu0 0
    %4448 = vmatpush1.bf16.msra.mxu0 %v2193
    %4449 = vmatprep.subr.bf16.mxu0 0
    %4450 = vmatpush1.bf16.msra.mxu0 %v2194
    %4451 = vmatprep.subr.bf16.mxu0 0
    %4452 = vmatpush1.bf16.msra.mxu0 %v2195
    %4453 = vmatprep.subr.bf16.mxu0 0
    %4454 = vmatpush1.bf16.msra.mxu0 %v2196
    %4455 = vmatprep.subr.bf16.mxu0 0
    %4456 = vmatpush1.bf16.msra.mxu0 %v2197
    %4457 = vmatprep.subr.bf16.mxu0 0
    %4458 = vmatpush1.bf16.msra.mxu0 %v2198
    %4459 = vmatprep.subr.bf16.mxu0 0
    %4460 = vmatpush1.bf16.msra.mxu0 %v2199
    %4461 = vmatprep.subr.bf16.mxu0 0
    %4462 = vmatpush1.bf16.msra.mxu0 %v2200
    %4463 = vmatprep.subr.bf16.mxu0 0
    %4464 = vmatpush1.bf16.msra.mxu0 0
    %4465 = vmatprep.subr.bf16.mxu0 0
    %4466 = vmatpush1.bf16.msra.mxu0 0
    %4467 = vmatprep.subr.bf16.mxu0 0
    %4468 = vmatpush1.bf16.msra.mxu0 0
    %4469 = vmatprep.subr.bf16.mxu0 0
    %4470 = vmatpush1.bf16.msra.mxu0 0
    %4471 = vmatprep.subr.bf16.mxu0 0
    %4472 = vmatpush1.bf16.msra.mxu0 0
    %4473 = vmatprep.subr.bf16.mxu0 0
    %4474 = vmatpush1.bf16.msra.mxu0 0
    %4475 = vmatprep.subr.bf16.mxu0 0
    %4476 = vmatpush1.bf16.msra.mxu0 0
    %4477 = vmatprep.subr.bf16.mxu0 0
    %4478 = vmatpush1.bf16.msra.mxu0 0
    %4479 = vmatprep.mubr.bf16.mxu0 0
    %4480 = vmatmul.mubr.bf16.gmra.mrb[0].mxu0 %v4213
    %v4481 = vpop.f32.mrb[0].mxu0
    %v4482 = vadd.f32 %v694, %v4481
    %v4483 = vpop.f32.mrb[0].mxu0
    %v4484 = vpop.f32.mrb[0].mxu0
    %v4485 = vadd.f32 %v697, %v4484
    %v4486 = vpop.f32.mrb[0].mxu0
    %4487 = vdwg.mxu0
    %v4488 = vmul.f32 %v4348, %v4249
    %v4489 = vmul.f32 %v4350, %v4252
    %v4490 = vadd.f32 %v4482, %v4488
    %v4491 = vadd.f32 %v4485, %v4489
    %v4492 = vtanh.pop %v4490
    %v4493 = vtanh.pop %v4491
    %v4494 = vsub.f32 1.0, %v4444
    %v4495 = vsub.f32 1.0, %v4446
    %v4496 = vmul.f32 %v4494, %v4492
    %v4497 = vmul.f32 %v4495, %v4493
    %v4498 = vmul.f32 %v4444, %v4127
    %v4499 = vmul.f32 %v4446, %v4128
    %v4500 = vadd.f32 %v4496, %v4498
    %v4501 = vadd.f32 %v4497, %v4499
    %v4502 = vpack.c.bf16 %v4501, %v4500
    %v4503 = vld [vmem:[#allocation17] sm:$0xf]
    %v4504 = vld [vmem:[#allocation17 + $0x4] sm:$0xf]
    %v4505 = vld [vmem:[#allocation17 + $0x8] sm:$0xf]
    %v4506 = vld [vmem:[#allocation17 + $0xc] sm:$0xf]
    %v4507 = vld [vmem:[#allocation17 + $0x10] sm:$0xf]
    %v4508 = vld [vmem:[#allocation17 + $0x14] sm:$0xf]
    %v4509 = vld [vmem:[#allocation17 + $0x18] sm:$0xf]
    %v4510 = vld [vmem:[#allocation17 + $0x1c] sm:$0xf]
    %v4511 = vld [vmem:[#allocation17 + $0x20] sm:$0xf]
    %v4512 = vld [vmem:[#allocation17 + $0x24] sm:$0xf]
    %v4513 = vld [vmem:[#allocation17 + $0x28] sm:$0xf]
    %v4514 = vld [vmem:[#allocation17 + $0x2c] sm:$0xf]
    %v4515 = vld [vmem:[#allocation17 + $0x30] sm:$0xf]
    %v4516 = vld [vmem:[#allocation17 + $0x34] sm:$0xf]
    %v4517 = vld [vmem:[#allocation17 + $0x38] sm:$0xf]
    %v4518 = vld [vmem:[#allocation17 + $0x3c] sm:$0xf]
    %v4519 = vld [vmem:[%s18] sm:$0x1]
    %v4521 = vlaneseq
    %v4522 = vshrl.u32 %v4521, 7
    %v4523 = vsub.s32 0, %v4522
    %v4524 = vrot.slane %v4519, %v4523
    %v4542 = vunpack.c.l.b16 %v4503
    %v4543 = vunpack.c.l.b16 %v4504
    %v4544 = vunpack.c.l.b16 %v4505
    %v4545 = vunpack.c.l.b16 %v4506
    %v4546 = vunpack.c.l.b16 %v4507
    %v4547 = vunpack.c.l.b16 %v4508
    %v4548 = vunpack.c.l.b16 %v4509
    %v4549 = vunpack.c.l.b16 %v4510
    %v4550 = vunpack.c.l.b16 %v4511
    %v4551 = vunpack.c.l.b16 %v4512
    %v4552 = vunpack.c.l.b16 %v4513
    %v4553 = vunpack.c.l.b16 %v4514
    %v4554 = vunpack.c.l.b16 %v4515
    %v4555 = vunpack.c.l.b16 %v4516
    %v4556 = vunpack.c.l.b16 %v4517
    %v4557 = vunpack.c.l.b16 %v4518
    %v4558 = vpack.c.b16 %v4543, %v4542
    %v4559 = vpack.c.b16 %v4545, %v4544
    %v4560 = vpack.c.b16 %v4547, %v4546
    %v4561 = vpack.c.b16 %v4549, %v4548
    %v4562 = vpack.c.b16 %v4551, %v4550
    %v4563 = vpack.c.b16 %v4553, %v4552
    %v4564 = vpack.c.b16 %v4555, %v4554
    %v4565 = vpack.c.b16 %v4557, %v4556
    %4574 = vmatprep.subr.bf16.mxu0 0
    %4575 = vmatpush1.bf16.msra.mxu0 %v4558
    %4576 = vmatprep.subr.bf16.mxu0 0
    %4577 = vmatpush1.bf16.msra.mxu0 %v4559
    %4578 = vmatprep.subr.bf16.mxu0 0
    %4579 = vmatpush1.bf16.msra.mxu0 %v4560
    %4580 = vmatprep.subr.bf16.mxu0 0
    %4581 = vmatpush1.bf16.msra.mxu0 %v4561
    %4582 = vmatprep.subr.bf16.mxu0 0
    %4583 = vmatpush1.bf16.msra.mxu0 %v4562
    %4584 = vmatprep.subr.bf16.mxu0 0
    %4585 = vmatpush1.bf16.msra.mxu0 %v4563
    %4586 = vmatprep.subr.bf16.mxu0 0
    %4587 = vmatpush1.bf16.msra.mxu0 %v4564
    %4588 = vmatprep.subr.bf16.mxu0 0
    %4589 = vmatpush1.bf16.msra.mxu0 %v4565
    %4590 = vmatprep.subr.bf16.mxu0 0
    %4591 = vmatpush1.bf16.msra.mxu0 0
    %4592 = vmatprep.subr.bf16.mxu0 0
    %4593 = vmatpush1.bf16.msra.mxu0 0
    %4594 = vmatprep.subr.bf16.mxu0 0
    %4595 = vmatpush1.bf16.msra.mxu0 0
    %4596 = vmatprep.subr.bf16.mxu0 0
    %4597 = vmatpush1.bf16.msra.mxu0 0
    %4598 = vmatprep.subr.bf16.mxu0 0
    %4599 = vmatpush1.bf16.msra.mxu0 0
    %4600 = vmatprep.subr.bf16.mxu0 0
    %4601 = vmatpush1.bf16.msra.mxu0 0
    %4602 = vmatprep.subr.bf16.mxu0 0
    %4603 = vmatpush1.bf16.msra.mxu0 0
    %4604 = vmatprep.subr.bf16.mxu0 0
    %4605 = vmatpush1.bf16.msra.mxu0 0
    %4606 = vmatprep.mubr.bf16.mxu0 0
    %4607 = vmatmul.mubr.bf16.gmra.mrb[0].mxu0 %v4502
    %v4608 = vpop.f32.mrb[0].mxu0
    %v4609 = vadd.f32 %v4524, %v4608
    %v4610 = vpop.f32.mrb[0].mxu0
    %v4611 = vpop.f32.mrb[0].mxu0
    %v4612 = vadd.f32 %v4524, %v4611
    %v4613 = vpop.f32.mrb[0].mxu0
    %4614 = vdwg.mxu0
    %4615 = vst [vmem:[#allocation19] sm:$0xff] %v4609
    %4616 = vst [vmem:[#allocation19 + $0x8] sm:$0xff] %v4612
    // Predicated region
    $region118: #{tpu_custom_call.1} parent=1 // pred_check
      _
    $region119: #{tpu_custom_call.1} parent=1 // pred_check_branch
      %4618 = sbr.rel (0) target = $region121
    $region120: #{tpu_custom_call.1} parent=1 // pred_region
      %s4620 = ssub.s32 256, 256
      %4621 = vsyncadd [#allocation4], %s4620
      %s4622 = sshll.u32 [#allocation19], 4
      %s4623 = int_to_ptr.vmem [resolvable:$true] %s4622
      %4628 = dma.vmem_to_hbm [thread:$0]  %s4623, 256, %s19, [#allocation4], 128, 128, 8
    $region121: #{tpu_custom_call.1} parent=1 // pred_fallthru
      _
    // Predicated region
    $region122: #{tpu_custom_call.1} parent=1 // pred_check
      _
    $region123: #{tpu_custom_call.1} parent=1 // pred_check_branch
      %4630 = sbr.rel (0) target = $region125
    $region124: #{tpu_custom_call.1} parent=1 // pred_region
      %4631 = dma.done [#allocation4], 256
    $region125: #{tpu_custom_call.1} parent=1 // pred_fallthru
      _
    %4632 = vsyncpa [#allocation3], 1
    %4633 = vsyncpa [#allocation6], 1
    %4634 = vsyncpa [#allocation9], 1
    %4635 = vsyncpa [#allocation12], 1
    %4636 = vsyncpa [#allocation15], 1
    %4637 = vsyncpa [#allocation18], 1
    %4638 = vsyncpa [#allocation4], 1

</llo_original>
